<compile_context>
chip_gen: v5e
topology: v5e:2x2
jax: 0.10.0
libtpu: 0.0.40
codegen_flags: <defaults>
</compile_context>

<pallas_src>
import functools

import jax
import jax.numpy as jnp
from jax.experimental import pallas as pl
from jax.experimental.pallas import tpu as pltpu

EPS = 1e-5     # nn.InstanceNorm2d default eps (affine=False, no running stats)
LANE = 128     # channel padding target (lane-dense activations)


def _round_up(v, m):
    return (v + m - 1) // m * m


# --------------------------------------------------------------------------------------
# Fused conv-matmul kernel:  out = epilogue(A @ B + bias)
# --------------------------------------------------------------------------------------
def _epilogue(y, res, *, epilogue, phases, m_real):
    """y: (m_tile, Np) f32.  epilogue in {None, 'tanh', 'in', 'in_relu'}.
    For 'in'/'in_relu': per-channel InstanceNorm over the real rows (and phase groups),
    optionally followed by a fused residual add ('in' + res) or ReLU."""
    if epilogue == "tanh":
        return jnp.tanh(y)
    if epilogue not in ("in", "in_relu"):
        return y if res is None else y + res

    m_tile, n_cols = y.shape
    cp = n_cols // phases

    mask = None
    if m_real != m_tile:   # rows beyond the real spatial extent are zero-padded in A
        row = jax.lax.broadcasted_iota(jnp.int32, y.shape, 0)
        mask = (row < m_real).astype(jnp.float32)

    def group(t):          # (1, n_cols): sum phase groups, replicate back per phase
        if phases == 1:
            return t
        g = t[:, 0:cp]
        for p in range(1, phases):
            g = g + t[:, p * cp:(p + 1) * cp]
        return jnp.concatenate([g] * phases, axis=1)

    inv_n = 1.0 / float(m_real * phases)
    ym = y if mask is None else y * mask
    mean = group(jnp.sum(ym, axis=0, keepdims=True)) * inv_n
    yc = y - mean
    sq = yc * yc if mask is None else yc * yc * mask
    var = group(jnp.sum(sq, axis=0, keepdims=True)) * inv_n
    out = yc * jax.lax.rsqrt(var + EPS)
    if res is not None:
        out = out + res
    if epilogue == "in_relu":
        out = jnp.maximum(out, 0.0)
    return out


def _mm_kernel(*refs, epilogue, phases, m_real, has_res, nk):
    # inputs: a (1,Mp,tk) bf16, b (tk,Np) bf16, bias (1,Np) f32, [res (1,Mp,Np) bf16]
    # output: o (1,Mp,Np); scratch acc (Mp,Np) f32 only when nk > 1.
    if has_res:
        a_ref, b_ref, bias_ref, res_ref = refs[:4]
        rest = refs[4:]
    else:
        a_ref, b_ref, bias_ref = refs[:3]
        res_ref = None
        rest = refs[3:]

    def finalize(y, o_ref):
        res = None if res_ref is None else res_ref[0].astype(jnp.float32)
        o_ref[0] = _epilogue(y, res, epilogue=epilogue, phases=phases,
                             m_real=m_real).astype(o_ref.dtype)

    if nk == 1:
        (o_ref,) = rest
        y = jnp.dot(a_ref[0], b_ref[...],
                    preferred_element_type=jnp.float32) + bias_ref[...]
        finalize(y, o_ref)
    else:
        o_ref, acc_ref = rest

        @pl.when(pl.program_id(1) == 0)
        def _():
            acc_ref[...] = jnp.zeros_like(acc_ref)

        acc_ref[...] += jnp.dot(a_ref[0], b_ref[...],
                                preferred_element_type=jnp.float32)

        @pl.when(pl.program_id(1) == pl.num_programs(1) - 1)
        def _():
            finalize(acc_ref[...] + bias_ref[...], o_ref)


def fused_matmul(a, wmat, bias, *, epilogue=None, phases=1, res=None,
                 out_dtype=jnp.bfloat16, tk_max=1024):
    """a: (N, M, K); wmat: (Kp, Np) bf16; bias: (1, Np) f32; res: (N, M, Np) or None.
    Returns (N, Mp, Np) out_dtype (rows/channels padded; caller slices rows).
    Per-image M tile so the InstanceNorm epilogue sees the full spatial extent.
    # TODO(synk): very large images need M-tiling + a two-pass IN (partial sums)
    # to stay inside v7x's 64 MiB VMEM.
    """
    N, M, K = a.shape
    Kp, Np = wmat.shape
    Mp = _round_up(M, 8)
    tk = Kp if Kp <= tk_max else tk_max
    nk = Kp // tk

    a_p = a.astype(jnp.bfloat16)
    if (Mp, Kp) != (M, K):
        a_p = jnp.pad(a_p, ((0, 0), (0, Mp - M), (0, Kp - K)))

    inputs = [a_p, wmat, bias]
    in_specs = [
        pl.BlockSpec((1, Mp, tk), lambda n, k: (n, 0, k)),
        pl.BlockSpec((tk, Np), lambda n, k: (k, 0)),      # independent of n -> resident
        pl.BlockSpec((1, Np), lambda n, k: (0, 0)),
    ]
    if res is not None:
        res_p = res.astype(jnp.bfloat16)
        if Mp != M:
            res_p = jnp.pad(res_p, ((0, 0), (0, Mp - M), (0, 0)))
        inputs.append(res_p)
        in_specs.append(pl.BlockSpec((1, Mp, Np), lambda n, k: (n, 0, 0)))

    kern = functools.partial(_mm_kernel, epilogue=epilogue, phases=phases,
                             m_real=M, has_res=res is not None, nk=nk)
    scratch = [] if nk == 1 else [pltpu.VMEM((Mp, Np), jnp.float32)]

    return pl.pallas_call(
        kern,
        out_shape=jax.ShapeDtypeStruct((N, Mp, Np), out_dtype),
        grid=(N, nk),
        in_specs=in_specs,
        out_specs=pl.BlockSpec((1, Mp, Np), lambda n, k: (n, 0, 0)),
        scratch_shapes=scratch,
        compiler_params=pltpu.CompilerParams(
            dimension_semantics=("parallel", "arbitrary")),
    )(*inputs)


# --------------------------------------------------------------------------------------
# AvgPool2d(3, stride=2, padding=[1,1], count_include_pad=False)
# --------------------------------------------------------------------------------------
def _avg_pool_kernel(e00_ref, e01_ref, e10_ref, e11_ref, inv_ref, o_ref):
    Ho, Wo = o_ref.shape[1], o_ref.shape[2]
    e00 = e00_ref[...]
    e01 = e01_ref[...]
    e10 = e10_ref[...]
    e11 = e11_ref[...]

    def win(e, dh, dw):
        return e[:, dh:dh + Ho, dw:dw + Wo, :]

    total = (win(e00, 0, 0) + win(e01, 0, 0) + win(e00, 0, 1)
             + win(e10, 0, 0) + win(e11, 0, 0) + win(e10, 0, 1)
             + win(e00, 1, 0) + win(e01, 1, 0) + win(e00, 1, 1))
    o_ref[...] = total * inv_ref[...]


def avg_pool_3x3_s2_p1(x_nhwc):
    N, H, W, C = x_nhwc.shape
    Ho = (H + 2 - 3) // 2 + 1
    Wo = (W + 2 - 3) // 2 + 1
    Hp2, Wp2 = 2 * (Ho + 1), 2 * (Wo + 1)
    xp = jnp.zeros((N, Hp2, Wp2, C), jnp.float32).at[:, 1:H + 1, 1:W + 1, :].set(x_nhwc)
    xr = xp.reshape(N, Ho + 1, 2, Wo + 1, 2, C)
    e00 = xr[:, :, 0, :, 0, :]
    e01 = xr[:, :, 0, :, 1, :]
    e10 = xr[:, :, 1, :, 0, :]
    e11 = xr[:, :, 1, :, 1, :]

    cnt_h = [sum(1 for t in range(3) if 0 <= 2 * o + t - 1 <= H - 1) for o in range(Ho)]
    cnt_w = [sum(1 for t in range(3) if 0 <= 2 * o + t - 1 <= W - 1) for o in range(Wo)]
    inv = 1.0 / (jnp.array(cnt_h, jnp.float32)[:, None] * jnp.array(cnt_w, jnp.float32)[None, :])
    inv = inv.reshape(1, Ho, Wo, 1)

    plane_spec = pl.BlockSpec((1, Ho + 1, Wo + 1, C), lambda n: (n, 0, 0, 0))
    return pl.pallas_call(
        _avg_pool_kernel,
        out_shape=jax.ShapeDtypeStruct((N, Ho, Wo, C), jnp.float32),
        grid=(N,),
        in_specs=[plane_spec, plane_spec, plane_spec, plane_spec,
                  pl.BlockSpec((1, Ho, Wo, 1), lambda n: (0, 0, 0, 0))],
        out_specs=pl.BlockSpec((1, Ho, Wo, C), lambda n: (n, 0, 0, 0)),
        compiler_params=pltpu.CompilerParams(dimension_semantics=("parallel",)),
    )(e00, e01, e10, e11, inv)


# --------------------------------------------------------------------------------------
# Conv wrappers (XLA glue: padding + tap gathering; all weights pre-packed outside jit)
# --------------------------------------------------------------------------------------
def conv2d(x_nhwc, packed_w, *, ksize, cin, stride=1, pad=0, pad_mode="zero",
           epilogue=None, res=None, out_dtype=jnp.bfloat16):
    wmat, bias = packed_w
    if pad > 0:
        mode = "reflect" if pad_mode == "reflect" else "constant"
        x = jnp.pad(x_nhwc, ((0, 0), (pad, pad), (pad, pad), (0, 0)), mode=mode)
    else:
        x = x_nhwc
    N, H, W, _ = x.shape
    Ho = (H - ksize) // stride + 1
    Wo = (W - ksize) // stride + 1
    # TODO(synk): fold these tap gathers into the matmul via per-tap index_map offsets
    # (in-kernel im2col) to cut conv input HBM reads ~K*K-fold at real resolutions.
    cols = [x[:, i:i + stride * Ho:stride, j:j + stride * Wo:stride, :cin]
            for i in range(ksize) for j in range(ksize)]
    a = jnp.concatenate(cols, axis=-1).reshape(N, Ho * Wo, ksize * ksize * cin)
    res_a = None if res is None else res.reshape(N, Ho * Wo, res.shape[-1])
    out = fused_matmul(a, wmat, bias, epilogue=epilogue, phases=1,
                       res=res_a, out_dtype=out_dtype)
    return out[:, :Ho * Wo, :].reshape(N, Ho, Wo, -1)


def conv_transpose2d(x_nhwc, packed_w, *, cin, out_dtype=jnp.bfloat16):
    """ConvTranspose2d(k=3, s=2, p=1, op=1) via sub-pixel phase decomposition: one matmul
    producing all 4 output phases, IN+ReLU fused over the 4 phase groups in-kernel."""
    wmat, bias = packed_w
    N, H, W, _ = x_nhwc.shape
    x = x_nhwc[..., :cin]
    # TODO(synk): the 4 shifted taps + concat and the phase interleave could be folded
    # into the matmul index_map / out_spec to drop the 4x input read amplification.
    xr = jnp.pad(x[:, :, 1:, :], ((0, 0), (0, 0), (0, 1), (0, 0)))     # x[m, n+1]
    xd = jnp.pad(x[:, 1:, :, :], ((0, 0), (0, 1), (0, 0), (0, 0)))     # x[m+1, n]
    xdr = jnp.pad(x[:, 1:, 1:, :], ((0, 0), (0, 1), (0, 1), (0, 0)))   # x[m+1, n+1]
    a = jnp.concatenate([x, xr, xd, xdr], axis=-1).reshape(N, H * W, 4 * cin)
    out = fused_matmul(a, wmat, bias, epilogue="in_relu", phases=4, out_dtype=out_dtype)
    cp = out.shape[-1] // 4
    out = out[:, :H * W, :].reshape(N, H, W, 2, 2, cp)
    out = jnp.transpose(out, (0, 1, 3, 2, 4, 5)).reshape(N, 2 * H, 2 * W, cp)
    return out


# --------------------------------------------------------------------------------------
# Parameter init (matches module __init__: Conv/ConvT ~ N(0, 0.02), bias 0) + packing
# --------------------------------------------------------------------------------------
def init_params(key, in_c, out_c, nf, n_down, n_res):
    params = {}
    keys = iter(jax.random.split(key, 4 + n_down + 2 * n_res + n_down))

    def nrm(k, shape):
        return jax.random.normal(k, shape, jnp.float32) * 0.02

    params["c0_w"] = nrm(next(keys), (nf, in_c, 7, 7))
    params["c0_b"] = jnp.zeros((nf,), jnp.float32)
    for i in range(n_down):
        mult = 2 ** i
        params[f"down{i}_w"] = nrm(next(keys), (nf * mult * 2, nf * mult, 3, 3))
        params[f"down{i}_b"] = jnp.zeros((nf * mult * 2,), jnp.float32)
    dim = nf * 2 ** n_down
    for j in range(n_res):
        params[f"res{j}_w0"] = nrm(next(keys), (dim, dim, 3, 3))
        params[f"res{j}_b0"] = jnp.zeros((dim,), jnp.float32)
        params[f"res{j}_w1"] = nrm(next(keys), (dim, dim, 3, 3))
        params[f"res{j}_b1"] = jnp.zeros((dim,), jnp.float32)
    for i in range(n_down):
        mult = 2 ** (n_down - i)
        params[f"up{i}_w"] = nrm(next(keys), (nf * mult, nf * mult // 2, 3, 3))  # (Cin,Cout,K,K)
        params[f"up{i}_b"] = jnp.zeros((nf * mult // 2,), jnp.float32)
    params["head_w"] = nrm(next(keys), (out_c, nf, 7, 7))
    params["head_b"] = jnp.zeros((out_c,), jnp.float32)
    return params


def pack_conv(w_oihw, b, tk_max=1024):
    """(Cout,Cin,KH,KW) -> im2col matrix (Kp, Np) bf16 + bias (1, Np) f32, lane-padded."""
    cout, cin, kh, kw = w_oihw.shape
    k = kh * kw * cin
    np_ = _round_up(cout, LANE)
    kp = k if k <= tk_max else _round_up(k, tk_max)
    wmat = jnp.transpose(w_oihw, (2, 3, 1, 0)).reshape(k, cout)
    wmat = jnp.pad(wmat, ((0, kp - k), (0, np_ - cout))).astype(jnp.bfloat16)
    bias = jnp.pad(b.reshape(1, cout), ((0, 0), (0, np_ - cout))).astype(jnp.float32)
    return (wmat, bias)


def pack_convT(w_iohw, b, tk_max=1024):
    """(Cin,Cout,3,3) -> phase-packed matrix (4*Cin, 4*Cp) bf16 + bias (1, 4*Cp) f32.
    Column groups = output phases (0,0),(0,1),(1,0),(1,1); each group lane-padded to 128."""
    cin, cout, _, _ = w_iohw.shape
    cp = _round_up(cout, LANE)

    def wk(kh, kw):
        return jnp.pad(w_iohw[:, :, kh, kw], ((0, 0), (0, cp - cout)))

    z = jnp.zeros((cin, cp), jnp.float32)
    row_x = jnp.concatenate([wk(1, 1), wk(1, 2), wk(2, 1), wk(2, 2)], axis=1)   # x[m,n]
    row_xr = jnp.concatenate([z, wk(1, 0), z, wk(2, 0)], axis=1)                # x[m,n+1]
    row_xd = jnp.concatenate([z, z, wk(0, 1), wk(0, 2)], axis=1)                # x[m+1,n]
    row_xdr = jnp.concatenate([z, z, z, wk(0, 0)], axis=1)                      # x[m+1,n+1]
    wmat = jnp.concatenate([row_x, row_xr, row_xd, row_xdr], axis=0)            # (4*Cin, 4*Cp)
    k = 4 * cin
    kp = k if k <= tk_max else _round_up(k, tk_max)
    wmat = jnp.pad(wmat, ((0, kp - k), (0, 0))).astype(jnp.bfloat16)
    bias_p = jnp.pad(b.reshape(1, cout), ((0, 0), (0, cp - cout)))
    bias = jnp.concatenate([bias_p] * 4, axis=1).astype(jnp.float32)
    return (wmat, bias)


def pack_params(params, nf, n_down, n_res):
    packed = {"c0": pack_conv(params["c0_w"], params["c0_b"]),
              "head": pack_conv(params["head_w"], params["head_b"])}
    for i in range(n_down):
        packed[f"down{i}"] = pack_conv(params[f"down{i}_w"], params[f"down{i}_b"])
    for j in range(n_res):
        packed[f"res{j}_0"] = pack_conv(params[f"res{j}_w0"], params[f"res{j}_b0"])
        packed[f"res{j}_1"] = pack_conv(params[f"res{j}_w1"], params[f"res{j}_b1"])
    for i in range(n_down):
        packed[f"up{i}"] = pack_convT(params[f"up{i}_w"], params[f"up{i}_b"])
    return packed


# --------------------------------------------------------------------------------------
# GlobalGenerator forward
# --------------------------------------------------------------------------------------
def global_generator_forward(x_nchw, packed, nf, n_down, n_res, in_c, out_c):
    x = jnp.transpose(x_nchw, (0, 2, 3, 1)).astype(jnp.float32)   # NCHW -> NHWC

    # downsample branch (real channel count; returned directly)
    downsampled = avg_pool_3x3_s2_p1(x)

    # global_layers: every conv carries 128-lane-padded bf16 activations, IN/ReLU fused
    h = conv2d(downsampled, packed["c0"], ksize=7, cin=in_c,
               pad=3, pad_mode="reflect", epilogue="in_relu")
    cur = nf
    for i in range(n_down):
        h = conv2d(h, packed[f"down{i}"], ksize=3, cin=cur,
                   stride=2, pad=1, epilogue="in_relu")
        cur *= 2
    for j in range(n_res):
        # gen_residual_dropout == 0.0 -> no dropout layer, exactly as in __init__
        r = conv2d(h, packed[f"res{j}_0"], ksize=3, cin=cur,
                   pad=1, pad_mode="reflect", epilogue="in_relu")
        h = conv2d(r, packed[f"res{j}_1"], ksize=3, cin=cur,
                   pad=1, pad_mode="reflect", epilogue="in", res=h)   # IN + residual fused
    for i in range(n_down):
        h = conv_transpose2d(h, packed[f"up{i}"], cin=cur)            # IN + ReLU fused
        cur //= 2
    output = h                                                         # real channels = nf

    # global_head (tanh fused into the conv matmul epilogue)
    img = conv2d(output, packed["head"], ksize=7, cin=nf,
                 pad=3, pad_mode="reflect", epilogue="tanh", out_dtype=jnp.float32)

    # single channel-slice at the very end; NHWC -> NCHW to match PyTorch convention
    return (
        jnp.transpose(downsampled, (0, 3, 1, 2)),
        jnp.transpose(output[..., :nf].astype(jnp.float32), (0, 3, 1, 2)),
        jnp.transpose(img[..., :out_c], (0, 3, 1, 2)),
    )


if __name__ == "__main__":
    # config
    NF = 8            # gen_first_conv_filter_count
    N_DOWN = 2        # gen_global_downsampling_count
    N_RES = 2         # gen_global_residual_block_count
    IN_C, OUT_C = 4, 3

    key = jax.random.PRNGKey(0)
    kx, kp = jax.random.split(key)
    x = jax.random.normal(kx, (2, IN_C, 16, 16), jnp.float32)   # NCHW, like PyTorch
    params = init_params(kp, IN_C, OUT_C, NF, N_DOWN, N_RES)
    packed = pack_params(params, NF, N_DOWN, N_RES)             # one-time weight packing

    fwd = jax.jit(lambda xx, pp: global_generator_forward(xx, pp, NF, N_DOWN, N_RES, IN_C, OUT_C))
    downsampled, output, image = fwd(x, packed)
    jax.block_until_ready((downsampled, output, image))

    assert downsampled.shape == (2, IN_C, 8, 8)
    assert output.shape == (2, NF, 8, 8)
    assert image.shape == (2, OUT_C, 8, 8)
    print("KERNEL_OK")
</pallas_src>

<mosaic_0001>
module attributes {stable_mosaic.version = 11 : i64} {
  func.func @_avg_pool_kernel(%arg0: i32, %arg1: memref<1x9x9x4xf32, #tpu.memory_space<vmem>>, %arg2: memref<1x9x9x4xf32, #tpu.memory_space<vmem>>, %arg3: memref<1x9x9x4xf32, #tpu.memory_space<vmem>>, %arg4: memref<1x9x9x4xf32, #tpu.memory_space<vmem>>, %arg5: memref<1x8x8x1xf32, #tpu.memory_space<vmem>>, %arg6: memref<1x8x8x4xf32, #tpu.memory_space<vmem>>) attributes {dimension_semantics = [#tpu.dimension_semantics<parallel>], iteration_bounds = array<i64: 2>, scalar_prefetch = 0 : i64, scratch_operands = 0 : i64, tpu.core_type = #tpu.core_type<tc>, window_params = [{transform_indices = @transform_0, window_bounds = array<i64: 1, 9, 9, 4>}, {transform_indices = @transform_1, window_bounds = array<i64: 1, 9, 9, 4>}, {transform_indices = @transform_2, window_bounds = array<i64: 1, 9, 9, 4>}, {transform_indices = @transform_3, window_bounds = array<i64: 1, 9, 9, 4>}, {pipeline_mode = #tpu.pipeline_mode<synchronous>, transform_indices = @transform_4, window_bounds = array<i64: 1, 8, 8, 1>}, {transform_indices = @transform_5, window_bounds = array<i64: 1, 8, 8, 4>}]} {
    %c0 = arith.constant 0 : index
    %c0_0 = arith.constant 0 : index
    %c0_1 = arith.constant 0 : index
    %c0_2 = arith.constant 0 : index
    %0 = vector.load %arg1[%c0, %c0_0, %c0_1, %c0_2] : memref<1x9x9x4xf32, #tpu.memory_space<vmem>>, vector<1x9x9x4xf32>
    %c0_3 = arith.constant 0 : index
    %c0_4 = arith.constant 0 : index
    %c0_5 = arith.constant 0 : index
    %c0_6 = arith.constant 0 : index
    %1 = vector.load %arg2[%c0_3, %c0_4, %c0_5, %c0_6] : memref<1x9x9x4xf32, #tpu.memory_space<vmem>>, vector<1x9x9x4xf32>
    %c0_7 = arith.constant 0 : index
    %c0_8 = arith.constant 0 : index
    %c0_9 = arith.constant 0 : index
    %c0_10 = arith.constant 0 : index
    %2 = vector.load %arg3[%c0_7, %c0_8, %c0_9, %c0_10] : memref<1x9x9x4xf32, #tpu.memory_space<vmem>>, vector<1x9x9x4xf32>
    %c0_11 = arith.constant 0 : index
    %c0_12 = arith.constant 0 : index
    %c0_13 = arith.constant 0 : index
    %c0_14 = arith.constant 0 : index
    %3 = vector.load %arg4[%c0_11, %c0_12, %c0_13, %c0_14] : memref<1x9x9x4xf32, #tpu.memory_space<vmem>>, vector<1x9x9x4xf32>
    %4 = vector.extract_strided_slice %0 {offsets = [0, 0, 0, 0], sizes = [1, 8, 8, 4], strides = [1, 1, 1, 1]} : vector<1x9x9x4xf32> to vector<1x8x8x4xf32>
    %5 = vector.extract_strided_slice %1 {offsets = [0, 0, 0, 0], sizes = [1, 8, 8, 4], strides = [1, 1, 1, 1]} : vector<1x9x9x4xf32> to vector<1x8x8x4xf32>
    %6 = arith.addf %4, %5 : vector<1x8x8x4xf32>
    %7 = vector.extract_strided_slice %0 {offsets = [0, 0, 1, 0], sizes = [1, 8, 8, 4], strides = [1, 1, 1, 1]} : vector<1x9x9x4xf32> to vector<1x8x8x4xf32>
    %8 = arith.addf %6, %7 : vector<1x8x8x4xf32>
    %9 = vector.extract_strided_slice %2 {offsets = [0, 0, 0, 0], sizes = [1, 8, 8, 4], strides = [1, 1, 1, 1]} : vector<1x9x9x4xf32> to vector<1x8x8x4xf32>
    %10 = arith.addf %8, %9 : vector<1x8x8x4xf32>
    %11 = vector.extract_strided_slice %3 {offsets = [0, 0, 0, 0], sizes = [1, 8, 8, 4], strides = [1, 1, 1, 1]} : vector<1x9x9x4xf32> to vector<1x8x8x4xf32>
    %12 = arith.addf %10, %11 : vector<1x8x8x4xf32>
    %13 = vector.extract_strided_slice %2 {offsets = [0, 0, 1, 0], sizes = [1, 8, 8, 4], strides = [1, 1, 1, 1]} : vector<1x9x9x4xf32> to vector<1x8x8x4xf32>
    %14 = arith.addf %12, %13 : vector<1x8x8x4xf32>
    %15 = vector.extract_strided_slice %0 {offsets = [0, 1, 0, 0], sizes = [1, 8, 8, 4], strides = [1, 1, 1, 1]} : vector<1x9x9x4xf32> to vector<1x8x8x4xf32>
    %16 = arith.addf %14, %15 : vector<1x8x8x4xf32>
    %17 = vector.extract_strided_slice %1 {offsets = [0, 1, 0, 0], sizes = [1, 8, 8, 4], strides = [1, 1, 1, 1]} : vector<1x9x9x4xf32> to vector<1x8x8x4xf32>
    %18 = arith.addf %16, %17 : vector<1x8x8x4xf32>
    %19 = vector.extract_strided_slice %0 {offsets = [0, 1, 1, 0], sizes = [1, 8, 8, 4], strides = [1, 1, 1, 1]} : vector<1x9x9x4xf32> to vector<1x8x8x4xf32>
    %20 = arith.addf %18, %19 : vector<1x8x8x4xf32>
    %c0_15 = arith.constant 0 : index
    %c0_16 = arith.constant 0 : index
    %c0_17 = arith.constant 0 : index
    %c0_18 = arith.constant 0 : index
    %21 = vector.load %arg5[%c0_15, %c0_16, %c0_17, %c0_18] : memref<1x8x8x1xf32, #tpu.memory_space<vmem>>, vector<1x8x8x1xf32>
    %22 = vector.broadcast %21 : vector<1x8x8x1xf32> to vector<1x8x8x4xf32>
    %23 = arith.mulf %20, %22 : vector<1x8x8x4xf32>
    %c0_19 = arith.constant 0 : index
    %c0_20 = arith.constant 0 : index
    %c0_21 = arith.constant 0 : index
    %c0_22 = arith.constant 0 : index
    %24 = vector.load %arg6[%c0_19, %c0_20, %c0_21, %c0_22] : memref<1x8x8x4xf32, #tpu.memory_space<vmem>>, vector<1x8x8x4xf32>
    tpu.vector_store %arg6[%c0_19, %c0_20, %c0_21, %c0_22], %23 {strides = array<i32>} : memref<1x8x8x4xf32, #tpu.memory_space<vmem>>, vector<1x8x8x4xf32>,
    return
  }
  func.func @transform_0(%arg0: i32) -> (i32, i32, i32, i32) {
    %c0_i32 = arith.constant 0 : i32
    %c0_i32_0 = arith.constant 0 : i32
    %c0_i32_1 = arith.constant 0 : i32
    %c0_i32_2 = arith.constant 0 : i32
    return %arg0, %c0_i32, %c0_i32_0, %c0_i32_1 : i32, i32, i32, i32
  }
  func.func @transform_1(%arg0: i32) -> (i32, i32, i32, i32) {
    %c0_i32 = arith.constant 0 : i32
    %c0_i32_0 = arith.constant 0 : i32
    %c0_i32_1 = arith.constant 0 : i32
    %c0_i32_2 = arith.constant 0 : i32
    return %arg0, %c0_i32, %c0_i32_0, %c0_i32_1 : i32, i32, i32, i32
  }
  func.func @transform_2(%arg0: i32) -> (i32, i32, i32, i32) {
    %c0_i32 = arith.constant 0 : i32
    %c0_i32_0 = arith.constant 0 : i32
    %c0_i32_1 = arith.constant 0 : i32
    %c0_i32_2 = arith.constant 0 : i32
    return %arg0, %c0_i32, %c0_i32_0, %c0_i32_1 : i32, i32, i32, i32
  }
  func.func @transform_3(%arg0: i32) -> (i32, i32, i32, i32) {
    %c0_i32 = arith.constant 0 : i32
    %c0_i32_0 = arith.constant 0 : i32
    %c0_i32_1 = arith.constant 0 : i32
    %c0_i32_2 = arith.constant 0 : i32
    return %arg0, %c0_i32, %c0_i32_0, %c0_i32_1 : i32, i32, i32, i32
  }
  func.func @transform_4(%arg0: i32) -> (i32, i32, i32, i32) {
    %c0_i32 = arith.constant 0 : i32
    %c0_i32_0 = arith.constant 0 : i32
    %c0_i32_1 = arith.constant 0 : i32
    %c0_i32_2 = arith.constant 0 : i32
    %c0_i32_3 = arith.constant 0 : i32
    return %c0_i32, %c0_i32_0, %c0_i32_1, %c0_i32_2 : i32, i32, i32, i32
  }
  func.func @transform_5(%arg0: i32) -> (i32, i32, i32, i32) {
    %c0_i32 = arith.constant 0 : i32
    %c0_i32_0 = arith.constant 0 : i32
    %c0_i32_1 = arith.constant 0 : i32
    %c0_i32_2 = arith.constant 0 : i32
    return %arg0, %c0_i32, %c0_i32_0, %c0_i32_1 : i32, i32, i32, i32
  }
}

module attributes {stable_mosaic.version = 11 : i64} {
  func.func @_mm_kernel(%arg0: i32, %arg1: i32, %arg2: memref<1x64x196xbf16, #tpu.memory_space<vmem>>, %arg3: memref<196x128xbf16, #tpu.memory_space<vmem>>, %arg4: memref<1x128xf32, #tpu.memory_space<vmem>>, %arg5: memref<1x64x128xbf16, #tpu.memory_space<vmem>>) attributes {dimension_semantics = [#tpu.dimension_semantics<parallel>, #tpu.dimension_semantics<arbitrary>], iteration_bounds = array<i64: 2, 1>, scalar_prefetch = 0 : i64, scratch_operands = 0 : i64, tpu.core_type = #tpu.core_type<tc>, window_params = [{transform_indices = @transform_0, window_bounds = array<i64: 1, 64, 196>}, {transform_indices = @transform_1, window_bounds = array<i64: 196, 128>}, {pipeline_mode = #tpu.pipeline_mode<synchronous>, transform_indices = @transform_2, window_bounds = array<i64: 1, 128>}, {transform_indices = @transform_3, window_bounds = array<i64: 1, 64, 128>}]} {
    %c0 = arith.constant 0 : index
    %c0_0 = arith.constant 0 : index
    %c0_1 = arith.constant 0 : index
    %0 = vector.load %arg2[%c0, %c0_0, %c0_1] : memref<1x64x196xbf16, #tpu.memory_space<vmem>>, vector<1x64x196xbf16>
    %1 = vector.shape_cast %0 : vector<1x64x196xbf16> to vector<64x196xbf16>
    %c0_2 = arith.constant 0 : index
    %c0_3 = arith.constant 0 : index
    %2 = vector.load %arg3[%c0_2, %c0_3] : memref<196x128xbf16, #tpu.memory_space<vmem>>, vector<196x128xbf16>
    %cst = arith.constant dense<0.000000e+00> : vector<64x128xf32>
    %3 = tpu.matmul %1, %2, %cst {dimension_numbers = #tpu.dot_dimension_numbers<[1], [0], [0], [1], [0, 0, 1, 1], [], []>} : vector<64x196xbf16>, vector<196x128xbf16>, vector<64x128xf32> -> vector<64x128xf32>
    %c0_4 = arith.constant 0 : index
    %c0_5 = arith.constant 0 : index
    %4 = vector.load %arg4[%c0_4, %c0_5] : memref<1x128xf32, #tpu.memory_space<vmem>>, vector<1x128xf32>
    %5 = vector.broadcast %4 : vector<1x128xf32> to vector<64x128xf32>
    %6 = arith.addf %3, %5 : vector<64x128xf32>
    %cst_6 = arith.constant dense<0.000000e+00> : vector<128xf32>
    %7 = vector.multi_reduction <add>, %6, %cst_6 [0] : vector<64x128xf32> to vector<128xf32>
    %8 = vector.shape_cast %7 : vector<128xf32> to vector<1x128xf32>
    %cst_7 = arith.constant 1.562500e-02 : f32
    %9 = vector.broadcast %cst_7 : f32 to vector<1x128xf32>
    %10 = arith.mulf %8, %9 : vector<1x128xf32>
    %11 = vector.broadcast %10 : vector<1x128xf32> to vector<64x128xf32>
    %12 = arith.subf %6, %11 : vector<64x128xf32>
    %13 = arith.mulf %12, %12 : vector<64x128xf32>
    %cst_8 = arith.constant dense<0.000000e+00> : vector<128xf32>
    %14 = vector.multi_reduction <add>, %13, %cst_8 [0] : vector<64x128xf32> to vector<128xf32>
    %15 = vector.shape_cast %14 : vector<128xf32> to vector<1x128xf32>
    %cst_9 = arith.constant 1.562500e-02 : f32
    %16 = vector.broadcast %cst_9 : f32 to vector<1x128xf32>
    %17 = arith.mulf %15, %16 : vector<1x128xf32>
    %cst_10 = arith.constant 9.99999974E-6 : f32
    %18 = vector.broadcast %cst_10 : f32 to vector<1x128xf32>
    %19 = arith.addf %17, %18 : vector<1x128xf32>
    %20 = math.rsqrt %19 : vector<1x128xf32>
    %21 = vector.broadcast %20 : vector<1x128xf32> to vector<64x128xf32>
    %22 = arith.mulf %12, %21 : vector<64x128xf32>
    %cst_11 = arith.constant 0.000000e+00 : f32
    %23 = vector.broadcast %cst_11 : f32 to vector<64x128xf32>
    %24 = arith.maximumf %22, %23 : vector<64x128xf32>
    %25 = arith.truncf %24 : vector<64x128xf32> to vector<64x128xbf16>
    %c0_12 = arith.constant 0 : index
    %c0_13 = arith.constant 0 : index
    %c0_14 = arith.constant 0 : index
    %26 = vector.load %arg5[%c0_12, %c0_13, %c0_14] : memref<1x64x128xbf16, #tpu.memory_space<vmem>>, vector<1x64x128xbf16>
    %27 = vector.shape_cast %26 : vector<1x64x128xbf16> to vector<64x128xbf16>
    %28 = vector.shape_cast %25 : vector<64x128xbf16> to vector<1x64x128xbf16>
    tpu.vector_store %arg5[%c0_12, %c0_13, %c0_14], %28 {strides = array<i32>} : memref<1x64x128xbf16, #tpu.memory_space<vmem>>, vector<1x64x128xbf16>,
    return
  }
  func.func @transform_0(%arg0: i32, %arg1: i32) -> (i32, i32, i32) {
    %c0_i32 = arith.constant 0 : i32
    %c0_i32_0 = arith.constant 0 : i32
    return %arg0, %c0_i32, %arg1 : i32, i32, i32
  }
  func.func @transform_1(%arg0: i32, %arg1: i32) -> (i32, i32) {
    %c0_i32 = arith.constant 0 : i32
    %c0_i32_0 = arith.constant 0 : i32
    return %arg1, %c0_i32 : i32, i32
  }
  func.func @transform_2(%arg0: i32, %arg1: i32) -> (i32, i32) {
    %c0_i32 = arith.constant 0 : i32
    %c0_i32_0 = arith.constant 0 : i32
    %c0_i32_1 = arith.constant 0 : i32
    return %c0_i32, %c0_i32_0 : i32, i32
  }
  func.func @transform_3(%arg0: i32, %arg1: i32) -> (i32, i32, i32) {
    %c0_i32 = arith.constant 0 : i32
    %c0_i32_0 = arith.constant 0 : i32
    %c0_i32_1 = arith.constant 0 : i32
    return %arg0, %c0_i32, %c0_i32_0 : i32, i32, i32
  }
}

module attributes {stable_mosaic.version = 11 : i64} {
  func.func @_mm_kernel(%arg0: i32, %arg1: i32, %arg2: memref<1x16x72xbf16, #tpu.memory_space<vmem>>, %arg3: memref<72x128xbf16, #tpu.memory_space<vmem>>, %arg4: memref<1x128xf32, #tpu.memory_space<vmem>>, %arg5: memref<1x16x128xbf16, #tpu.memory_space<vmem>>) attributes {dimension_semantics = [#tpu.dimension_semantics<parallel>, #tpu.dimension_semantics<arbitrary>], iteration_bounds = array<i64: 2, 1>, scalar_prefetch = 0 : i64, scratch_operands = 0 : i64, tpu.core_type = #tpu.core_type<tc>, window_params = [{transform_indices = @transform_0, window_bounds = array<i64: 1, 16, 72>}, {transform_indices = @transform_1, window_bounds = array<i64: 72, 128>}, {pipeline_mode = #tpu.pipeline_mode<synchronous>, transform_indices = @transform_2, window_bounds = array<i64: 1, 128>}, {transform_indices = @transform_3, window_bounds = array<i64: 1, 16, 128>}]} {
    %c0 = arith.constant 0 : index
    %c0_0 = arith.constant 0 : index
    %c0_1 = arith.constant 0 : index
    %0 = vector.load %arg2[%c0, %c0_0, %c0_1] : memref<1x16x72xbf16, #tpu.memory_space<vmem>>, vector<1x16x72xbf16>
    %1 = vector.shape_cast %0 : vector<1x16x72xbf16> to vector<16x72xbf16>
    %c0_2 = arith.constant 0 : index
    %c0_3 = arith.constant 0 : index
    %2 = vector.load %arg3[%c0_2, %c0_3] : memref<72x128xbf16, #tpu.memory_space<vmem>>, vector<72x128xbf16>
    %cst = arith.constant dense<0.000000e+00> : vector<16x128xf32>
    %3 = tpu.matmul %1, %2, %cst {dimension_numbers = #tpu.dot_dimension_numbers<[1], [0], [0], [1], [0, 0, 1, 1], [], []>} : vector<16x72xbf16>, vector<72x128xbf16>, vector<16x128xf32> -> vector<16x128xf32>
    %c0_4 = arith.constant 0 : index
    %c0_5 = arith.constant 0 : index
    %4 = vector.load %arg4[%c0_4, %c0_5] : memref<1x128xf32, #tpu.memory_space<vmem>>, vector<1x128xf32>
    %5 = vector.broadcast %4 : vector<1x128xf32> to vector<16x128xf32>
    %6 = arith.addf %3, %5 : vector<16x128xf32>
    %cst_6 = arith.constant dense<0.000000e+00> : vector<128xf32>
    %7 = vector.multi_reduction <add>, %6, %cst_6 [0] : vector<16x128xf32> to vector<128xf32>
    %8 = vector.shape_cast %7 : vector<128xf32> to vector<1x128xf32>
    %cst_7 = arith.constant 6.250000e-02 : f32
    %9 = vector.broadcast %cst_7 : f32 to vector<1x128xf32>
    %10 = arith.mulf %8, %9 : vector<1x128xf32>
    %11 = vector.broadcast %10 : vector<1x128xf32> to vector<16x128xf32>
    %12 = arith.subf %6, %11 : vector<16x128xf32>
    %13 = arith.mulf %12, %12 : vector<16x128xf32>
    %cst_8 = arith.constant dense<0.000000e+00> : vector<128xf32>
    %14 = vector.multi_reduction <add>, %13, %cst_8 [0] : vector<16x128xf32> to vector<128xf32>
    %15 = vector.shape_cast %14 : vector<128xf32> to vector<1x128xf32>
    %cst_9 = arith.constant 6.250000e-02 : f32
    %16 = vector.broadcast %cst_9 : f32 to vector<1x128xf32>
    %17 = arith.mulf %15, %16 : vector<1x128xf32>
    %cst_10 = arith.constant 9.99999974E-6 : f32
    %18 = vector.broadcast %cst_10 : f32 to vector<1x128xf32>
    %19 = arith.addf %17, %18 : vector<1x128xf32>
    %20 = math.rsqrt %19 : vector<1x128xf32>
    %21 = vector.broadcast %20 : vector<1x128xf32> to vector<16x128xf32>
    %22 = arith.mulf %12, %21 : vector<16x128xf32>
    %cst_11 = arith.constant 0.000000e+00 : f32
    %23 = vector.broadcast %cst_11 : f32 to vector<16x128xf32>
    %24 = arith.maximumf %22, %23 : vector<16x128xf32>
    %25 = arith.truncf %24 : vector<16x128xf32> to vector<16x128xbf16>
    %c0_12 = arith.constant 0 : index
    %c0_13 = arith.constant 0 : index
    %c0_14 = arith.constant 0 : index
    %26 = vector.load %arg5[%c0_12, %c0_13, %c0_14] : memref<1x16x128xbf16, #tpu.memory_space<vmem>>, vector<1x16x128xbf16>
    %27 = vector.shape_cast %26 : vector<1x16x128xbf16> to vector<16x128xbf16>
    %28 = vector.shape_cast %25 : vector<16x128xbf16> to vector<1x16x128xbf16>
    tpu.vector_store %arg5[%c0_12, %c0_13, %c0_14], %28 {strides = array<i32>} : memref<1x16x128xbf16, #tpu.memory_space<vmem>>, vector<1x16x128xbf16>,
    return
  }
  func.func @transform_0(%arg0: i32, %arg1: i32) -> (i32, i32, i32) {
    %c0_i32 = arith.constant 0 : i32
    %c0_i32_0 = arith.constant 0 : i32
    return %arg0, %c0_i32, %arg1 : i32, i32, i32
  }
  func.func @transform_1(%arg0: i32, %arg1: i32) -> (i32, i32) {
    %c0_i32 = arith.constant 0 : i32
    %c0_i32_0 = arith.constant 0 : i32
    return %arg1, %c0_i32 : i32, i32
  }
  func.func @transform_2(%arg0: i32, %arg1: i32) -> (i32, i32) {
    %c0_i32 = arith.constant 0 : i32
    %c0_i32_0 = arith.constant 0 : i32
    %c0_i32_1 = arith.constant 0 : i32
    return %c0_i32, %c0_i32_0 : i32, i32
  }
  func.func @transform_3(%arg0: i32, %arg1: i32) -> (i32, i32, i32) {
    %c0_i32 = arith.constant 0 : i32
    %c0_i32_0 = arith.constant 0 : i32
    %c0_i32_1 = arith.constant 0 : i32
    return %arg0, %c0_i32, %c0_i32_0 : i32, i32, i32
  }
}

module attributes {stable_mosaic.version = 11 : i64} {
  func.func @_mm_kernel(%arg0: i32, %arg1: i32, %arg2: memref<1x8x144xbf16, #tpu.memory_space<vmem>>, %arg3: memref<144x128xbf16, #tpu.memory_space<vmem>>, %arg4: memref<1x128xf32, #tpu.memory_space<vmem>>, %arg5: memref<1x8x128xbf16, #tpu.memory_space<vmem>>) attributes {dimension_semantics = [#tpu.dimension_semantics<parallel>, #tpu.dimension_semantics<arbitrary>], iteration_bounds = array<i64: 2, 1>, scalar_prefetch = 0 : i64, scratch_operands = 0 : i64, tpu.core_type = #tpu.core_type<tc>, window_params = [{transform_indices = @transform_0, window_bounds = array<i64: 1, 8, 144>}, {transform_indices = @transform_1, window_bounds = array<i64: 144, 128>}, {pipeline_mode = #tpu.pipeline_mode<synchronous>, transform_indices = @transform_2, window_bounds = array<i64: 1, 128>}, {transform_indices = @transform_3, window_bounds = array<i64: 1, 8, 128>}]} {
    %c0 = arith.constant 0 : index
    %c0_0 = arith.constant 0 : index
    %c0_1 = arith.constant 0 : index
    %0 = vector.load %arg2[%c0, %c0_0, %c0_1] : memref<1x8x144xbf16, #tpu.memory_space<vmem>>, vector<1x8x144xbf16>
    %1 = vector.shape_cast %0 : vector<1x8x144xbf16> to vector<8x144xbf16>
    %c0_2 = arith.constant 0 : index
    %c0_3 = arith.constant 0 : index
    %2 = vector.load %arg3[%c0_2, %c0_3] : memref<144x128xbf16, #tpu.memory_space<vmem>>, vector<144x128xbf16>
    %cst = arith.constant dense<0.000000e+00> : vector<8x128xf32>
    %3 = tpu.matmul %1, %2, %cst {dimension_numbers = #tpu.dot_dimension_numbers<[1], [0], [0], [1], [0, 0, 1, 1], [], []>} : vector<8x144xbf16>, vector<144x128xbf16>, vector<8x128xf32> -> vector<8x128xf32>
    %c0_4 = arith.constant 0 : index
    %c0_5 = arith.constant 0 : index
    %4 = vector.load %arg4[%c0_4, %c0_5] : memref<1x128xf32, #tpu.memory_space<vmem>>, vector<1x128xf32>
    %5 = vector.broadcast %4 : vector<1x128xf32> to vector<8x128xf32>
    %6 = arith.addf %3, %5 : vector<8x128xf32>
    %7 = tpu.iota {dimensions = array<i32: 0>} : vector<8x128xi32>
    %c4_i32 = arith.constant 4 : i32
    %8 = vector.broadcast %c4_i32 : i32 to vector<8x128xi32>
    %9 = arith.cmpi slt, %7, %8 : vector<8x128xi32>
    %10 = arith.extui %9 : vector<8x128xi1> to vector<8x128xi32>
    %11 = arith.sitofp %10 : vector<8x128xi32> to vector<8x128xf32>
    %12 = arith.mulf %6, %11 : vector<8x128xf32>
    %cst_6 = arith.constant dense<0.000000e+00> : vector<128xf32>
    %13 = vector.multi_reduction <add>, %12, %cst_6 [0] : vector<8x128xf32> to vector<128xf32>
    %14 = vector.shape_cast %13 : vector<128xf32> to vector<1x128xf32>
    %cst_7 = arith.constant 2.500000e-01 : f32
    %15 = vector.broadcast %cst_7 : f32 to vector<1x128xf32>
    %16 = arith.mulf %14, %15 : vector<1x128xf32>
    %17 = vector.broadcast %16 : vector<1x128xf32> to vector<8x128xf32>
    %18 = arith.subf %6, %17 : vector<8x128xf32>
    %19 = arith.mulf %18, %18 : vector<8x128xf32>
    %20 = arith.mulf %19, %11 : vector<8x128xf32>
    %cst_8 = arith.constant dense<0.000000e+00> : vector<128xf32>
    %21 = vector.multi_reduction <add>, %20, %cst_8 [0] : vector<8x128xf32> to vector<128xf32>
    %22 = vector.shape_cast %21 : vector<128xf32> to vector<1x128xf32>
    %cst_9 = arith.constant 2.500000e-01 : f32
    %23 = vector.broadcast %cst_9 : f32 to vector<1x128xf32>
    %24 = arith.mulf %22, %23 : vector<1x128xf32>
    %cst_10 = arith.constant 9.99999974E-6 : f32
    %25 = vector.broadcast %cst_10 : f32 to vector<1x128xf32>
    %26 = arith.addf %24, %25 : vector<1x128xf32>
    %27 = math.rsqrt %26 : vector<1x128xf32>
    %28 = vector.broadcast %27 : vector<1x128xf32> to vector<8x128xf32>
    %29 = arith.mulf %18, %28 : vector<8x128xf32>
    %cst_11 = arith.constant 0.000000e+00 : f32
    %30 = vector.broadcast %cst_11 : f32 to vector<8x128xf32>
    %31 = arith.maximumf %29, %30 : vector<8x128xf32>
    %32 = arith.truncf %31 : vector<8x128xf32> to vector<8x128xbf16>
    %c0_12 = arith.constant 0 : index
    %c0_13 = arith.constant 0 : index
    %c0_14 = arith.constant 0 : index
    %33 = vector.load %arg5[%c0_12, %c0_13, %c0_14] : memref<1x8x128xbf16, #tpu.memory_space<vmem>>, vector<1x8x128xbf16>
    %34 = vector.shape_cast %33 : vector<1x8x128xbf16> to vector<8x128xbf16>
    %35 = vector.shape_cast %32 : vector<8x128xbf16> to vector<1x8x128xbf16>
    tpu.vector_store %arg5[%c0_12, %c0_13, %c0_14], %35 {strides = array<i32>} : memref<1x8x128xbf16, #tpu.memory_space<vmem>>, vector<1x8x128xbf16>,
    return
  }
  func.func @transform_0(%arg0: i32, %arg1: i32) -> (i32, i32, i32) {
    %c0_i32 = arith.constant 0 : i32
    %c0_i32_0 = arith.constant 0 : i32
    return %arg0, %c0_i32, %arg1 : i32, i32, i32
  }
  func.func @transform_1(%arg0: i32, %arg1: i32) -> (i32, i32) {
    %c0_i32 = arith.constant 0 : i32
    %c0_i32_0 = arith.constant 0 : i32
    return %arg1, %c0_i32 : i32, i32
  }
  func.func @transform_2(%arg0: i32, %arg1: i32) -> (i32, i32) {
    %c0_i32 = arith.constant 0 : i32
    %c0_i32_0 = arith.constant 0 : i32
    %c0_i32_1 = arith.constant 0 : i32
    return %c0_i32, %c0_i32_0 : i32, i32
  }
  func.func @transform_3(%arg0: i32, %arg1: i32) -> (i32, i32, i32) {
    %c0_i32 = arith.constant 0 : i32
    %c0_i32_0 = arith.constant 0 : i32
    %c0_i32_1 = arith.constant 0 : i32
    return %arg0, %c0_i32, %c0_i32_0 : i32, i32, i32
  }
}

module attributes {stable_mosaic.version = 11 : i64} {
  func.func @_mm_kernel(%arg0: i32, %arg1: i32, %arg2: memref<1x8x288xbf16, #tpu.memory_space<vmem>>, %arg3: memref<288x128xbf16, #tpu.memory_space<vmem>>, %arg4: memref<1x128xf32, #tpu.memory_space<vmem>>, %arg5: memref<1x8x128xbf16, #tpu.memory_space<vmem>>, %arg6: memref<1x8x128xbf16, #tpu.memory_space<vmem>>) attributes {dimension_semantics = [#tpu.dimension_semantics<parallel>, #tpu.dimension_semantics<arbitrary>], iteration_bounds = array<i64: 2, 1>, scalar_prefetch = 0 : i64, scratch_operands = 0 : i64, tpu.core_type = #tpu.core_type<tc>, window_params = [{transform_indices = @transform_0, window_bounds = array<i64: 1, 8, 288>}, {transform_indices = @transform_1, window_bounds = array<i64: 288, 128>}, {pipeline_mode = #tpu.pipeline_mode<synchronous>, transform_indices = @transform_2, window_bounds = array<i64: 1, 128>}, {transform_indices = @transform_3, window_bounds = array<i64: 1, 8, 128>}, {transform_indices = @transform_4, window_bounds = array<i64: 1, 8, 128>}]} {
    %c0 = arith.constant 0 : index
    %c0_0 = arith.constant 0 : index
    %c0_1 = arith.constant 0 : index
    %0 = vector.load %arg2[%c0, %c0_0, %c0_1] : memref<1x8x288xbf16, #tpu.memory_space<vmem>>, vector<1x8x288xbf16>
    %1 = vector.shape_cast %0 : vector<1x8x288xbf16> to vector<8x288xbf16>
    %c0_2 = arith.constant 0 : index
    %c0_3 = arith.constant 0 : index
    %2 = vector.load %arg3[%c0_2, %c0_3] : memref<288x128xbf16, #tpu.memory_space<vmem>>, vector<288x128xbf16>
    %cst = arith.constant dense<0.000000e+00> : vector<8x128xf32>
    %3 = tpu.matmul %1, %2, %cst {dimension_numbers = #tpu.dot_dimension_numbers<[1], [0], [0], [1], [0, 0, 1, 1], [], []>} : vector<8x288xbf16>, vector<288x128xbf16>, vector<8x128xf32> -> vector<8x128xf32>
    %c0_4 = arith.constant 0 : index
    %c0_5 = arith.constant 0 : index
    %4 = vector.load %arg4[%c0_4, %c0_5] : memref<1x128xf32, #tpu.memory_space<vmem>>, vector<1x128xf32>
    %5 = vector.broadcast %4 : vector<1x128xf32> to vector<8x128xf32>
    %6 = arith.addf %3, %5 : vector<8x128xf32>
    %c0_6 = arith.constant 0 : index
    %c0_7 = arith.constant 0 : index
    %c0_8 = arith.constant 0 : index
    %7 = vector.load %arg5[%c0_6, %c0_7, %c0_8] : memref<1x8x128xbf16, #tpu.memory_space<vmem>>, vector<1x8x128xbf16>
    %8 = vector.shape_cast %7 : vector<1x8x128xbf16> to vector<8x128xbf16>
    %9 = arith.extf %8 : vector<8x128xbf16> to vector<8x128xf32>
    %10 = tpu.iota {dimensions = array<i32: 0>} : vector<8x128xi32>
    %c4_i32 = arith.constant 4 : i32
    %11 = vector.broadcast %c4_i32 : i32 to vector<8x128xi32>
    %12 = arith.cmpi slt, %10, %11 : vector<8x128xi32>
    %13 = arith.extui %12 : vector<8x128xi1> to vector<8x128xi32>
    %14 = arith.sitofp %13 : vector<8x128xi32> to vector<8x128xf32>
    %15 = arith.mulf %6, %14 : vector<8x128xf32>
    %cst_9 = arith.constant dense<0.000000e+00> : vector<128xf32>
    %16 = vector.multi_reduction <add>, %15, %cst_9 [0] : vector<8x128xf32> to vector<128xf32>
    %17 = vector.shape_cast %16 : vector<128xf32> to vector<1x128xf32>
    %cst_10 = arith.constant 2.500000e-01 : f32
    %18 = vector.broadcast %cst_10 : f32 to vector<1x128xf32>
    %19 = arith.mulf %17, %18 : vector<1x128xf32>
    %20 = vector.broadcast %19 : vector<1x128xf32> to vector<8x128xf32>
    %21 = arith.subf %6, %20 : vector<8x128xf32>
    %22 = arith.mulf %21, %21 : vector<8x128xf32>
    %23 = arith.mulf %22, %14 : vector<8x128xf32>
    %cst_11 = arith.constant dense<0.000000e+00> : vector<128xf32>
    %24 = vector.multi_reduction <add>, %23, %cst_11 [0] : vector<8x128xf32> to vector<128xf32>
    %25 = vector.shape_cast %24 : vector<128xf32> to vector<1x128xf32>
    %cst_12 = arith.constant 2.500000e-01 : f32
    %26 = vector.broadcast %cst_12 : f32 to vector<1x128xf32>
    %27 = arith.mulf %25, %26 : vector<1x128xf32>
    %cst_13 = arith.constant 9.99999974E-6 : f32
    %28 = vector.broadcast %cst_13 : f32 to vector<1x128xf32>
    %29 = arith.addf %27, %28 : vector<1x128xf32>
    %30 = math.rsqrt %29 : vector<1x128xf32>
    %31 = vector.broadcast %30 : vector<1x128xf32> to vector<8x128xf32>
    %32 = arith.mulf %21, %31 : vector<8x128xf32>
    %33 = arith.addf %32, %9 : vector<8x128xf32>
    %34 = arith.truncf %33 : vector<8x128xf32> to vector<8x128xbf16>
    %c0_14 = arith.constant 0 : index
    %c0_15 = arith.constant 0 : index
    %c0_16 = arith.constant 0 : index
    %35 = vector.load %arg6[%c0_14, %c0_15, %c0_16] : memref<1x8x128xbf16, #tpu.memory_space<vmem>>, vector<1x8x128xbf16>
    %36 = vector.shape_cast %35 : vector<1x8x128xbf16> to vector<8x128xbf16>
    %37 = vector.shape_cast %34 : vector<8x128xbf16> to vector<1x8x128xbf16>
    tpu.vector_store %arg6[%c0_14, %c0_15, %c0_16], %37 {strides = array<i32>} : memref<1x8x128xbf16, #tpu.memory_space<vmem>>, vector<1x8x128xbf16>,
    return
  }
  func.func @transform_0(%arg0: i32, %arg1: i32) -> (i32, i32, i32) {
    %c0_i32 = arith.constant 0 : i32
    %c0_i32_0 = arith.constant 0 : i32
    return %arg0, %c0_i32, %arg1 : i32, i32, i32
  }
  func.func @transform_1(%arg0: i32, %arg1: i32) -> (i32, i32) {
    %c0_i32 = arith.constant 0 : i32
    %c0_i32_0 = arith.constant 0 : i32
    return %arg1, %c0_i32 : i32, i32
  }
  func.func @transform_2(%arg0: i32, %arg1: i32) -> (i32, i32) {
    %c0_i32 = arith.constant 0 : i32
    %c0_i32_0 = arith.constant 0 : i32
    %c0_i32_1 = arith.constant 0 : i32
    return %c0_i32, %c0_i32_0 : i32, i32
  }
  func.func @transform_3(%arg0: i32, %arg1: i32) -> (i32, i32, i32) {
    %c0_i32 = arith.constant 0 : i32
    %c0_i32_0 = arith.constant 0 : i32
    %c0_i32_1 = arith.constant 0 : i32
    return %arg0, %c0_i32, %c0_i32_0 : i32, i32, i32
  }
  func.func @transform_4(%arg0: i32, %arg1: i32) -> (i32, i32, i32) {
    %c0_i32 = arith.constant 0 : i32
    %c0_i32_0 = arith.constant 0 : i32
    %c0_i32_1 = arith.constant 0 : i32
    return %arg0, %c0_i32, %c0_i32_0 : i32, i32, i32
  }
}

module attributes {stable_mosaic.version = 11 : i64} {
  func.func @_mm_kernel(%arg0: i32, %arg1: i32, %arg2: memref<1x8x288xbf16, #tpu.memory_space<vmem>>, %arg3: memref<288x128xbf16, #tpu.memory_space<vmem>>, %arg4: memref<1x128xf32, #tpu.memory_space<vmem>>, %arg5: memref<1x8x128xbf16, #tpu.memory_space<vmem>>) attributes {dimension_semantics = [#tpu.dimension_semantics<parallel>, #tpu.dimension_semantics<arbitrary>], iteration_bounds = array<i64: 2, 1>, scalar_prefetch = 0 : i64, scratch_operands = 0 : i64, tpu.core_type = #tpu.core_type<tc>, window_params = [{transform_indices = @transform_0, window_bounds = array<i64: 1, 8, 288>}, {transform_indices = @transform_1, window_bounds = array<i64: 288, 128>}, {pipeline_mode = #tpu.pipeline_mode<synchronous>, transform_indices = @transform_2, window_bounds = array<i64: 1, 128>}, {transform_indices = @transform_3, window_bounds = array<i64: 1, 8, 128>}]} {
    %c0 = arith.constant 0 : index
    %c0_0 = arith.constant 0 : index
    %c0_1 = arith.constant 0 : index
    %0 = vector.load %arg2[%c0, %c0_0, %c0_1] : memref<1x8x288xbf16, #tpu.memory_space<vmem>>, vector<1x8x288xbf16>
    %1 = vector.shape_cast %0 : vector<1x8x288xbf16> to vector<8x288xbf16>
    %c0_2 = arith.constant 0 : index
    %c0_3 = arith.constant 0 : index
    %2 = vector.load %arg3[%c0_2, %c0_3] : memref<288x128xbf16, #tpu.memory_space<vmem>>, vector<288x128xbf16>
    %cst = arith.constant dense<0.000000e+00> : vector<8x128xf32>
    %3 = tpu.matmul %1, %2, %cst {dimension_numbers = #tpu.dot_dimension_numbers<[1], [0], [0], [1], [0, 0, 1, 1], [], []>} : vector<8x288xbf16>, vector<288x128xbf16>, vector<8x128xf32> -> vector<8x128xf32>
    %c0_4 = arith.constant 0 : index
    %c0_5 = arith.constant 0 : index
    %4 = vector.load %arg4[%c0_4, %c0_5] : memref<1x128xf32, #tpu.memory_space<vmem>>, vector<1x128xf32>
    %5 = vector.broadcast %4 : vector<1x128xf32> to vector<8x128xf32>
    %6 = arith.addf %3, %5 : vector<8x128xf32>
    %7 = tpu.iota {dimensions = array<i32: 0>} : vector<8x128xi32>
    %c4_i32 = arith.constant 4 : i32
    %8 = vector.broadcast %c4_i32 : i32 to vector<8x128xi32>
    %9 = arith.cmpi slt, %7, %8 : vector<8x128xi32>
    %10 = arith.extui %9 : vector<8x128xi1> to vector<8x128xi32>
    %11 = arith.sitofp %10 : vector<8x128xi32> to vector<8x128xf32>
    %12 = arith.mulf %6, %11 : vector<8x128xf32>
    %cst_6 = arith.constant dense<0.000000e+00> : vector<128xf32>
    %13 = vector.multi_reduction <add>, %12, %cst_6 [0] : vector<8x128xf32> to vector<128xf32>
    %14 = vector.shape_cast %13 : vector<128xf32> to vector<1x128xf32>
    %cst_7 = arith.constant 2.500000e-01 : f32
    %15 = vector.broadcast %cst_7 : f32 to vector<1x128xf32>
    %16 = arith.mulf %14, %15 : vector<1x128xf32>
    %17 = vector.broadcast %16 : vector<1x128xf32> to vector<8x128xf32>
    %18 = arith.subf %6, %17 : vector<8x128xf32>
    %19 = arith.mulf %18, %18 : vector<8x128xf32>
    %20 = arith.mulf %19, %11 : vector<8x128xf32>
    %cst_8 = arith.constant dense<0.000000e+00> : vector<128xf32>
    %21 = vector.multi_reduction <add>, %20, %cst_8 [0] : vector<8x128xf32> to vector<128xf32>
    %22 = vector.shape_cast %21 : vector<128xf32> to vector<1x128xf32>
    %cst_9 = arith.constant 2.500000e-01 : f32
    %23 = vector.broadcast %cst_9 : f32 to vector<1x128xf32>
    %24 = arith.mulf %22, %23 : vector<1x128xf32>
    %cst_10 = arith.constant 9.99999974E-6 : f32
    %25 = vector.broadcast %cst_10 : f32 to vector<1x128xf32>
    %26 = arith.addf %24, %25 : vector<1x128xf32>
    %27 = math.rsqrt %26 : vector<1x128xf32>
    %28 = vector.broadcast %27 : vector<1x128xf32> to vector<8x128xf32>
    %29 = arith.mulf %18, %28 : vector<8x128xf32>
    %cst_11 = arith.constant 0.000000e+00 : f32
    %30 = vector.broadcast %cst_11 : f32 to vector<8x128xf32>
    %31 = arith.maximumf %29, %30 : vector<8x128xf32>
    %32 = arith.truncf %31 : vector<8x128xf32> to vector<8x128xbf16>
    %c0_12 = arith.constant 0 : index
    %c0_13 = arith.constant 0 : index
    %c0_14 = arith.constant 0 : index
    %33 = vector.load %arg5[%c0_12, %c0_13, %c0_14] : memref<1x8x128xbf16, #tpu.memory_space<vmem>>, vector<1x8x128xbf16>
    %34 = vector.shape_cast %33 : vector<1x8x128xbf16> to vector<8x128xbf16>
    %35 = vector.shape_cast %32 : vector<8x128xbf16> to vector<1x8x128xbf16>
    tpu.vector_store %arg5[%c0_12, %c0_13, %c0_14], %35 {strides = array<i32>} : memref<1x8x128xbf16, #tpu.memory_space<vmem>>, vector<1x8x128xbf16>,
    return
  }
  func.func @transform_0(%arg0: i32, %arg1: i32) -> (i32, i32, i32) {
    %c0_i32 = arith.constant 0 : i32
    %c0_i32_0 = arith.constant 0 : i32
    return %arg0, %c0_i32, %arg1 : i32, i32, i32
  }
  func.func @transform_1(%arg0: i32, %arg1: i32) -> (i32, i32) {
    %c0_i32 = arith.constant 0 : i32
    %c0_i32_0 = arith.constant 0 : i32
    return %arg1, %c0_i32 : i32, i32
  }
  func.func @transform_2(%arg0: i32, %arg1: i32) -> (i32, i32) {
    %c0_i32 = arith.constant 0 : i32
    %c0_i32_0 = arith.constant 0 : i32
    %c0_i32_1 = arith.constant 0 : i32
    return %c0_i32, %c0_i32_0 : i32, i32
  }
  func.func @transform_3(%arg0: i32, %arg1: i32) -> (i32, i32, i32) {
    %c0_i32 = arith.constant 0 : i32
    %c0_i32_0 = arith.constant 0 : i32
    %c0_i32_1 = arith.constant 0 : i32
    return %arg0, %c0_i32, %c0_i32_0 : i32, i32, i32
  }
}

module attributes {stable_mosaic.version = 11 : i64} {
  func.func @_mm_kernel(%arg0: i32, %arg1: i32, %arg2: memref<1x8x128xbf16, #tpu.memory_space<vmem>>, %arg3: memref<128x512xbf16, #tpu.memory_space<vmem>>, %arg4: memref<1x512xf32, #tpu.memory_space<vmem>>, %arg5: memref<1x8x512xbf16, #tpu.memory_space<vmem>>) attributes {dimension_semantics = [#tpu.dimension_semantics<parallel>, #tpu.dimension_semantics<arbitrary>], iteration_bounds = array<i64: 2, 1>, scalar_prefetch = 0 : i64, scratch_operands = 0 : i64, tpu.core_type = #tpu.core_type<tc>, window_params = [{transform_indices = @transform_0, window_bounds = array<i64: 1, 8, 128>}, {transform_indices = @transform_1, window_bounds = array<i64: 128, 512>}, {pipeline_mode = #tpu.pipeline_mode<synchronous>, transform_indices = @transform_2, window_bounds = array<i64: 1, 512>}, {transform_indices = @transform_3, window_bounds = array<i64: 1, 8, 512>}]} {
    %c0 = arith.constant 0 : index
    %c0_0 = arith.constant 0 : index
    %c0_1 = arith.constant 0 : index
    %0 = vector.load %arg2[%c0, %c0_0, %c0_1] : memref<1x8x128xbf16, #tpu.memory_space<vmem>>, vector<1x8x128xbf16>
    %1 = vector.shape_cast %0 : vector<1x8x128xbf16> to vector<8x128xbf16>
    %c0_2 = arith.constant 0 : index
    %c0_3 = arith.constant 0 : index
    %2 = vector.load %arg3[%c0_2, %c0_3] : memref<128x512xbf16, #tpu.memory_space<vmem>>, vector<128x512xbf16>
    %cst = arith.constant dense<0.000000e+00> : vector<8x512xf32>
    %3 = tpu.matmul %1, %2, %cst {dimension_numbers = #tpu.dot_dimension_numbers<[1], [0], [0], [1], [0, 0, 1, 1], [], []>} : vector<8x128xbf16>, vector<128x512xbf16>, vector<8x512xf32> -> vector<8x512xf32>
    %c0_4 = arith.constant 0 : index
    %c0_5 = arith.constant 0 : index
    %4 = vector.load %arg4[%c0_4, %c0_5] : memref<1x512xf32, #tpu.memory_space<vmem>>, vector<1x512xf32>
    %5 = vector.broadcast %4 : vector<1x512xf32> to vector<8x512xf32>
    %6 = arith.addf %3, %5 : vector<8x512xf32>
    %7 = tpu.iota {dimensions = array<i32: 0>} : vector<8x512xi32>
    %c4_i32 = arith.constant 4 : i32
    %8 = vector.broadcast %c4_i32 : i32 to vector<8x512xi32>
    %9 = arith.cmpi slt, %7, %8 : vector<8x512xi32>
    %10 = arith.extui %9 : vector<8x512xi1> to vector<8x512xi32>
    %11 = arith.sitofp %10 : vector<8x512xi32> to vector<8x512xf32>
    %12 = arith.mulf %6, %11 : vector<8x512xf32>
    %cst_6 = arith.constant dense<0.000000e+00> : vector<512xf32>
    %13 = vector.multi_reduction <add>, %12, %cst_6 [0] : vector<8x512xf32> to vector<512xf32>
    %14 = vector.shape_cast %13 : vector<512xf32> to vector<1x512xf32>
    %15 = vector.extract_strided_slice %14 {offsets = [0, 0], sizes = [1, 128], strides = [1, 1]} : vector<1x512xf32> to vector<1x128xf32>
    %16 = vector.extract_strided_slice %14 {offsets = [0, 128], sizes = [1, 128], strides = [1, 1]} : vector<1x512xf32> to vector<1x128xf32>
    %17 = arith.addf %15, %16 : vector<1x128xf32>
    %18 = vector.extract_strided_slice %14 {offsets = [0, 256], sizes = [1, 128], strides = [1, 1]} : vector<1x512xf32> to vector<1x128xf32>
    %19 = arith.addf %17, %18 : vector<1x128xf32>
    %20 = vector.extract_strided_slice %14 {offsets = [0, 384], sizes = [1, 128], strides = [1, 1]} : vector<1x512xf32> to vector<1x128xf32>
    %21 = arith.addf %19, %20 : vector<1x128xf32>
    %22 = tpu.concatenate %21, %21, %21, %21 in 1 : vector<1x128xf32>, vector<1x128xf32>, vector<1x128xf32>, vector<1x128xf32> -> vector<1x512xf32>
    %cst_7 = arith.constant 6.250000e-02 : f32
    %23 = vector.broadcast %cst_7 : f32 to vector<1x512xf32>
    %24 = arith.mulf %22, %23 : vector<1x512xf32>
    %25 = vector.broadcast %24 : vector<1x512xf32> to vector<8x512xf32>
    %26 = arith.subf %6, %25 : vector<8x512xf32>
    %27 = arith.mulf %26, %26 : vector<8x512xf32>
    %28 = arith.mulf %27, %11 : vector<8x512xf32>
    %cst_8 = arith.constant dense<0.000000e+00> : vector<512xf32>
    %29 = vector.multi_reduction <add>, %28, %cst_8 [0] : vector<8x512xf32> to vector<512xf32>
    %30 = vector.shape_cast %29 : vector<512xf32> to vector<1x512xf32>
    %31 = vector.extract_strided_slice %30 {offsets = [0, 0], sizes = [1, 128], strides = [1, 1]} : vector<1x512xf32> to vector<1x128xf32>
    %32 = vector.extract_strided_slice %30 {offsets = [0, 128], sizes = [1, 128], strides = [1, 1]} : vector<1x512xf32> to vector<1x128xf32>
    %33 = arith.addf %31, %32 : vector<1x128xf32>
    %34 = vector.extract_strided_slice %30 {offsets = [0, 256], sizes = [1, 128], strides = [1, 1]} : vector<1x512xf32> to vector<1x128xf32>
    %35 = arith.addf %33, %34 : vector<1x128xf32>
    %36 = vector.extract_strided_slice %30 {offsets = [0, 384], sizes = [1, 128], strides = [1, 1]} : vector<1x512xf32> to vector<1x128xf32>
    %37 = arith.addf %35, %36 : vector<1x128xf32>
    %38 = tpu.concatenate %37, %37, %37, %37 in 1 : vector<1x128xf32>, vector<1x128xf32>, vector<1x128xf32>, vector<1x128xf32> -> vector<1x512xf32>
    %cst_9 = arith.constant 6.250000e-02 : f32
    %39 = vector.broadcast %cst_9 : f32 to vector<1x512xf32>
    %40 = arith.mulf %38, %39 : vector<1x512xf32>
    %cst_10 = arith.constant 9.99999974E-6 : f32
    %41 = vector.broadcast %cst_10 : f32 to vector<1x512xf32>
    %42 = arith.addf %40, %41 : vector<1x512xf32>
    %43 = math.rsqrt %42 : vector<1x512xf32>
    %44 = vector.broadcast %43 : vector<1x512xf32> to vector<8x512xf32>
    %45 = arith.mulf %26, %44 : vector<8x512xf32>
    %cst_11 = arith.constant 0.000000e+00 : f32
    %46 = vector.broadcast %cst_11 : f32 to vector<8x512xf32>
    %47 = arith.maximumf %45, %46 : vector<8x512xf32>
    %48 = arith.truncf %47 : vector<8x512xf32> to vector<8x512xbf16>
    %c0_12 = arith.constant 0 : index
    %c0_13 = arith.constant 0 : index
    %c0_14 = arith.constant 0 : index
    %49 = vector.load %arg5[%c0_12, %c0_13, %c0_14] : memref<1x8x512xbf16, #tpu.memory_space<vmem>>, vector<1x8x512xbf16>
    %50 = vector.shape_cast %49 : vector<1x8x512xbf16> to vector<8x512xbf16>
    %51 = vector.shape_cast %48 : vector<8x512xbf16> to vector<1x8x512xbf16>
    tpu.vector_store %arg5[%c0_12, %c0_13, %c0_14], %51 {strides = array<i32>} : memref<1x8x512xbf16, #tpu.memory_space<vmem>>, vector<1x8x512xbf16>,
    return
  }
  func.func @transform_0(%arg0: i32, %arg1: i32) -> (i32, i32, i32) {
    %c0_i32 = arith.constant 0 : i32
    %c0_i32_0 = arith.constant 0 : i32
    return %arg0, %c0_i32, %arg1 : i32, i32, i32
  }
  func.func @transform_1(%arg0: i32, %arg1: i32) -> (i32, i32) {
    %c0_i32 = arith.constant 0 : i32
    %c0_i32_0 = arith.constant 0 : i32
    return %arg1, %c0_i32 : i32, i32
  }
  func.func @transform_2(%arg0: i32, %arg1: i32) -> (i32, i32) {
    %c0_i32 = arith.constant 0 : i32
    %c0_i32_0 = arith.constant 0 : i32
    %c0_i32_1 = arith.constant 0 : i32
    return %c0_i32, %c0_i32_0 : i32, i32
  }
  func.func @transform_3(%arg0: i32, %arg1: i32) -> (i32, i32, i32) {
    %c0_i32 = arith.constant 0 : i32
    %c0_i32_0 = arith.constant 0 : i32
    %c0_i32_1 = arith.constant 0 : i32
    return %arg0, %c0_i32, %c0_i32_0 : i32, i32, i32
  }
}

module attributes {stable_mosaic.version = 11 : i64} {
  func.func @_mm_kernel(%arg0: i32, %arg1: i32, %arg2: memref<1x16x64xbf16, #tpu.memory_space<vmem>>, %arg3: memref<64x512xbf16, #tpu.memory_space<vmem>>, %arg4: memref<1x512xf32, #tpu.memory_space<vmem>>, %arg5: memref<1x16x512xbf16, #tpu.memory_space<vmem>>) attributes {dimension_semantics = [#tpu.dimension_semantics<parallel>, #tpu.dimension_semantics<arbitrary>], iteration_bounds = array<i64: 2, 1>, scalar_prefetch = 0 : i64, scratch_operands = 0 : i64, tpu.core_type = #tpu.core_type<tc>, window_params = [{transform_indices = @transform_0, window_bounds = array<i64: 1, 16, 64>}, {transform_indices = @transform_1, window_bounds = array<i64: 64, 512>}, {pipeline_mode = #tpu.pipeline_mode<synchronous>, transform_indices = @transform_2, window_bounds = array<i64: 1, 512>}, {transform_indices = @transform_3, window_bounds = array<i64: 1, 16, 512>}]} {
    %c0 = arith.constant 0 : index
    %c0_0 = arith.constant 0 : index
    %c0_1 = arith.constant 0 : index
    %0 = vector.load %arg2[%c0, %c0_0, %c0_1] : memref<1x16x64xbf16, #tpu.memory_space<vmem>>, vector<1x16x64xbf16>
    %1 = vector.shape_cast %0 : vector<1x16x64xbf16> to vector<16x64xbf16>
    %c0_2 = arith.constant 0 : index
    %c0_3 = arith.constant 0 : index
    %2 = vector.load %arg3[%c0_2, %c0_3] : memref<64x512xbf16, #tpu.memory_space<vmem>>, vector<64x512xbf16>
    %cst = arith.constant dense<0.000000e+00> : vector<16x512xf32>
    %3 = tpu.matmul %1, %2, %cst {dimension_numbers = #tpu.dot_dimension_numbers<[1], [0], [0], [1], [0, 0, 1, 1], [], []>} : vector<16x64xbf16>, vector<64x512xbf16>, vector<16x512xf32> -> vector<16x512xf32>
    %c0_4 = arith.constant 0 : index
    %c0_5 = arith.constant 0 : index
    %4 = vector.load %arg4[%c0_4, %c0_5] : memref<1x512xf32, #tpu.memory_space<vmem>>, vector<1x512xf32>
    %5 = vector.broadcast %4 : vector<1x512xf32> to vector<16x512xf32>
    %6 = arith.addf %3, %5 : vector<16x512xf32>
    %cst_6 = arith.constant dense<0.000000e+00> : vector<512xf32>
    %7 = vector.multi_reduction <add>, %6, %cst_6 [0] : vector<16x512xf32> to vector<512xf32>
    %8 = vector.shape_cast %7 : vector<512xf32> to vector<1x512xf32>
    %9 = vector.extract_strided_slice %8 {offsets = [0, 0], sizes = [1, 128], strides = [1, 1]} : vector<1x512xf32> to vector<1x128xf32>
    %10 = vector.extract_strided_slice %8 {offsets = [0, 128], sizes = [1, 128], strides = [1, 1]} : vector<1x512xf32> to vector<1x128xf32>
    %11 = arith.addf %9, %10 : vector<1x128xf32>
    %12 = vector.extract_strided_slice %8 {offsets = [0, 256], sizes = [1, 128], strides = [1, 1]} : vector<1x512xf32> to vector<1x128xf32>
    %13 = arith.addf %11, %12 : vector<1x128xf32>
    %14 = vector.extract_strided_slice %8 {offsets = [0, 384], sizes = [1, 128], strides = [1, 1]} : vector<1x512xf32> to vector<1x128xf32>
    %15 = arith.addf %13, %14 : vector<1x128xf32>
    %16 = tpu.concatenate %15, %15, %15, %15 in 1 : vector<1x128xf32>, vector<1x128xf32>, vector<1x128xf32>, vector<1x128xf32> -> vector<1x512xf32>
    %cst_7 = arith.constant 1.562500e-02 : f32
    %17 = vector.broadcast %cst_7 : f32 to vector<1x512xf32>
    %18 = arith.mulf %16, %17 : vector<1x512xf32>
    %19 = vector.broadcast %18 : vector<1x512xf32> to vector<16x512xf32>
    %20 = arith.subf %6, %19 : vector<16x512xf32>
    %21 = arith.mulf %20, %20 : vector<16x512xf32>
    %cst_8 = arith.constant dense<0.000000e+00> : vector<512xf32>
    %22 = vector.multi_reduction <add>, %21, %cst_8 [0] : vector<16x512xf32> to vector<512xf32>
    %23 = vector.shape_cast %22 : vector<512xf32> to vector<1x512xf32>
    %24 = vector.extract_strided_slice %23 {offsets = [0, 0], sizes = [1, 128], strides = [1, 1]} : vector<1x512xf32> to vector<1x128xf32>
    %25 = vector.extract_strided_slice %23 {offsets = [0, 128], sizes = [1, 128], strides = [1, 1]} : vector<1x512xf32> to vector<1x128xf32>
    %26 = arith.addf %24, %25 : vector<1x128xf32>
    %27 = vector.extract_strided_slice %23 {offsets = [0, 256], sizes = [1, 128], strides = [1, 1]} : vector<1x512xf32> to vector<1x128xf32>
    %28 = arith.addf %26, %27 : vector<1x128xf32>
    %29 = vector.extract_strided_slice %23 {offsets = [0, 384], sizes = [1, 128], strides = [1, 1]} : vector<1x512xf32> to vector<1x128xf32>
    %30 = arith.addf %28, %29 : vector<1x128xf32>
    %31 = tpu.concatenate %30, %30, %30, %30 in 1 : vector<1x128xf32>, vector<1x128xf32>, vector<1x128xf32>, vector<1x128xf32> -> vector<1x512xf32>
    %cst_9 = arith.constant 1.562500e-02 : f32
    %32 = vector.broadcast %cst_9 : f32 to vector<1x512xf32>
    %33 = arith.mulf %31, %32 : vector<1x512xf32>
    %cst_10 = arith.constant 9.99999974E-6 : f32
    %34 = vector.broadcast %cst_10 : f32 to vector<1x512xf32>
    %35 = arith.addf %33, %34 : vector<1x512xf32>
    %36 = math.rsqrt %35 : vector<1x512xf32>
    %37 = vector.broadcast %36 : vector<1x512xf32> to vector<16x512xf32>
    %38 = arith.mulf %20, %37 : vector<16x512xf32>
    %cst_11 = arith.constant 0.000000e+00 : f32
    %39 = vector.broadcast %cst_11 : f32 to vector<16x512xf32>
    %40 = arith.maximumf %38, %39 : vector<16x512xf32>
    %41 = arith.truncf %40 : vector<16x512xf32> to vector<16x512xbf16>
    %c0_12 = arith.constant 0 : index
    %c0_13 = arith.constant 0 : index
    %c0_14 = arith.constant 0 : index
    %42 = vector.load %arg5[%c0_12, %c0_13, %c0_14] : memref<1x16x512xbf16, #tpu.memory_space<vmem>>, vector<1x16x512xbf16>
    %43 = vector.shape_cast %42 : vector<1x16x512xbf16> to vector<16x512xbf16>
    %44 = vector.shape_cast %41 : vector<16x512xbf16> to vector<1x16x512xbf16>
    tpu.vector_store %arg5[%c0_12, %c0_13, %c0_14], %44 {strides = array<i32>} : memref<1x16x512xbf16, #tpu.memory_space<vmem>>, vector<1x16x512xbf16>,
    return
  }
  func.func @transform_0(%arg0: i32, %arg1: i32) -> (i32, i32, i32) {
    %c0_i32 = arith.constant 0 : i32
    %c0_i32_0 = arith.constant 0 : i32
    return %arg0, %c0_i32, %arg1 : i32, i32, i32
  }
  func.func @transform_1(%arg0: i32, %arg1: i32) -> (i32, i32) {
    %c0_i32 = arith.constant 0 : i32
    %c0_i32_0 = arith.constant 0 : i32
    return %arg1, %c0_i32 : i32, i32
  }
  func.func @transform_2(%arg0: i32, %arg1: i32) -> (i32, i32) {
    %c0_i32 = arith.constant 0 : i32
    %c0_i32_0 = arith.constant 0 : i32
    %c0_i32_1 = arith.constant 0 : i32
    return %c0_i32, %c0_i32_0 : i32, i32
  }
  func.func @transform_3(%arg0: i32, %arg1: i32) -> (i32, i32, i32) {
    %c0_i32 = arith.constant 0 : i32
    %c0_i32_0 = arith.constant 0 : i32
    %c0_i32_1 = arith.constant 0 : i32
    return %arg0, %c0_i32, %c0_i32_0 : i32, i32, i32
  }
}

module attributes {stable_mosaic.version = 11 : i64} {
  func.func @_mm_kernel(%arg0: i32, %arg1: i32, %arg2: memref<1x64x392xbf16, #tpu.memory_space<vmem>>, %arg3: memref<392x128xbf16, #tpu.memory_space<vmem>>, %arg4: memref<1x128xf32, #tpu.memory_space<vmem>>, %arg5: memref<1x64x128xf32, #tpu.memory_space<vmem>>) attributes {dimension_semantics = [#tpu.dimension_semantics<parallel>, #tpu.dimension_semantics<arbitrary>], iteration_bounds = array<i64: 2, 1>, scalar_prefetch = 0 : i64, scratch_operands = 0 : i64, tpu.core_type = #tpu.core_type<tc>, window_params = [{transform_indices = @transform_0, window_bounds = array<i64: 1, 64, 392>}, {transform_indices = @transform_1, window_bounds = array<i64: 392, 128>}, {pipeline_mode = #tpu.pipeline_mode<synchronous>, transform_indices = @transform_2, window_bounds = array<i64: 1, 128>}, {transform_indices = @transform_3, window_bounds = array<i64: 1, 64, 128>}]} {
    %c0 = arith.constant 0 : index
    %c0_0 = arith.constant 0 : index
    %c0_1 = arith.constant 0 : index
    %0 = vector.load %arg2[%c0, %c0_0, %c0_1] : memref<1x64x392xbf16, #tpu.memory_space<vmem>>, vector<1x64x392xbf16>
    %1 = vector.shape_cast %0 : vector<1x64x392xbf16> to vector<64x392xbf16>
    %c0_2 = arith.constant 0 : index
    %c0_3 = arith.constant 0 : index
    %2 = vector.load %arg3[%c0_2, %c0_3] : memref<392x128xbf16, #tpu.memory_space<vmem>>, vector<392x128xbf16>
    %cst = arith.constant dense<0.000000e+00> : vector<64x128xf32>
    %3 = tpu.matmul %1, %2, %cst {dimension_numbers = #tpu.dot_dimension_numbers<[1], [0], [0], [1], [0, 0, 1, 1], [], []>} : vector<64x392xbf16>, vector<392x128xbf16>, vector<64x128xf32> -> vector<64x128xf32>
    %c0_4 = arith.constant 0 : index
    %c0_5 = arith.constant 0 : index
    %4 = vector.load %arg4[%c0_4, %c0_5] : memref<1x128xf32, #tpu.memory_space<vmem>>, vector<1x128xf32>
    %5 = vector.broadcast %4 : vector<1x128xf32> to vector<64x128xf32>
    %6 = arith.addf %3, %5 : vector<64x128xf32>
    %7 = math.tanh %6 : vector<64x128xf32>
    %c0_6 = arith.constant 0 : index
    %c0_7 = arith.constant 0 : index
    %c0_8 = arith.constant 0 : index
    %8 = vector.load %arg5[%c0_6, %c0_7, %c0_8] : memref<1x64x128xf32, #tpu.memory_space<vmem>>, vector<1x64x128xf32>
    %9 = vector.shape_cast %8 : vector<1x64x128xf32> to vector<64x128xf32>
    %10 = vector.shape_cast %7 : vector<64x128xf32> to vector<1x64x128xf32>
    tpu.vector_store %arg5[%c0_6, %c0_7, %c0_8], %10 {strides = array<i32>} : memref<1x64x128xf32, #tpu.memory_space<vmem>>, vector<1x64x128xf32>,
    return
  }
  func.func @transform_0(%arg0: i32, %arg1: i32) -> (i32, i32, i32) {
    %c0_i32 = arith.constant 0 : i32
    %c0_i32_0 = arith.constant 0 : i32
    return %arg0, %c0_i32, %arg1 : i32, i32, i32
  }
  func.func @transform_1(%arg0: i32, %arg1: i32) -> (i32, i32) {
    %c0_i32 = arith.constant 0 : i32
    %c0_i32_0 = arith.constant 0 : i32
    return %arg1, %c0_i32 : i32, i32
  }
  func.func @transform_2(%arg0: i32, %arg1: i32) -> (i32, i32) {
    %c0_i32 = arith.constant 0 : i32
    %c0_i32_0 = arith.constant 0 : i32
    %c0_i32_1 = arith.constant 0 : i32
    return %c0_i32, %c0_i32_0 : i32, i32
  }
  func.func @transform_3(%arg0: i32, %arg1: i32) -> (i32, i32, i32) {
    %c0_i32 = arith.constant 0 : i32
    %c0_i32_0 = arith.constant 0 : i32
    %c0_i32_1 = arith.constant 0 : i32
    return %arg0, %c0_i32, %c0_i32_0 : i32, i32, i32
  }
}

</mosaic_0001>

<llo_original>
// kernel: _lambda_.11
$region0: #{_lambda_.11}
  #allocation0 [shape = 'u32[]', space=smem, size = 0x4, offset = 0x4, fixed_abs, tag = 'smem constant byte address 0x4 - core index']
  #allocation1 [shape = 'u32[72,128]{1,0:T(1,128)}', space=vmem, size = 0x9000, scoped, tag = 'internal scratch']
  %s0 = inlined_call_operand.vmem [shape: f32[2,9,9,4], index: 0, kind: input, shape index: {}]
  %s1 = inlined_call_operand.vmem [shape: f32[2,9,9,4], index: 1, kind: input, shape index: {}]
  %s2 = inlined_call_operand.vmem [shape: f32[2,9,9,4], index: 2, kind: input, shape index: {}]
  %s3 = inlined_call_operand.vmem [shape: f32[2,9,9,4], index: 3, kind: input, shape index: {}]
  %s4 = inlined_call_operand.vmem [shape: f32[1,8,8,1], index: 4, kind: input, shape index: {}]
  %s5 = inlined_call_operand.vmem [shape: f32[2,8,8,4], index: 5, kind: output, shape index: {}]
  %s6 = sld [smem:[#allocation0]]
  $region53: #{_lambda_.11} parent=0
    _
  %s8 = ssub.s32 1, %s6
  %s9 = scalar_select 0, %s8, %s6
  loop: start=0, step=1, limit=4
  $region2: #{_lambda_.11} parent=0 // loop_pre_header
    _
  $region3: #{_lambda_.11} parent=0 // loop_header
    %s11 = sphi 0, %s15
    %p12 = scmp.ge.s32.totalorder %s11, 4
    %s21 = sphi 0, %s23
    %s24 = sphi 0, %s21
    %s25 = sphi 0, %s24
    %s41 = sphi 0, %s25
    %s47 = sphi 0, %s49
    %s50 = sphi 0, %s47
    %s51 = sphi 0, %s50
    %s67 = sphi 0, %s51
    %s73 = sphi 0, %s75
    %s76 = sphi 0, %s73
    %s77 = sphi 0, %s76
    %s93 = sphi 0, %s77
    %s99 = sphi 0, %s101
    %s102 = sphi 0, %s99
    %s103 = sphi 0, %s102
    %s119 = sphi 0, %s103
    %s123 = sphi 0, %s123
    %s125 = sphi 0, %s123
    %s126 = sphi 0, %s125
    %s140 = sphi 0, %s126
    %s146 = sphi 0, %s148
    %s149 = sphi 0, %s146
    %s150 = sphi 0, %s149
    %s166 = sphi 0, %s150
  $region4: #{_lambda_.11} parent=0 // loop_header_branch
    %14 = sbr.rel (%p12) target = $region8
  $region5: #{_lambda_.11} parent=0 // loop_body
    %s16 = ssub.s32 %s11, 1
    %s17 = ssub.s32 %s11, 2
    %s18 = sadd.s32 %s11, 1
    %s19 = ssub.s32 %s11, %s18
    %p20 = scmp.eq.s32.totalorder %s19, 0
    %s22 = sadd.s32 %s21, 1
    %s23 = scalar_select %p20, %s21, %s22
    %p26 = pneg %p20
    %p27 = scmp.eq.s32.totalorder %s11, 1
    %p28 = por %p26, %p27
    %p29 = scmp.ne.s32.totalorder %s21, %s24
    %p30 = scmp.eq.s32.totalorder %s11, 0
    %p31 = por %p29, %p30
    %p32 = scmp.ne.s32.totalorder %s21, %s24
    %p33 = scmp.eq.s32.totalorder %s16, 1
    %p34 = por %p32, %p33
    %p35 = scmp.ne.s32.totalorder %s24, %s25
    %p36 = scmp.eq.s32.totalorder %s16, 0
    %p37 = por %p35, %p36
    %p38 = scmp.ne.s32.totalorder %s24, %s25
    %p39 = scmp.eq.s32.totalorder %s17, 1
    %p40 = por %p38, %p39
    %p42 = scmp.ne.s32.totalorder %s25, %s41
    %p43 = scmp.eq.s32.totalorder %s17, 0
    %p44 = por %p42, %p43
    %s45 = ssub.s32 %s11, %s18
    %p46 = scmp.eq.s32.totalorder %s45, 0
    %s48 = sadd.s32 %s47, 1
    %s49 = scalar_select %p46, %s47, %s48
    %p52 = pneg %p46
    %p53 = scmp.eq.s32.totalorder %s11, 1
    %p54 = por %p52, %p53
    %p55 = scmp.ne.s32.totalorder %s47, %s50
    %p56 = scmp.eq.s32.totalorder %s11, 0
    %p57 = por %p55, %p56
    %p58 = scmp.ne.s32.totalorder %s47, %s50
    %p59 = scmp.eq.s32.totalorder %s16, 1
    %p60 = por %p58, %p59
    %p61 = scmp.ne.s32.totalorder %s50, %s51
    %p62 = scmp.eq.s32.totalorder %s16, 0
    %p63 = por %p61, %p62
    %p64 = scmp.ne.s32.totalorder %s50, %s51
    %p65 = scmp.eq.s32.totalorder %s17, 1
    %p66 = por %p64, %p65
    %p68 = scmp.ne.s32.totalorder %s51, %s67
    %p69 = scmp.eq.s32.totalorder %s17, 0
    %p70 = por %p68, %p69
    %s71 = ssub.s32 %s11, %s18
    %p72 = scmp.eq.s32.totalorder %s71, 0
    %s74 = sadd.s32 %s73, 1
    %s75 = scalar_select %p72, %s73, %s74
    %p78 = pneg %p72
    %p79 = scmp.eq.s32.totalorder %s11, 1
    %p80 = por %p78, %p79
    %p81 = scmp.ne.s32.totalorder %s73, %s76
    %p82 = scmp.eq.s32.totalorder %s11, 0
    %p83 = por %p81, %p82
    %p84 = scmp.ne.s32.totalorder %s73, %s76
    %p85 = scmp.eq.s32.totalorder %s16, 1
    %p86 = por %p84, %p85
    %p87 = scmp.ne.s32.totalorder %s76, %s77
    %p88 = scmp.eq.s32.totalorder %s16, 0
    %p89 = por %p87, %p88
    %p90 = scmp.ne.s32.totalorder %s76, %s77
    %p91 = scmp.eq.s32.totalorder %s17, 1
    %p92 = por %p90, %p91
    %p94 = scmp.ne.s32.totalorder %s77, %s93
    %p95 = scmp.eq.s32.totalorder %s17, 0
    %p96 = por %p94, %p95
    %s97 = ssub.s32 %s11, %s18
    %p98 = scmp.eq.s32.totalorder %s97, 0
    %s100 = sadd.s32 %s99, 1
    %s101 = scalar_select %p98, %s99, %s100
    %p104 = pneg %p98
    %p105 = scmp.eq.s32.totalorder %s11, 1
    %p106 = por %p104, %p105
    %p107 = scmp.ne.s32.totalorder %s99, %s102
    %p108 = scmp.eq.s32.totalorder %s11, 0
    %p109 = por %p107, %p108
    %p110 = scmp.ne.s32.totalorder %s99, %s102
    %p111 = scmp.eq.s32.totalorder %s16, 1
    %p112 = por %p110, %p111
    %p113 = scmp.ne.s32.totalorder %s102, %s103
    %p114 = scmp.eq.s32.totalorder %s16, 0
    %p115 = por %p113, %p114
    %p116 = scmp.ne.s32.totalorder %s102, %s103
    %p117 = scmp.eq.s32.totalorder %s17, 1
    %p118 = por %p116, %p117
    %p120 = scmp.ne.s32.totalorder %s103, %s119
    %p121 = scmp.eq.s32.totalorder %s17, 0
    %p122 = por %p120, %p121
    %s124 = sadd.s32 %s123, 1
    %p127 = scmp.eq.s32.totalorder %s11, 1
    %p128 = scmp.ne.s32.totalorder %s123, %s125
    %p129 = scmp.eq.s32.totalorder %s11, 0
    %p130 = por %p128, %p129
    %p131 = scmp.ne.s32.totalorder %s123, %s125
    %p132 = scmp.eq.s32.totalorder %s16, 1
    %p133 = por %p131, %p132
    %p134 = scmp.ne.s32.totalorder %s125, %s126
    %p135 = scmp.eq.s32.totalorder %s16, 0
    %p136 = por %p134, %p135
    %p137 = scmp.ne.s32.totalorder %s125, %s126
    %p138 = scmp.eq.s32.totalorder %s17, 1
    %p139 = por %p137, %p138
    %p141 = scmp.ne.s32.totalorder %s126, %s140
    %p142 = scmp.eq.s32.totalorder %s17, 0
    %p143 = por %p141, %p142
    %s144 = ssub.s32 %s11, %s18
    %p145 = scmp.eq.s32.totalorder %s144, 0
    %s147 = sadd.s32 %s146, 1
    %s148 = scalar_select %p145, %s146, %s147
    %p151 = pneg %p145
    %p152 = scmp.eq.s32.totalorder %s11, 1
    %p153 = por %p151, %p152
    %p154 = scmp.ne.s32.totalorder %s146, %s149
    %p155 = scmp.eq.s32.totalorder %s11, 0
    %p156 = por %p154, %p155
    %p157 = scmp.ne.s32.totalorder %s146, %s149
    %p158 = scmp.eq.s32.totalorder %s16, 1
    %p159 = por %p157, %p158
    %p160 = scmp.ne.s32.totalorder %s149, %s150
    %p161 = scmp.eq.s32.totalorder %s16, 0
    %p162 = por %p160, %p161
    %p163 = scmp.ne.s32.totalorder %s149, %s150
    %p164 = scmp.eq.s32.totalorder %s17, 1
    %p165 = por %p163, %p164
    %p167 = scmp.ne.s32.totalorder %s150, %s166
    %p168 = scmp.eq.s32.totalorder %s17, 0
    %p169 = por %p167, %p168
    %p170 = scmp.le.s32.totalorder 1, %s11
    %p171 = scmp.lt.s32.totalorder %s11, 3
    %p172 = pnand %p170, %p171
    %p173 = pneg %p172
    // Predicated region
    $region9: #{_lambda_.11} parent=5 // pred_check
      _
    $region10: #{_lambda_.11} parent=5 // pred_check_branch
      %175 = sbr.rel (%p172) target = $region12
    $region11: #{_lambda_.11} parent=5 // pred_region
      %s176 = ssub.s32 %s11, 1
      // Predicated region
      $region13: #{_lambda_.11} parent=11 // pred_check
        %p177 = pneg %p136
      $region14: #{_lambda_.11} parent=11 // pred_check_branch
        %179 = sbr.rel (%p177) target = $region16
      $region15: #{_lambda_.11} parent=11 // pred_region
        _
      $region16: #{_lambda_.11} parent=11 // pred_fallthru
        _
    $region12: #{_lambda_.11} parent=5 // pred_fallthru
      _
    %p180 = scmp.lt.s32.totalorder %s11, 2
    // Predicated region
    $region17: #{_lambda_.11} parent=5 // pred_check
      %p181 = pneg %p180
    $region18: #{_lambda_.11} parent=5 // pred_check_branch
      %183 = sbr.rel (%p181) target = $region20
    $region19: #{_lambda_.11} parent=5 // pred_region
      // Predicated region
      $region21: #{_lambda_.11} parent=19 // pred_check
        %p184 = pneg %p31
      $region22: #{_lambda_.11} parent=19 // pred_check_branch
        %186 = sbr.rel (%p184) target = $region24
      $region23: #{_lambda_.11} parent=19 // pred_region
        %p187 = scmp.lt.s32.totalorder %s11, 1
        %s188 = scalar_select %p187, %s11, 1
        %s189 = smul.addr %s188, 18
        %s190 = smul.addr %s189, 8
        %s191 = scalar_lea.vmem %s0, %s190
      $region24: #{_lambda_.11} parent=19 // pred_fallthru
        _
      // Predicated region
      $region25: #{_lambda_.11} parent=19 // pred_check
        %p192 = pneg %p57
      $region26: #{_lambda_.11} parent=19 // pred_check_branch
        %194 = sbr.rel (%p192) target = $region28
      $region27: #{_lambda_.11} parent=19 // pred_region
        %p195 = scmp.lt.s32.totalorder %s11, 1
        %s196 = scalar_select %p195, %s11, 1
        %s197 = smul.addr %s196, 18
        %s198 = smul.addr %s197, 8
        %s199 = scalar_lea.vmem %s1, %s198
      $region28: #{_lambda_.11} parent=19 // pred_fallthru
        _
      // Predicated region
      $region29: #{_lambda_.11} parent=19 // pred_check
        %p200 = pneg %p83
      $region30: #{_lambda_.11} parent=19 // pred_check_branch
        %202 = sbr.rel (%p200) target = $region32
      $region31: #{_lambda_.11} parent=19 // pred_region
        %p203 = scmp.lt.s32.totalorder %s11, 1
        %s204 = scalar_select %p203, %s11, 1
        %s205 = smul.addr %s204, 18
        %s206 = smul.addr %s205, 8
        %s207 = scalar_lea.vmem %s2, %s206
      $region32: #{_lambda_.11} parent=19 // pred_fallthru
        _
      // Predicated region
      $region33: #{_lambda_.11} parent=19 // pred_check
        %p208 = pneg %p109
      $region34: #{_lambda_.11} parent=19 // pred_check_branch
        %210 = sbr.rel (%p208) target = $region36
      $region35: #{_lambda_.11} parent=19 // pred_region
        %p211 = scmp.lt.s32.totalorder %s11, 1
        %s212 = scalar_select %p211, %s11, 1
        %s213 = smul.addr %s212, 18
        %s214 = smul.addr %s213, 8
        %s215 = scalar_lea.vmem %s3, %s214
      $region36: #{_lambda_.11} parent=19 // pred_fallthru
        _
    $region20: #{_lambda_.11} parent=5 // pred_fallthru
      _
    %p216 = scmp.le.s32.totalorder 1, %s11
    %p217 = scmp.lt.s32.totalorder %s11, 3
    %p218 = pnand %p216, %p217
    %p219 = pneg %p218
    // Predicated region
    $region37: #{_lambda_.11} parent=5 // pred_check
      _
    $region38: #{_lambda_.11} parent=5 // pred_check_branch
      %221 = sbr.rel (%p218) target = $region40
    $region39: #{_lambda_.11} parent=5 // pred_region
      %s222 = ssub.s32 %s11, 1
      %p223 = scmp.lt.s32.totalorder %s16, 1
      %s224 = scalar_select %p223, %s16, 1
      %s225 = smul.addr %s224, 18
      %s226 = smul.addr %s225, 8
      %s227 = scalar_lea.vmem %s0, %s226
      %p228 = pneg %p37
      %p229 = pneg %p34
      %p230 = scmp.lt.s32.totalorder %s16, 1
      %s231 = scalar_select %p230, %s16, 1
      %s232 = smul.addr %s231, 18
      %s233 = smul.addr %s232, 8
      %s234 = scalar_lea.vmem %s1, %s233
      %p235 = pneg %p63
      %p236 = pneg %p60
      %p237 = scmp.lt.s32.totalorder %s16, 1
      %s238 = scalar_select %p237, %s16, 1
      %s239 = smul.addr %s238, 18
      %s240 = smul.addr %s239, 8
      %s241 = scalar_lea.vmem %s2, %s240
      %p242 = pneg %p89
      %p243 = pneg %p86
      %p244 = scmp.lt.s32.totalorder %s16, 1
      %s245 = scalar_select %p244, %s16, 1
      %s246 = smul.addr %s245, 18
      %s247 = smul.addr %s246, 8
      %s248 = scalar_lea.vmem %s3, %s247
      %p249 = pneg %p115
      %p250 = pneg %p112
      %p251 = pneg %p136
      %p252 = pneg %p133
      %p253 = pneg %p162
      %p254 = pneg %p159
      %p255 = scmp.lt.s32.totalorder %s16, 1
      %s256 = scalar_select %p255, %s16, 1
      %s257 = smul.addr %s256, 8
      %s258 = smul.addr %s257, 8
      %s259 = scalar_lea.vmem %s5, %s258
      %p260 = scmp.lt.s32.totalorder %s16, 1
      %s261 = scalar_select %p260, %s16, 1
      %s262 = smul.addr %s261, 18
      %s263 = smul.addr %s262, 8
      %s264 = scalar_lea.vmem %s0, %s263
      %p265 = scmp.lt.s32.totalorder %s16, 1
      %s266 = scalar_select %p265, %s16, 1
      %s267 = smul.addr %s266, 18
      %s268 = smul.addr %s267, 8
      %s269 = scalar_lea.vmem %s1, %s268
      %p270 = scmp.lt.s32.totalorder %s16, 1
      %s271 = scalar_select %p270, %s16, 1
      %s272 = smul.addr %s271, 18
      %s273 = smul.addr %s272, 8
      %s274 = scalar_lea.vmem %s2, %s273
      %p275 = scmp.lt.s32.totalorder %s16, 1
      %s276 = scalar_select %p275, %s16, 1
      %s277 = smul.addr %s276, 18
      %s278 = smul.addr %s277, 8
      %s279 = scalar_lea.vmem %s3, %s278
      %p280 = scmp.lt.s32.totalorder %s16, 1
      %s281 = scalar_select %p280, %s16, 1
      %s282 = smul.addr %s281, 8
      %s283 = smul.addr %s282, 8
      %s284 = scalar_lea.vmem %s5, %s283
      %v285 = vld [vmem:[%s264] sm:$0xff]
      %v286 = vld [vmem:[%s264 + $0x8] sm:$0x1]
      %v287 = vld [vmem:[%s264 + $0x10] sm:$0xff]
      %v288 = vld [vmem:[%s264 + $0x18] sm:$0x1]
      %v289 = vld [vmem:[%s264 + $0x20] sm:$0xff]
      %v290 = vld [vmem:[%s264 + $0x28] sm:$0x1]
      %v291 = vld [vmem:[%s264 + $0x30] sm:$0xff]
      %v292 = vld [vmem:[%s264 + $0x38] sm:$0x1]
      %v293 = vld [vmem:[%s264 + $0x40] sm:$0xff]
      %v294 = vld [vmem:[%s264 + $0x48] sm:$0x1]
      %v295 = vld [vmem:[%s264 + $0x50] sm:$0xff]
      %v296 = vld [vmem:[%s264 + $0x58] sm:$0x1]
      %v297 = vld [vmem:[%s264 + $0x60] sm:$0xff]
      %v298 = vld [vmem:[%s264 + $0x68] sm:$0x1]
      %v299 = vld [vmem:[%s264 + $0x70] sm:$0xff]
      %v300 = vld [vmem:[%s264 + $0x78] sm:$0x1]
      %v301 = vld [vmem:[%s264 + $0x80] sm:$0xff]
      %v302 = vld [vmem:[%s264 + $0x88] sm:$0x1]
      %v303 = vld [vmem:[%s269] sm:$0xff]
      %v304 = vld [vmem:[%s269 + $0x10] sm:$0xff]
      %v305 = vld [vmem:[%s269 + $0x20] sm:$0xff]
      %v306 = vld [vmem:[%s269 + $0x30] sm:$0xff]
      %v307 = vld [vmem:[%s269 + $0x40] sm:$0xff]
      %v308 = vld [vmem:[%s269 + $0x50] sm:$0xff]
      %v309 = vld [vmem:[%s269 + $0x60] sm:$0xff]
      %v310 = vld [vmem:[%s269 + $0x70] sm:$0xff]
      %v311 = vld [vmem:[%s269 + $0x80] sm:$0xff]
      %v312 = vld [vmem:[%s274] sm:$0xff]
      %v313 = vld [vmem:[%s274 + $0x8] sm:$0x1]
      %v314 = vld [vmem:[%s274 + $0x10] sm:$0xff]
      %v315 = vld [vmem:[%s274 + $0x18] sm:$0x1]
      %v316 = vld [vmem:[%s274 + $0x20] sm:$0xff]
      %v317 = vld [vmem:[%s274 + $0x28] sm:$0x1]
      %v318 = vld [vmem:[%s274 + $0x30] sm:$0xff]
      %v319 = vld [vmem:[%s274 + $0x38] sm:$0x1]
      %v320 = vld [vmem:[%s274 + $0x40] sm:$0xff]
      %v321 = vld [vmem:[%s274 + $0x48] sm:$0x1]
      %v322 = vld [vmem:[%s274 + $0x50] sm:$0xff]
      %v323 = vld [vmem:[%s274 + $0x58] sm:$0x1]
      %v324 = vld [vmem:[%s274 + $0x60] sm:$0xff]
      %v325 = vld [vmem:[%s274 + $0x68] sm:$0x1]
      %v326 = vld [vmem:[%s274 + $0x70] sm:$0xff]
      %v327 = vld [vmem:[%s274 + $0x78] sm:$0x1]
      %v328 = vld [vmem:[%s279] sm:$0xff]
      %v329 = vld [vmem:[%s279 + $0x10] sm:$0xff]
      %v330 = vld [vmem:[%s279 + $0x20] sm:$0xff]
      %v331 = vld [vmem:[%s279 + $0x30] sm:$0xff]
      %v332 = vld [vmem:[%s279 + $0x40] sm:$0xff]
      %v333 = vld [vmem:[%s279 + $0x50] sm:$0xff]
      %v334 = vld [vmem:[%s279 + $0x60] sm:$0xff]
      %v335 = vld [vmem:[%s279 + $0x70] sm:$0xff]
      %v336 = vadd.f32 %v285, %v303
      %v337 = vadd.f32 %v287, %v304
      %v338 = vadd.f32 %v289, %v305
      %v339 = vadd.f32 %v291, %v306
      %v340 = vadd.f32 %v293, %v307
      %v341 = vadd.f32 %v295, %v308
      %v342 = vadd.f32 %v297, %v309
      %v343 = vadd.f32 %v299, %v310
      %vm360 = vcmask 1046528
      %v361 = vrot.slane %v285, 1
      %v362 = vrot.slane %v286, 1
      %v363 = vsel %vm360, %v361, %v362
      %v364 = vrot.slane %v287, 1
      %v365 = vrot.slane %v288, 1
      %v366 = vsel %vm360, %v364, %v365
      %v367 = vrot.slane %v289, 1
      %v368 = vrot.slane %v290, 1
      %v369 = vsel %vm360, %v367, %v368
      %v370 = vrot.slane %v291, 1
      %v371 = vrot.slane %v292, 1
      %v372 = vsel %vm360, %v370, %v371
      %v373 = vrot.slane %v293, 1
      %v374 = vrot.slane %v294, 1
      %v375 = vsel %vm360, %v373, %v374
      %v376 = vrot.slane %v295, 1
      %v377 = vrot.slane %v296, 1
      %v378 = vsel %vm360, %v376, %v377
      %v379 = vrot.slane %v297, 1
      %v380 = vrot.slane %v298, 1
      %v381 = vsel %vm360, %v379, %v380
      %v382 = vrot.slane %v299, 1
      %v383 = vrot.slane %v300, 1
      %v384 = vsel %vm360, %v382, %v383
      %v393 = vadd.f32 %v336, %v363
      %v394 = vadd.f32 %v337, %v366
      %v395 = vadd.f32 %v338, %v369
      %v396 = vadd.f32 %v339, %v372
      %v397 = vadd.f32 %v340, %v375
      %v398 = vadd.f32 %v341, %v378
      %v399 = vadd.f32 %v342, %v381
      %v400 = vadd.f32 %v343, %v384
      %v401 = vadd.f32 %v393, %v312
      %v402 = vadd.f32 %v394, %v314
      %v403 = vadd.f32 %v395, %v316
      %v404 = vadd.f32 %v396, %v318
      %v405 = vadd.f32 %v397, %v320
      %v406 = vadd.f32 %v398, %v322
      %v407 = vadd.f32 %v399, %v324
      %v408 = vadd.f32 %v400, %v326
      %v409 = vadd.f32 %v401, %v328
      %v410 = vadd.f32 %v402, %v329
      %v411 = vadd.f32 %v403, %v330
      %v412 = vadd.f32 %v404, %v331
      %v413 = vadd.f32 %v405, %v332
      %v414 = vadd.f32 %v406, %v333
      %v415 = vadd.f32 %v407, %v334
      %v416 = vadd.f32 %v408, %v335
      %v433 = vrot.slane %v312, 1
      %v434 = vrot.slane %v313, 1
      %v435 = vsel %vm360, %v433, %v434
      %v436 = vrot.slane %v314, 1
      %v437 = vrot.slane %v315, 1
      %v438 = vsel %vm360, %v436, %v437
      %v439 = vrot.slane %v316, 1
      %v440 = vrot.slane %v317, 1
      %v441 = vsel %vm360, %v439, %v440
      %v442 = vrot.slane %v318, 1
      %v443 = vrot.slane %v319, 1
      %v444 = vsel %vm360, %v442, %v443
      %v445 = vrot.slane %v320, 1
      %v446 = vrot.slane %v321, 1
      %v447 = vsel %vm360, %v445, %v446
      %v448 = vrot.slane %v322, 1
      %v449 = vrot.slane %v323, 1
      %v450 = vsel %vm360, %v448, %v449
      %v451 = vrot.slane %v324, 1
      %v452 = vrot.slane %v325, 1
      %v453 = vsel %vm360, %v451, %v452
      %v454 = vrot.slane %v326, 1
      %v455 = vrot.slane %v327, 1
      %v456 = vsel %vm360, %v454, %v455
      %v465 = vadd.f32 %v409, %v435
      %v466 = vadd.f32 %v410, %v438
      %v467 = vadd.f32 %v411, %v441
      %v468 = vadd.f32 %v412, %v444
      %v469 = vadd.f32 %v413, %v447
      %v470 = vadd.f32 %v414, %v450
      %v471 = vadd.f32 %v415, %v453
      %v472 = vadd.f32 %v416, %v456
      %v473 = vadd.f32 %v465, %v287
      %v474 = vadd.f32 %v466, %v289
      %v475 = vadd.f32 %v467, %v291
      %v476 = vadd.f32 %v468, %v293
      %v477 = vadd.f32 %v469, %v295
      %v478 = vadd.f32 %v470, %v297
      %v479 = vadd.f32 %v471, %v299
      %v480 = vadd.f32 %v472, %v301
      %v481 = vadd.f32 %v473, %v304
      %v482 = vadd.f32 %v474, %v305
      %v483 = vadd.f32 %v475, %v306
      %v484 = vadd.f32 %v476, %v307
      %v485 = vadd.f32 %v477, %v308
      %v486 = vadd.f32 %v478, %v309
      %v487 = vadd.f32 %v479, %v310
      %v488 = vadd.f32 %v480, %v311
      %v491 = vrot.slane %v301, 1
      %v492 = vrot.slane %v302, 1
      %v493 = vsel %vm360, %v491, %v492
      %v495 = vadd.f32 %v481, %v366
      %v496 = vadd.f32 %v482, %v369
      %v497 = vadd.f32 %v483, %v372
      %v498 = vadd.f32 %v484, %v375
      %v499 = vadd.f32 %v485, %v378
      %v500 = vadd.f32 %v486, %v381
      %v501 = vadd.f32 %v487, %v384
      %v502 = vadd.f32 %v488, %v493
      %v503 = vld [vmem:[%s4] sm:$0xff]
      %v504 = vld [vmem:[%s4 + $0x8] sm:$0xff]
      %v505 = vld [vmem:[%s4 + $0x10] sm:$0xff]
      %v506 = vld [vmem:[%s4 + $0x18] sm:$0xff]
      %v507 = vld [vmem:[%s4 + $0x20] sm:$0xff]
      %v508 = vld [vmem:[%s4 + $0x28] sm:$0xff]
      %v509 = vld [vmem:[%s4 + $0x30] sm:$0xff]
      %v510 = vld [vmem:[%s4 + $0x38] sm:$0xff]
      %512 = vset.pattern.permute.xlu0 0
      %513 = vperm.xlu0 %512, %v503
      %v514 = vpop.permute.xlu0 %513
      %517 = vset.pattern.permute.xlu0 0
      %518 = vperm.xlu0 %517, %v504
      %v519 = vpop.permute.xlu0 %518
      %522 = vset.pattern.permute.xlu0 0
      %523 = vperm.xlu0 %522, %v505
      %v524 = vpop.permute.xlu0 %523
      %527 = vset.pattern.permute.xlu0 0
      %528 = vperm.xlu0 %527, %v506
      %v529 = vpop.permute.xlu0 %528
      %532 = vset.pattern.permute.xlu0 0
      %533 = vperm.xlu0 %532, %v507
      %v534 = vpop.permute.xlu0 %533
      %537 = vset.pattern.permute.xlu0 0
      %538 = vperm.xlu0 %537, %v508
      %v539 = vpop.permute.xlu0 %538
      %542 = vset.pattern.permute.xlu0 0
      %543 = vperm.xlu0 %542, %v509
      %v544 = vpop.permute.xlu0 %543
      %547 = vset.pattern.permute.xlu0 0
      %548 = vperm.xlu0 %547, %v510
      %v549 = vpop.permute.xlu0 %548
      %v551 = vmul.f32 %v495, %v514
      %v552 = vmul.f32 %v496, %v519
      %v553 = vmul.f32 %v497, %v524
      %v554 = vmul.f32 %v498, %v529
      %v555 = vmul.f32 %v499, %v534
      %v556 = vmul.f32 %v500, %v539
      %v557 = vmul.f32 %v501, %v544
      %v558 = vmul.f32 %v502, %v549
      %vm559 = vcmask 31744
      %560 = vst.msk [vmem:[%s284] sm:$0xff] %vm559, %v551
      %561 = vst.msk [vmem:[%s284 + $0x8] sm:$0xff] %vm559, %v552
      %562 = vst.msk [vmem:[%s284 + $0x10] sm:$0xff] %vm559, %v553
      %563 = vst.msk [vmem:[%s284 + $0x18] sm:$0xff] %vm559, %v554
      %564 = vst.msk [vmem:[%s284 + $0x20] sm:$0xff] %vm559, %v555
      %565 = vst.msk [vmem:[%s284 + $0x28] sm:$0xff] %vm559, %v556
      %566 = vst.msk [vmem:[%s284 + $0x30] sm:$0xff] %vm559, %v557
      %567 = vst.msk [vmem:[%s284 + $0x38] sm:$0xff] %vm559, %v558
      %p568 = scmp.lt.s32.totalorder %s16, 1
      %s569 = scalar_select %p568, %s16, 1
      %s570 = smul.addr %s569, 8
      %s571 = smul.addr %s570, 8
      %s572 = scalar_lea.vmem %s5, %s571
      // Predicated region
      $region41: #{_lambda_.11} parent=39 // pred_check
        %p573 = pneg %p159
      $region42: #{_lambda_.11} parent=39 // pred_check_branch
        %575 = sbr.rel (%p573) target = $region44
      $region43: #{_lambda_.11} parent=39 // pred_region
        _
      $region44: #{_lambda_.11} parent=39 // pred_fallthru
        _
    $region40: #{_lambda_.11} parent=5 // pred_fallthru
      _
    %p576 = scmp.le.s32.totalorder 2, %s11
    // Predicated region
    $region45: #{_lambda_.11} parent=5 // pred_check
      %p577 = pneg %p576
    $region46: #{_lambda_.11} parent=5 // pred_check_branch
      %579 = sbr.rel (%p577) target = $region48
    $region47: #{_lambda_.11} parent=5 // pred_region
      %s580 = ssub.s32 %s11, 2
      // Predicated region
      $region49: #{_lambda_.11} parent=47 // pred_check
        %p581 = pneg %p165
      $region50: #{_lambda_.11} parent=47 // pred_check_branch
        %583 = sbr.rel (%p581) target = $region52
      $region51: #{_lambda_.11} parent=47 // pred_region
        %p584 = scmp.lt.s32.totalorder %s17, 1
        %s585 = scalar_select %p584, %s17, 1
        %s586 = smul.addr %s585, 8
        %s587 = smul.addr %s586, 8
        %s588 = scalar_lea.vmem %s5, %s587
      $region52: #{_lambda_.11} parent=47 // pred_fallthru
        _
    $region48: #{_lambda_.11} parent=5 // pred_fallthru
      _
  $region6: #{_lambda_.11} parent=0 // loop_footer
    %s15 = sadd.s32 1, %s11
  $region7: #{_lambda_.11} parent=0 // loop_footer_branch
    %10 = sbr.rel target = $region3
  $region8: #{_lambda_.11} parent=0 // loop_exit
    _

// kernel: _lambda_.12
$region0: #{_lambda_.12}
  #allocation0 [shape = 'u32[]', space=smem, size = 0x4, offset = 0x4, fixed_abs, tag = 'smem constant byte address 0x4 - core index']
  #allocation1 [shape = 'u32[72,128]{1,0:T(1,128)}', space=vmem, size = 0x9000, scoped, tag = 'internal scratch']
  %s0 = inlined_call_operand.vmem [shape: bf16[2,64,196], index: 0, kind: input, shape index: {}]
  %s1 = inlined_call_operand.vmem [shape: bf16[196,128], index: 1, kind: input, shape index: {}]
  %s2 = inlined_call_operand.vmem [shape: f32[1,128], index: 2, kind: input, shape index: {}]
  %s3 = inlined_call_operand.vmem [shape: bf16[2,64,128], index: 3, kind: output, shape index: {}]
  %s4 = sld [smem:[#allocation0]]
  $region45: #{_lambda_.12} parent=0
    _
  %s6 = ssub.s32 1, %s4
  %s7 = scalar_select 0, %s6, %s4
  loop: start=0, step=1, limit=4
  $region2: #{_lambda_.12} parent=0 // loop_pre_header
    _
  $region3: #{_lambda_.12} parent=0 // loop_header
    %s9 = sphi 0, %s13
    %p10 = scmp.ge.s32.totalorder %s9, 4
    %s16 = sphi 0, %s28
    %s17 = sphi 0, %s24
    %s18 = sphi 0, %s16
    %s19 = sphi 0, %s17
    %s20 = sphi 0, %s18
    %s21 = sphi 0, %s19
    %s33 = sphi 0, %s35
    %s36 = sphi 0, %s33
    %s37 = sphi 0, %s36
    %s53 = sphi 0, %s37
    %s59 = sphi 0, %s61
    %s62 = sphi 0, %s59
    %s63 = sphi 0, %s62
    %s79 = sphi 0, %s63
    %s83 = sphi 0, %s83
    %s85 = sphi 0, %s83
    %s86 = sphi 0, %s85
    %s100 = sphi 0, %s86
    %s106 = sphi 0, %s108
    %s109 = sphi 0, %s106
    %s110 = sphi 0, %s109
    %s126 = sphi 0, %s110
  $region4: #{_lambda_.12} parent=0 // loop_header_branch
    %12 = sbr.rel (%p10) target = $region8
  $region5: #{_lambda_.12} parent=0 // loop_body
    %s14 = ssub.s32 %s9, 1
    %s15 = ssub.s32 %s9, 2
    %s22 = sadd.s32 1, %s17
    %p23 = scmp.ge.s32.totalorder %s22, 1
    %s24 = scalar_select %p23, 0, %s22
    %s25 = sadd.s32 1, %s16
    %s26 = scalar_select %p23, %s25, %s16
    %p27 = scmp.ge.s32.totalorder %s26, 2
    %s28 = scalar_select %p27, 0, %s26
    %s29 = ssub.s32 %s16, %s28
    %s30 = ssub.s32 %s17, %s24
    %s31 = sor.u32 %s29, %s30
    %p32 = scmp.eq.s32.totalorder %s31, 0
    %s34 = sadd.s32 %s33, 1
    %s35 = scalar_select %p32, %s33, %s34
    %p38 = pneg %p32
    %p39 = scmp.eq.s32.totalorder %s9, 1
    %p40 = por %p38, %p39
    %p41 = scmp.ne.s32.totalorder %s33, %s36
    %p42 = scmp.eq.s32.totalorder %s9, 0
    %p43 = por %p41, %p42
    %p44 = scmp.ne.s32.totalorder %s33, %s36
    %p45 = scmp.eq.s32.totalorder %s14, 1
    %p46 = por %p44, %p45
    %p47 = scmp.ne.s32.totalorder %s36, %s37
    %p48 = scmp.eq.s32.totalorder %s14, 0
    %p49 = por %p47, %p48
    %p50 = scmp.ne.s32.totalorder %s36, %s37
    %p51 = scmp.eq.s32.totalorder %s15, 1
    %p52 = por %p50, %p51
    %p54 = scmp.ne.s32.totalorder %s37, %s53
    %p55 = scmp.eq.s32.totalorder %s15, 0
    %p56 = por %p54, %p55
    %s57 = ssub.s32 %s17, %s24
    %p58 = scmp.eq.s32.totalorder %s57, 0
    %s60 = sadd.s32 %s59, 1
    %s61 = scalar_select %p58, %s59, %s60
    %p64 = pneg %p58
    %p65 = scmp.eq.s32.totalorder %s9, 1
    %p66 = por %p64, %p65
    %p67 = scmp.ne.s32.totalorder %s59, %s62
    %p68 = scmp.eq.s32.totalorder %s9, 0
    %p69 = por %p67, %p68
    %p70 = scmp.ne.s32.totalorder %s59, %s62
    %p71 = scmp.eq.s32.totalorder %s14, 1
    %p72 = por %p70, %p71
    %p73 = scmp.ne.s32.totalorder %s62, %s63
    %p74 = scmp.eq.s32.totalorder %s14, 0
    %p75 = por %p73, %p74
    %p76 = scmp.ne.s32.totalorder %s62, %s63
    %p77 = scmp.eq.s32.totalorder %s15, 1
    %p78 = por %p76, %p77
    %p80 = scmp.ne.s32.totalorder %s63, %s79
    %p81 = scmp.eq.s32.totalorder %s15, 0
    %p82 = por %p80, %p81
    %s84 = sadd.s32 %s83, 1
    %p87 = scmp.eq.s32.totalorder %s9, 1
    %p88 = scmp.ne.s32.totalorder %s83, %s85
    %p89 = scmp.eq.s32.totalorder %s9, 0
    %p90 = por %p88, %p89
    %p91 = scmp.ne.s32.totalorder %s83, %s85
    %p92 = scmp.eq.s32.totalorder %s14, 1
    %p93 = por %p91, %p92
    %p94 = scmp.ne.s32.totalorder %s85, %s86
    %p95 = scmp.eq.s32.totalorder %s14, 0
    %p96 = por %p94, %p95
    %p97 = scmp.ne.s32.totalorder %s85, %s86
    %p98 = scmp.eq.s32.totalorder %s15, 1
    %p99 = por %p97, %p98
    %p101 = scmp.ne.s32.totalorder %s86, %s100
    %p102 = scmp.eq.s32.totalorder %s15, 0
    %p103 = por %p101, %p102
    %s104 = ssub.s32 %s16, %s28
    %p105 = scmp.eq.s32.totalorder %s104, 0
    %s107 = sadd.s32 %s106, 1
    %s108 = scalar_select %p105, %s106, %s107
    %p111 = pneg %p105
    %p112 = scmp.eq.s32.totalorder %s9, 1
    %p113 = por %p111, %p112
    %p114 = scmp.ne.s32.totalorder %s106, %s109
    %p115 = scmp.eq.s32.totalorder %s9, 0
    %p116 = por %p114, %p115
    %p117 = scmp.ne.s32.totalorder %s106, %s109
    %p118 = scmp.eq.s32.totalorder %s14, 1
    %p119 = por %p117, %p118
    %p120 = scmp.ne.s32.totalorder %s109, %s110
    %p121 = scmp.eq.s32.totalorder %s14, 0
    %p122 = por %p120, %p121
    %p123 = scmp.ne.s32.totalorder %s109, %s110
    %p124 = scmp.eq.s32.totalorder %s15, 1
    %p125 = por %p123, %p124
    %p127 = scmp.ne.s32.totalorder %s110, %s126
    %p128 = scmp.eq.s32.totalorder %s15, 0
    %p129 = por %p127, %p128
    %p130 = scmp.le.s32.totalorder 1, %s9
    %p131 = scmp.lt.s32.totalorder %s9, 3
    %p132 = pnand %p130, %p131
    %p133 = pneg %p132
    // Predicated region
    $region9: #{_lambda_.12} parent=5 // pred_check
      _
    $region10: #{_lambda_.12} parent=5 // pred_check_branch
      %135 = sbr.rel (%p132) target = $region12
    $region11: #{_lambda_.12} parent=5 // pred_region
      %s136 = ssub.s32 %s9, 1
      // Predicated region
      $region13: #{_lambda_.12} parent=11 // pred_check
        %p137 = pneg %p75
      $region14: #{_lambda_.12} parent=11 // pred_check_branch
        %139 = sbr.rel (%p137) target = $region16
      $region15: #{_lambda_.12} parent=11 // pred_region
        %s140 = smul.u32 25, %s19
        %p141 = scmp.lt.s32.totalorder %s140, 24
        %s142 = scalar_select %p141, %s140, 24
        %s143 = smul.addr %s142, 4
        %s144 = scalar_lea.vmem %s1, %s143
        %s145 = smul.u32 25, %s19
      $region16: #{_lambda_.12} parent=11 // pred_fallthru
        _
      // Predicated region
      $region17: #{_lambda_.12} parent=11 // pred_check
        %p146 = pneg %p96
      $region18: #{_lambda_.12} parent=11 // pred_check_branch
        %148 = sbr.rel (%p146) target = $region20
      $region19: #{_lambda_.12} parent=11 // pred_region
        _
      $region20: #{_lambda_.12} parent=11 // pred_fallthru
        _
    $region12: #{_lambda_.12} parent=5 // pred_fallthru
      _
    %p149 = scmp.lt.s32.totalorder %s9, 2
    // Predicated region
    $region21: #{_lambda_.12} parent=5 // pred_check
      %p150 = pneg %p149
    $region22: #{_lambda_.12} parent=5 // pred_check_branch
      %152 = sbr.rel (%p150) target = $region24
    $region23: #{_lambda_.12} parent=5 // pred_region
      // Predicated region
      $region25: #{_lambda_.12} parent=23 // pred_check
        %p153 = pneg %p43
      $region26: #{_lambda_.12} parent=23 // pred_check_branch
        %155 = sbr.rel (%p153) target = $region28
      $region27: #{_lambda_.12} parent=23 // pred_region
        %s156 = smul.u32 2, %s17
        %p157 = scmp.lt.s32.totalorder %s16, 1
        %s158 = scalar_select %p157, %s16, 1
        %p159 = scmp.lt.s32.totalorder %s156, 1
        %s160 = scalar_select %p159, %s156, 1
        %s161 = smul.addr %s158, 16
        %s162 = sadd.s32 %s160, %s161
        %s163 = smul.addr %s162, 4
        %s164 = scalar_lea.vmem %s0, %s163
        %s165 = smul.u32 2, %s17
      $region28: #{_lambda_.12} parent=23 // pred_fallthru
        _
    $region24: #{_lambda_.12} parent=5 // pred_fallthru
      _
    %p166 = scmp.le.s32.totalorder 1, %s9
    %p167 = scmp.lt.s32.totalorder %s9, 3
    %p168 = pnand %p166, %p167
    %p169 = pneg %p168
    // Predicated region
    $region29: #{_lambda_.12} parent=5 // pred_check
      _
    $region30: #{_lambda_.12} parent=5 // pred_check_branch
      %171 = sbr.rel (%p168) target = $region32
    $region31: #{_lambda_.12} parent=5 // pred_region
      %s172 = ssub.s32 %s9, 1
      %s173 = smul.u32 2, %s19
      %p174 = scmp.lt.s32.totalorder %s18, 1
      %s175 = scalar_select %p174, %s18, 1
      %p176 = scmp.lt.s32.totalorder %s173, 1
      %s177 = scalar_select %p176, %s173, 1
      %s178 = smul.addr %s175, 16
      %s179 = sadd.s32 %s177, %s178
      %s180 = smul.addr %s179, 4
      %s181 = scalar_lea.vmem %s0, %s180
      %p182 = pneg %p49
      %p183 = pneg %p46
      %s184 = smul.u32 25, %s19
      %p185 = scmp.lt.s32.totalorder %s184, 24
      %s186 = scalar_select %p185, %s184, 24
      %s187 = smul.addr %s186, 4
      %s188 = scalar_lea.vmem %s1, %s187
      %p189 = pneg %p75
      %p190 = pneg %p72
      %p191 = pneg %p96
      %p192 = pneg %p93
      %p193 = pneg %p122
      %p194 = pneg %p119
      %p195 = scmp.lt.s32.totalorder %s18, 1
      %s196 = scalar_select %p195, %s18, 1
      %s197 = smul.addr %s196, 8
      %s198 = smul.addr %s197, 4
      %s199 = scalar_lea.vmem %s3, %s198
      %s200 = smul.u32 2, %s19
      %p201 = scmp.lt.s32.totalorder %s18, 1
      %s202 = scalar_select %p201, %s18, 1
      %p203 = scmp.lt.s32.totalorder %s200, 1
      %s204 = scalar_select %p203, %s200, 1
      %s205 = smul.addr %s202, 16
      %s206 = sadd.s32 %s204, %s205
      %s207 = smul.addr %s206, 4
      %s208 = scalar_lea.vmem %s0, %s207
      %s209 = smul.u32 2, %s19
      %s210 = smul.u32 25, %s19
      %p211 = scmp.lt.s32.totalorder %s210, 24
      %s212 = scalar_select %p211, %s210, 24
      %s213 = smul.addr %s212, 4
      %s214 = scalar_lea.vmem %s1, %s213
      %s215 = smul.u32 25, %s19
      %p216 = scmp.lt.s32.totalorder %s18, 1
      %s217 = scalar_select %p216, %s18, 1
      %s218 = smul.addr %s217, 8
      %s219 = smul.addr %s218, 4
      %s220 = scalar_lea.vmem %s3, %s219
      %v222 = vld [vmem:[%s208] sm:$0xff]
      %v223 = vld [vmem:[%s208 + $0x8] sm:$0xff]
      %v224 = vld [vmem:[%s208 + $0x10] sm:$0xff]
      %v225 = vld [vmem:[%s208 + $0x18] sm:$0xff]
      %v226 = vld [vmem:[%s208 + $0x20] sm:$0xff]
      %v227 = vld [vmem:[%s208 + $0x28] sm:$0xff]
      %v228 = vld [vmem:[%s208 + $0x30] sm:$0xff]
      %v229 = vld [vmem:[%s208 + $0x38] sm:$0xff]
      %v230 = vld [vmem:[%s214] sm:$0xf]
      %v231 = vld [vmem:[%s214 + $0x4] sm:$0xf]
      %v232 = vld [vmem:[%s214 + $0x8] sm:$0xf]
      %v233 = vld [vmem:[%s214 + $0xc] sm:$0xf]
      %v234 = vld [vmem:[%s214 + $0x10] sm:$0xf]
      %v235 = vld [vmem:[%s214 + $0x14] sm:$0xf]
      %v236 = vld [vmem:[%s214 + $0x18] sm:$0xf]
      %v237 = vld [vmem:[%s214 + $0x1c] sm:$0xf]
      %v238 = vld [vmem:[%s214 + $0x20] sm:$0xf]
      %v239 = vld [vmem:[%s214 + $0x24] sm:$0xf]
      %v240 = vld [vmem:[%s214 + $0x28] sm:$0xf]
      %v241 = vld [vmem:[%s214 + $0x2c] sm:$0xf]
      %v242 = vld [vmem:[%s214 + $0x30] sm:$0xf]
      %v243 = vld [vmem:[%s214 + $0x34] sm:$0xf]
      %v244 = vld [vmem:[%s214 + $0x38] sm:$0xf]
      %v245 = vld [vmem:[%s214 + $0x3c] sm:$0xf]
      %v246 = vld [vmem:[%s214 + $0x40] sm:$0xf]
      %v247 = vld [vmem:[%s214 + $0x44] sm:$0xf]
      %v248 = vld [vmem:[%s214 + $0x48] sm:$0xf]
      %v249 = vld [vmem:[%s214 + $0x4c] sm:$0xf]
      %v250 = vld [vmem:[%s214 + $0x50] sm:$0xf]
      %v251 = vld [vmem:[%s214 + $0x54] sm:$0xf]
      %v252 = vld [vmem:[%s214 + $0x58] sm:$0xf]
      %v253 = vld [vmem:[%s214 + $0x5c] sm:$0xf]
      %v254 = vld [vmem:[%s214 + $0x60] sm:$0x3]
      %v255 = vld [vmem:[%s2] sm:$0x1]
      %v257 = vperm.slane %v255, 0
      %v267 = vunpack.c.l.b16 %v222
      %v268 = vunpack.c.h.b16 %v222
      %v269 = vunpack.c.l.b16 %v223
      %v270 = vunpack.c.h.b16 %v223
      %v271 = vunpack.c.l.b16 %v224
      %v272 = vunpack.c.h.b16 %v224
      %v273 = vunpack.c.l.b16 %v225
      %v274 = vunpack.c.h.b16 %v225
      %v275 = vunpack.c.l.b16 %v226
      %v276 = vunpack.c.h.b16 %v226
      %v277 = vunpack.c.l.b16 %v227
      %v278 = vunpack.c.h.b16 %v227
      %v279 = vunpack.c.l.b16 %v228
      %v280 = vunpack.c.h.b16 %v228
      %v281 = vunpack.c.l.b16 %v229
      %v282 = vunpack.c.h.b16 %v229
      %v283 = vpack.c.b16 %v269, %v267
      %v284 = vpack.c.b16 %v270, %v268
      %v285 = vpack.c.b16 %v273, %v271
      %v286 = vpack.c.b16 %v274, %v272
      %v287 = vpack.c.b16 %v277, %v275
      %v288 = vpack.c.b16 %v278, %v276
      %v289 = vpack.c.b16 %v281, %v279
      %v290 = vpack.c.b16 %v282, %v280
      %v320 = vunpack.c.l.b16 %v230
      %v321 = vunpack.c.l.b16 %v231
      %v322 = vunpack.c.l.b16 %v232
      %v323 = vunpack.c.l.b16 %v233
      %v324 = vunpack.c.l.b16 %v234
      %v325 = vunpack.c.l.b16 %v235
      %v326 = vunpack.c.l.b16 %v236
      %v327 = vunpack.c.l.b16 %v237
      %v328 = vunpack.c.l.b16 %v238
      %v329 = vunpack.c.l.b16 %v239
      %v330 = vunpack.c.l.b16 %v240
      %v331 = vunpack.c.l.b16 %v241
      %v332 = vunpack.c.l.b16 %v242
      %v333 = vunpack.c.l.b16 %v243
      %v334 = vunpack.c.l.b16 %v244
      %v335 = vunpack.c.l.b16 %v245
      %v336 = vunpack.c.l.b16 %v246
      %v337 = vunpack.c.l.b16 %v247
      %v338 = vunpack.c.l.b16 %v248
      %v339 = vunpack.c.l.b16 %v249
      %v340 = vunpack.c.l.b16 %v250
      %v341 = vunpack.c.l.b16 %v251
      %v342 = vunpack.c.l.b16 %v252
      %v343 = vunpack.c.l.b16 %v253
      %v344 = vunpack.c.l.b16 %v254
      %v345 = vpack.c.b16 %v321, %v320
      %v346 = vpack.c.b16 %v323, %v322
      %v347 = vpack.c.b16 %v325, %v324
      %v348 = vpack.c.b16 %v327, %v326
      %v349 = vpack.c.b16 %v329, %v328
      %v350 = vpack.c.b16 %v331, %v330
      %v351 = vpack.c.b16 %v333, %v332
      %v352 = vpack.c.b16 %v335, %v334
      %v353 = vpack.c.b16 %v337, %v336
      %v354 = vpack.c.b16 %v339, %v338
      %v355 = vpack.c.b16 %v341, %v340
      %v356 = vpack.c.b16 %v343, %v342
      %v357 = vpack.c.b16 %v344, %v344
      %vm370 = vcmask 556032
      %v372 = vsel %vm370, %v284, 0
      %v375 = vsel %vm370, %v286, 0
      %v378 = vsel %vm370, %v288, 0
      %v381 = vsel %vm370, %v290, 0
      %vm383 = vcmask 1041408
      %v385 = vsel %vm383, %v357, 0
      %387 = vmatpush.bf16.msra.mxu0 %v352
      %388 = vmatpush.bf16.msra.mxu0 %v351
      %389 = vmatpush.bf16.msra.mxu0 %v350
      %390 = vmatpush.bf16.msra.mxu0 %v349
      %391 = vmatpush.bf16.msra.mxu0 %v348
      %392 = vmatpush.bf16.msra.mxu0 %v347
      %393 = vmatpush.bf16.msra.mxu0 %v346
      %394 = vmatpush.bf16.msra.mxu0 %v345
      %395 = vmatmul.bf16.gmra.mxu0 %v283
      %v396 = vpop.f32.mrf.mxu0
      %v397 = vadd.f32 %v257, %v396
      %v398 = vpop.f32.mrf.mxu0
      %v399 = vadd.f32 %v257, %v398
      %400 = vmatmul.bf16.gmra.mxu0 %v285
      %v401 = vpop.f32.mrf.mxu0
      %v402 = vadd.f32 %v257, %v401
      %v403 = vpop.f32.mrf.mxu0
      %v404 = vadd.f32 %v257, %v403
      %405 = vmatmul.bf16.gmra.mxu0 %v287
      %v406 = vpop.f32.mrf.mxu0
      %v407 = vadd.f32 %v257, %v406
      %v408 = vpop.f32.mrf.mxu0
      %v409 = vadd.f32 %v257, %v408
      %410 = vmatmul.bf16.gmra.mxu0 %v289
      %v411 = vpop.f32.mrf.mxu0
      %v412 = vadd.f32 %v257, %v411
      %v413 = vpop.f32.mrf.mxu0
      %v414 = vadd.f32 %v257, %v413
      %415 = vdwg.mxu0
      %416 = vmatpush.bf16.msra.mxu0 0
      %417 = vmatpush.bf16.msra.mxu0 0
      %418 = vmatpush.bf16.msra.mxu0 0
      %419 = vmatpush.bf16.msra.mxu0 %v385
      %420 = vmatpush.bf16.msra.mxu0 %v356
      %421 = vmatpush.bf16.msra.mxu0 %v355
      %422 = vmatpush.bf16.msra.mxu0 %v354
      %423 = vmatpush.bf16.msra.mxu0 %v353
      %424 = vmatmul.bf16.gmra.mxu0 %v372
      %v425 = vpop.f32.mrf.mxu0
      %v426 = vadd.f32 %v397, %v425
      %v427 = vpop.f32.mrf.mxu0
      %v428 = vadd.f32 %v399, %v427
      %429 = vmatmul.bf16.gmra.mxu0 %v375
      %v430 = vpop.f32.mrf.mxu0
      %v431 = vadd.f32 %v402, %v430
      %v432 = vpop.f32.mrf.mxu0
      %v433 = vadd.f32 %v404, %v432
      %434 = vmatmul.bf16.gmra.mxu0 %v378
      %v435 = vpop.f32.mrf.mxu0
      %v436 = vadd.f32 %v407, %v435
      %v437 = vpop.f32.mrf.mxu0
      %v438 = vadd.f32 %v409, %v437
      %439 = vmatmul.bf16.gmra.mxu0 %v381
      %v440 = vpop.f32.mrf.mxu0
      %v441 = vadd.f32 %v412, %v440
      %v442 = vpop.f32.mrf.mxu0
      %v443 = vadd.f32 %v414, %v442
      %444 = vdwg.mxu0
      %v445 = vadd.f32 %v426, %v428
      %v446 = vadd.f32 %v445, %v431
      %v447 = vadd.f32 %v446, %v433
      %v448 = vadd.f32 %v447, %v436
      %v449 = vadd.f32 %v448, %v438
      %v450 = vadd.f32 %v449, %v441
      %v451 = vadd.f32 %v450, %v443
      %v452 = vrot.slane %v451, 4
      %v453 = vadd.f32 %v451, %v452
      %v454 = vrot.slane %v453, 2
      %v455 = vadd.f32 %v453, %v454
      %v456 = vrot.slane %v455, 1
      %v457 = vadd.f32 %v455, %v456
      %v458 = vmul.f32 %v457, 0.015625
      %v459 = vsub.f32 %v426, %v458
      %v460 = vsub.f32 %v428, %v458
      %v461 = vsub.f32 %v431, %v458
      %v462 = vsub.f32 %v433, %v458
      %v463 = vsub.f32 %v436, %v458
      %v464 = vsub.f32 %v438, %v458
      %v465 = vsub.f32 %v441, %v458
      %v466 = vsub.f32 %v443, %v458
      %v467 = vmul.f32 %v459, %v459
      %v468 = vmul.f32 %v460, %v460
      %v469 = vmul.f32 %v461, %v461
      %v470 = vmul.f32 %v462, %v462
      %v471 = vmul.f32 %v463, %v463
      %v472 = vmul.f32 %v464, %v464
      %v473 = vmul.f32 %v465, %v465
      %v474 = vmul.f32 %v466, %v466
      %v475 = vadd.f32 %v467, %v468
      %v476 = vadd.f32 %v475, %v469
      %v477 = vadd.f32 %v476, %v470
      %v478 = vadd.f32 %v477, %v471
      %v479 = vadd.f32 %v478, %v472
      %v480 = vadd.f32 %v479, %v473
      %v481 = vadd.f32 %v480, %v474
      %v482 = vrot.slane %v481, 4
      %v483 = vadd.f32 %v481, %v482
      %v484 = vrot.slane %v483, 2
      %v485 = vadd.f32 %v483, %v484
      %v486 = vrot.slane %v485, 1
      %v487 = vadd.f32 %v485, %v486
      %v488 = vmul.f32 %v487, 0.015625
      %v489 = vadd.f32 %v488, 1e-05
      %v490 = vrsqrt.pop %v489
      %v491 = vmul.f32 %v490, %v489
      %v492 = vmul.f32 %v491, %v490
      %v493 = vmul.f32 0.5, %v492
      %v494 = vsub.f32 1.5, %v493
      %v495 = vmul.f32 %v490, %v494
      %vm496 = vweird.f32 %v489
      %vm497 = vweird.f32 %v490
      %vm498 = vmor %vm496, %vm497
      %v499 = vsel %vm498, %v490, %v495
      %v500 = vmul.f32 %v459, %v499
      %v501 = vmul.f32 %v460, %v499
      %v502 = vmul.f32 %v461, %v499
      %v503 = vmul.f32 %v462, %v499
      %v504 = vmul.f32 %v463, %v499
      %v505 = vmul.f32 %v464, %v499
      %v506 = vmul.f32 %v465, %v499
      %v507 = vmul.f32 %v466, %v499
      %v508 = vmax.f32 %v500, 0.0
      %v509 = vmax.f32 %v501, 0.0
      %v510 = vmax.f32 %v502, 0.0
      %v511 = vmax.f32 %v503, 0.0
      %v512 = vmax.f32 %v504, 0.0
      %v513 = vmax.f32 %v505, 0.0
      %v514 = vmax.f32 %v506, 0.0
      %v515 = vmax.f32 %v507, 0.0
      %v516 = vpack.c.bf16 %v508, %v508
      %v517 = vpack.c.bf16 %v509, %v509
      %v518 = vpack.c.bf16 %v510, %v510
      %v519 = vpack.c.bf16 %v511, %v511
      %v520 = vpack.c.bf16 %v512, %v512
      %v521 = vpack.c.bf16 %v513, %v513
      %v522 = vpack.c.bf16 %v514, %v514
      %v523 = vpack.c.bf16 %v515, %v515
      %524 = vst [vmem:[%s220] sm:$0xf] %v516
      %525 = vst [vmem:[%s220 + $0x4] sm:$0xf] %v517
      %526 = vst [vmem:[%s220 + $0x8] sm:$0xf] %v518
      %527 = vst [vmem:[%s220 + $0xc] sm:$0xf] %v519
      %528 = vst [vmem:[%s220 + $0x10] sm:$0xf] %v520
      %529 = vst [vmem:[%s220 + $0x14] sm:$0xf] %v521
      %530 = vst [vmem:[%s220 + $0x18] sm:$0xf] %v522
      %531 = vst [vmem:[%s220 + $0x1c] sm:$0xf] %v523
      %p532 = scmp.lt.s32.totalorder %s18, 1
      %s533 = scalar_select %p532, %s18, 1
      %s534 = smul.addr %s533, 8
      %s535 = smul.addr %s534, 4
      %s536 = scalar_lea.vmem %s3, %s535
      // Predicated region
      $region33: #{_lambda_.12} parent=31 // pred_check
        %p537 = pneg %p119
      $region34: #{_lambda_.12} parent=31 // pred_check_branch
        %539 = sbr.rel (%p537) target = $region36
      $region35: #{_lambda_.12} parent=31 // pred_region
        _
      $region36: #{_lambda_.12} parent=31 // pred_fallthru
        _
    $region32: #{_lambda_.12} parent=5 // pred_fallthru
      _
    %p540 = scmp.le.s32.totalorder 2, %s9
    // Predicated region
    $region37: #{_lambda_.12} parent=5 // pred_check
      %p541 = pneg %p540
    $region38: #{_lambda_.12} parent=5 // pred_check_branch
      %543 = sbr.rel (%p541) target = $region40
    $region39: #{_lambda_.12} parent=5 // pred_region
      %s544 = ssub.s32 %s9, 2
      // Predicated region
      $region41: #{_lambda_.12} parent=39 // pred_check
        %p545 = pneg %p125
      $region42: #{_lambda_.12} parent=39 // pred_check_branch
        %547 = sbr.rel (%p545) target = $region44
      $region43: #{_lambda_.12} parent=39 // pred_region
        %p548 = scmp.lt.s32.totalorder %s20, 1
        %s549 = scalar_select %p548, %s20, 1
        %s550 = smul.addr %s549, 8
        %s551 = smul.addr %s550, 4
        %s552 = scalar_lea.vmem %s3, %s551
      $region44: #{_lambda_.12} parent=39 // pred_fallthru
        _
    $region40: #{_lambda_.12} parent=5 // pred_fallthru
      _
  $region6: #{_lambda_.12} parent=0 // loop_footer
    %s13 = sadd.s32 1, %s9
  $region7: #{_lambda_.12} parent=0 // loop_footer_branch
    %8 = sbr.rel target = $region3
  $region8: #{_lambda_.12} parent=0 // loop_exit
    _

// kernel: _lambda_.13
$region0: #{_lambda_.13}
  #allocation0 [shape = 'u32[]', space=smem, size = 0x4, offset = 0x4, fixed_abs, tag = 'smem constant byte address 0x4 - core index']
  #allocation1 [shape = 'u32[72,128]{1,0:T(1,128)}', space=vmem, size = 0x9000, scoped, tag = 'internal scratch']
  %s0 = inlined_call_operand.vmem [shape: bf16[2,16,72], index: 0, kind: input, shape index: {}]
  %s1 = inlined_call_operand.vmem [shape: bf16[72,128], index: 1, kind: input, shape index: {}]
  %s2 = inlined_call_operand.vmem [shape: f32[1,128], index: 2, kind: input, shape index: {}]
  %s3 = inlined_call_operand.vmem [shape: bf16[2,16,128], index: 3, kind: output, shape index: {}]
  %s4 = sld [smem:[#allocation0]]
  $region45: #{_lambda_.13} parent=0
    _
  %s6 = ssub.s32 1, %s4
  %s7 = scalar_select 0, %s6, %s4
  loop: start=0, step=1, limit=4
  $region2: #{_lambda_.13} parent=0 // loop_pre_header
    _
  $region3: #{_lambda_.13} parent=0 // loop_header
    %s9 = sphi 0, %s13
    %p10 = scmp.ge.s32.totalorder %s9, 4
    %s16 = sphi 0, %s28
    %s17 = sphi 0, %s24
    %s18 = sphi 0, %s16
    %s19 = sphi 0, %s17
    %s20 = sphi 0, %s18
    %s21 = sphi 0, %s19
    %s33 = sphi 0, %s35
    %s36 = sphi 0, %s33
    %s37 = sphi 0, %s36
    %s53 = sphi 0, %s37
    %s59 = sphi 0, %s61
    %s62 = sphi 0, %s59
    %s63 = sphi 0, %s62
    %s79 = sphi 0, %s63
    %s83 = sphi 0, %s83
    %s85 = sphi 0, %s83
    %s86 = sphi 0, %s85
    %s100 = sphi 0, %s86
    %s106 = sphi 0, %s108
    %s109 = sphi 0, %s106
    %s110 = sphi 0, %s109
    %s126 = sphi 0, %s110
  $region4: #{_lambda_.13} parent=0 // loop_header_branch
    %12 = sbr.rel (%p10) target = $region8
  $region5: #{_lambda_.13} parent=0 // loop_body
    %s14 = ssub.s32 %s9, 1
    %s15 = ssub.s32 %s9, 2
    %s22 = sadd.s32 1, %s17
    %p23 = scmp.ge.s32.totalorder %s22, 1
    %s24 = scalar_select %p23, 0, %s22
    %s25 = sadd.s32 1, %s16
    %s26 = scalar_select %p23, %s25, %s16
    %p27 = scmp.ge.s32.totalorder %s26, 2
    %s28 = scalar_select %p27, 0, %s26
    %s29 = ssub.s32 %s16, %s28
    %s30 = ssub.s32 %s17, %s24
    %s31 = sor.u32 %s29, %s30
    %p32 = scmp.eq.s32.totalorder %s31, 0
    %s34 = sadd.s32 %s33, 1
    %s35 = scalar_select %p32, %s33, %s34
    %p38 = pneg %p32
    %p39 = scmp.eq.s32.totalorder %s9, 1
    %p40 = por %p38, %p39
    %p41 = scmp.ne.s32.totalorder %s33, %s36
    %p42 = scmp.eq.s32.totalorder %s9, 0
    %p43 = por %p41, %p42
    %p44 = scmp.ne.s32.totalorder %s33, %s36
    %p45 = scmp.eq.s32.totalorder %s14, 1
    %p46 = por %p44, %p45
    %p47 = scmp.ne.s32.totalorder %s36, %s37
    %p48 = scmp.eq.s32.totalorder %s14, 0
    %p49 = por %p47, %p48
    %p50 = scmp.ne.s32.totalorder %s36, %s37
    %p51 = scmp.eq.s32.totalorder %s15, 1
    %p52 = por %p50, %p51
    %p54 = scmp.ne.s32.totalorder %s37, %s53
    %p55 = scmp.eq.s32.totalorder %s15, 0
    %p56 = por %p54, %p55
    %s57 = ssub.s32 %s17, %s24
    %p58 = scmp.eq.s32.totalorder %s57, 0
    %s60 = sadd.s32 %s59, 1
    %s61 = scalar_select %p58, %s59, %s60
    %p64 = pneg %p58
    %p65 = scmp.eq.s32.totalorder %s9, 1
    %p66 = por %p64, %p65
    %p67 = scmp.ne.s32.totalorder %s59, %s62
    %p68 = scmp.eq.s32.totalorder %s9, 0
    %p69 = por %p67, %p68
    %p70 = scmp.ne.s32.totalorder %s59, %s62
    %p71 = scmp.eq.s32.totalorder %s14, 1
    %p72 = por %p70, %p71
    %p73 = scmp.ne.s32.totalorder %s62, %s63
    %p74 = scmp.eq.s32.totalorder %s14, 0
    %p75 = por %p73, %p74
    %p76 = scmp.ne.s32.totalorder %s62, %s63
    %p77 = scmp.eq.s32.totalorder %s15, 1
    %p78 = por %p76, %p77
    %p80 = scmp.ne.s32.totalorder %s63, %s79
    %p81 = scmp.eq.s32.totalorder %s15, 0
    %p82 = por %p80, %p81
    %s84 = sadd.s32 %s83, 1
    %p87 = scmp.eq.s32.totalorder %s9, 1
    %p88 = scmp.ne.s32.totalorder %s83, %s85
    %p89 = scmp.eq.s32.totalorder %s9, 0
    %p90 = por %p88, %p89
    %p91 = scmp.ne.s32.totalorder %s83, %s85
    %p92 = scmp.eq.s32.totalorder %s14, 1
    %p93 = por %p91, %p92
    %p94 = scmp.ne.s32.totalorder %s85, %s86
    %p95 = scmp.eq.s32.totalorder %s14, 0
    %p96 = por %p94, %p95
    %p97 = scmp.ne.s32.totalorder %s85, %s86
    %p98 = scmp.eq.s32.totalorder %s15, 1
    %p99 = por %p97, %p98
    %p101 = scmp.ne.s32.totalorder %s86, %s100
    %p102 = scmp.eq.s32.totalorder %s15, 0
    %p103 = por %p101, %p102
    %s104 = ssub.s32 %s16, %s28
    %p105 = scmp.eq.s32.totalorder %s104, 0
    %s107 = sadd.s32 %s106, 1
    %s108 = scalar_select %p105, %s106, %s107
    %p111 = pneg %p105
    %p112 = scmp.eq.s32.totalorder %s9, 1
    %p113 = por %p111, %p112
    %p114 = scmp.ne.s32.totalorder %s106, %s109
    %p115 = scmp.eq.s32.totalorder %s9, 0
    %p116 = por %p114, %p115
    %p117 = scmp.ne.s32.totalorder %s106, %s109
    %p118 = scmp.eq.s32.totalorder %s14, 1
    %p119 = por %p117, %p118
    %p120 = scmp.ne.s32.totalorder %s109, %s110
    %p121 = scmp.eq.s32.totalorder %s14, 0
    %p122 = por %p120, %p121
    %p123 = scmp.ne.s32.totalorder %s109, %s110
    %p124 = scmp.eq.s32.totalorder %s15, 1
    %p125 = por %p123, %p124
    %p127 = scmp.ne.s32.totalorder %s110, %s126
    %p128 = scmp.eq.s32.totalorder %s15, 0
    %p129 = por %p127, %p128
    %p130 = scmp.le.s32.totalorder 1, %s9
    %p131 = scmp.lt.s32.totalorder %s9, 3
    %p132 = pnand %p130, %p131
    %p133 = pneg %p132
    // Predicated region
    $region9: #{_lambda_.13} parent=5 // pred_check
      _
    $region10: #{_lambda_.13} parent=5 // pred_check_branch
      %135 = sbr.rel (%p132) target = $region12
    $region11: #{_lambda_.13} parent=5 // pred_region
      %s136 = ssub.s32 %s9, 1
      // Predicated region
      $region13: #{_lambda_.13} parent=11 // pred_check
        %p137 = pneg %p75
      $region14: #{_lambda_.13} parent=11 // pred_check_branch
        %139 = sbr.rel (%p137) target = $region16
      $region15: #{_lambda_.13} parent=11 // pred_region
        %s140 = smul.u32 9, %s19
        %p141 = scmp.lt.s32.totalorder %s140, 8
        %s142 = scalar_select %p141, %s140, 8
        %s143 = smul.addr %s142, 4
        %s144 = scalar_lea.vmem %s1, %s143
        %s145 = smul.u32 9, %s19
      $region16: #{_lambda_.13} parent=11 // pred_fallthru
        _
      // Predicated region
      $region17: #{_lambda_.13} parent=11 // pred_check
        %p146 = pneg %p96
      $region18: #{_lambda_.13} parent=11 // pred_check_branch
        %148 = sbr.rel (%p146) target = $region20
      $region19: #{_lambda_.13} parent=11 // pred_region
        _
      $region20: #{_lambda_.13} parent=11 // pred_fallthru
        _
    $region12: #{_lambda_.13} parent=5 // pred_fallthru
      _
    %p149 = scmp.lt.s32.totalorder %s9, 2
    // Predicated region
    $region21: #{_lambda_.13} parent=5 // pred_check
      %p150 = pneg %p149
    $region22: #{_lambda_.13} parent=5 // pred_check_branch
      %152 = sbr.rel (%p150) target = $region24
    $region23: #{_lambda_.13} parent=5 // pred_region
      // Predicated region
      $region25: #{_lambda_.13} parent=23 // pred_check
        %p153 = pneg %p43
      $region26: #{_lambda_.13} parent=23 // pred_check_branch
        %155 = sbr.rel (%p153) target = $region28
      $region27: #{_lambda_.13} parent=23 // pred_region
        %p156 = scmp.lt.s32.totalorder %s16, 1
        %s157 = scalar_select %p156, %s16, 1
        %p158 = scmp.lt.s32.totalorder %s17, 0
        %s159 = scalar_select %p158, %s17, 0
        %s160 = smul.addr %s157, 2
        %s161 = sadd.s32 %s159, %s160
        %s162 = smul.addr %s161, 4
        %s163 = scalar_lea.vmem %s0, %s162
      $region28: #{_lambda_.13} parent=23 // pred_fallthru
        _
    $region24: #{_lambda_.13} parent=5 // pred_fallthru
      _
    %p164 = scmp.le.s32.totalorder 1, %s9
    %p165 = scmp.lt.s32.totalorder %s9, 3
    %p166 = pnand %p164, %p165
    %p167 = pneg %p166
    // Predicated region
    $region29: #{_lambda_.13} parent=5 // pred_check
      _
    $region30: #{_lambda_.13} parent=5 // pred_check_branch
      %169 = sbr.rel (%p166) target = $region32
    $region31: #{_lambda_.13} parent=5 // pred_region
      %s170 = ssub.s32 %s9, 1
      %p171 = scmp.lt.s32.totalorder %s18, 1
      %s172 = scalar_select %p171, %s18, 1
      %p173 = scmp.lt.s32.totalorder %s19, 0
      %s174 = scalar_select %p173, %s19, 0
      %s175 = smul.addr %s172, 2
      %s176 = sadd.s32 %s174, %s175
      %s177 = smul.addr %s176, 4
      %s178 = scalar_lea.vmem %s0, %s177
      %p179 = pneg %p49
      %p180 = pneg %p46
      %s181 = smul.u32 9, %s19
      %p182 = scmp.lt.s32.totalorder %s181, 8
      %s183 = scalar_select %p182, %s181, 8
      %s184 = smul.addr %s183, 4
      %s185 = scalar_lea.vmem %s1, %s184
      %p186 = pneg %p75
      %p187 = pneg %p72
      %p188 = pneg %p96
      %p189 = pneg %p93
      %p190 = pneg %p122
      %p191 = pneg %p119
      %p192 = scmp.lt.s32.totalorder %s18, 1
      %s193 = scalar_select %p192, %s18, 1
      %s194 = smul.addr %s193, 2
      %s195 = smul.addr %s194, 4
      %s196 = scalar_lea.vmem %s3, %s195
      %p197 = scmp.lt.s32.totalorder %s18, 1
      %s198 = scalar_select %p197, %s18, 1
      %p199 = scmp.lt.s32.totalorder %s19, 0
      %s200 = scalar_select %p199, %s19, 0
      %s201 = smul.addr %s198, 2
      %s202 = sadd.s32 %s200, %s201
      %s203 = smul.addr %s202, 4
      %s204 = scalar_lea.vmem %s0, %s203
      %s205 = smul.u32 9, %s19
      %p206 = scmp.lt.s32.totalorder %s205, 8
      %s207 = scalar_select %p206, %s205, 8
      %s208 = smul.addr %s207, 4
      %s209 = scalar_lea.vmem %s1, %s208
      %s210 = smul.u32 9, %s19
      %p211 = scmp.lt.s32.totalorder %s18, 1
      %s212 = scalar_select %p211, %s18, 1
      %s213 = smul.addr %s212, 2
      %s214 = smul.addr %s213, 4
      %s215 = scalar_lea.vmem %s3, %s214
      %v217 = vld [vmem:[%s204] sm:$0xf]
      %v218 = vld [vmem:[%s204 + $0x4] sm:$0xf]
      %v219 = vld [vmem:[%s209] sm:$0xf]
      %v220 = vld [vmem:[%s209 + $0x4] sm:$0xf]
      %v221 = vld [vmem:[%s209 + $0x8] sm:$0xf]
      %v222 = vld [vmem:[%s209 + $0xc] sm:$0xf]
      %v223 = vld [vmem:[%s209 + $0x10] sm:$0xf]
      %v224 = vld [vmem:[%s209 + $0x14] sm:$0xf]
      %v225 = vld [vmem:[%s209 + $0x18] sm:$0xf]
      %v226 = vld [vmem:[%s209 + $0x1c] sm:$0xf]
      %v227 = vld [vmem:[%s209 + $0x20] sm:$0xf]
      %v228 = vld [vmem:[%s2] sm:$0x1]
      %v230 = vperm.slane %v228, 0
      %v234 = vunpack.c.l.b16 %v217
      %v235 = vunpack.c.l.b16 %v218
      %v236 = vpack.c.b16 %v235, %v234
      %v246 = vunpack.c.l.b16 %v219
      %v247 = vunpack.c.l.b16 %v220
      %v248 = vunpack.c.l.b16 %v221
      %v249 = vunpack.c.l.b16 %v222
      %v250 = vunpack.c.l.b16 %v223
      %v251 = vunpack.c.l.b16 %v224
      %v252 = vunpack.c.l.b16 %v225
      %v253 = vunpack.c.l.b16 %v226
      %v254 = vunpack.c.l.b16 %v227
      %v255 = vpack.c.b16 %v247, %v246
      %v256 = vpack.c.b16 %v249, %v248
      %v257 = vpack.c.b16 %v251, %v250
      %v258 = vpack.c.b16 %v253, %v252
      %v259 = vpack.c.b16 %v254, %v254
      %vm264 = vcmask 588800
      %v266 = vsel %vm264, %v236, 0
      %vm268 = vcmask 1043456
      %v270 = vsel %vm268, %v259, 0
      %272 = vmatpush.bf16.msra.mxu0 0
      %273 = vmatpush.bf16.msra.mxu0 0
      %274 = vmatpush.bf16.msra.mxu0 0
      %275 = vmatpush.bf16.msra.mxu0 %v270
      %276 = vmatpush.bf16.msra.mxu0 %v258
      %277 = vmatpush.bf16.msra.mxu0 %v257
      %278 = vmatpush.bf16.msra.mxu0 %v256
      %279 = vmatpush.bf16.msra.mxu0 %v255
      %280 = vmatmul.bf16.gmra.mxu0 %v266
      %v281 = vpop.f32.mrf.mxu0
      %v282 = vadd.f32 %v230, %v281
      %v283 = vpop.f32.mrf.mxu0
      %v284 = vadd.f32 %v230, %v283
      %285 = vdwg.mxu0
      %v286 = vadd.f32 %v282, %v284
      %v287 = vrot.slane %v286, 4
      %v288 = vadd.f32 %v286, %v287
      %v289 = vrot.slane %v288, 2
      %v290 = vadd.f32 %v288, %v289
      %v291 = vrot.slane %v290, 1
      %v292 = vadd.f32 %v290, %v291
      %v293 = vmul.f32 %v292, 0.0625
      %v294 = vsub.f32 %v282, %v293
      %v295 = vsub.f32 %v284, %v293
      %v296 = vmul.f32 %v294, %v294
      %v297 = vmul.f32 %v295, %v295
      %v298 = vadd.f32 %v296, %v297
      %v299 = vrot.slane %v298, 4
      %v300 = vadd.f32 %v298, %v299
      %v301 = vrot.slane %v300, 2
      %v302 = vadd.f32 %v300, %v301
      %v303 = vrot.slane %v302, 1
      %v304 = vadd.f32 %v302, %v303
      %v305 = vmul.f32 %v304, 0.0625
      %v306 = vadd.f32 %v305, 1e-05
      %v307 = vrsqrt.pop %v306
      %v308 = vmul.f32 %v307, %v306
      %v309 = vmul.f32 %v308, %v307
      %v310 = vmul.f32 0.5, %v309
      %v311 = vsub.f32 1.5, %v310
      %v312 = vmul.f32 %v307, %v311
      %vm313 = vweird.f32 %v306
      %vm314 = vweird.f32 %v307
      %vm315 = vmor %vm313, %vm314
      %v316 = vsel %vm315, %v307, %v312
      %v317 = vmul.f32 %v294, %v316
      %v318 = vmul.f32 %v295, %v316
      %v319 = vmax.f32 %v317, 0.0
      %v320 = vmax.f32 %v318, 0.0
      %v321 = vpack.c.bf16 %v319, %v319
      %v322 = vpack.c.bf16 %v320, %v320
      %323 = vst [vmem:[%s215] sm:$0xf] %v321
      %324 = vst [vmem:[%s215 + $0x4] sm:$0xf] %v322
      %p325 = scmp.lt.s32.totalorder %s18, 1
      %s326 = scalar_select %p325, %s18, 1
      %s327 = smul.addr %s326, 2
      %s328 = smul.addr %s327, 4
      %s329 = scalar_lea.vmem %s3, %s328
      // Predicated region
      $region33: #{_lambda_.13} parent=31 // pred_check
        %p330 = pneg %p119
      $region34: #{_lambda_.13} parent=31 // pred_check_branch
        %332 = sbr.rel (%p330) target = $region36
      $region35: #{_lambda_.13} parent=31 // pred_region
        _
      $region36: #{_lambda_.13} parent=31 // pred_fallthru
        _
    $region32: #{_lambda_.13} parent=5 // pred_fallthru
      _
    %p333 = scmp.le.s32.totalorder 2, %s9
    // Predicated region
    $region37: #{_lambda_.13} parent=5 // pred_check
      %p334 = pneg %p333
    $region38: #{_lambda_.13} parent=5 // pred_check_branch
      %336 = sbr.rel (%p334) target = $region40
    $region39: #{_lambda_.13} parent=5 // pred_region
      %s337 = ssub.s32 %s9, 2
      // Predicated region
      $region41: #{_lambda_.13} parent=39 // pred_check
        %p338 = pneg %p125
      $region42: #{_lambda_.13} parent=39 // pred_check_branch
        %340 = sbr.rel (%p338) target = $region44
      $region43: #{_lambda_.13} parent=39 // pred_region
        %p341 = scmp.lt.s32.totalorder %s20, 1
        %s342 = scalar_select %p341, %s20, 1
        %s343 = smul.addr %s342, 2
        %s344 = smul.addr %s343, 4
        %s345 = scalar_lea.vmem %s3, %s344
      $region44: #{_lambda_.13} parent=39 // pred_fallthru
        _
    $region40: #{_lambda_.13} parent=5 // pred_fallthru
      _
  $region6: #{_lambda_.13} parent=0 // loop_footer
    %s13 = sadd.s32 1, %s9
  $region7: #{_lambda_.13} parent=0 // loop_footer_branch
    %8 = sbr.rel target = $region3
  $region8: #{_lambda_.13} parent=0 // loop_exit
    _

// kernel: _lambda_.14
$region0: #{_lambda_.14}
  #allocation0 [shape = 'u32[]', space=smem, size = 0x4, offset = 0x4, fixed_abs, tag = 'smem constant byte address 0x4 - core index']
  #allocation1 [shape = 'u32[72,128]{1,0:T(1,128)}', space=vmem, size = 0x9000, scoped, tag = 'internal scratch']
  %s0 = inlined_call_operand.vmem [shape: bf16[2,8,144], index: 0, kind: input, shape index: {}]
  %s1 = inlined_call_operand.vmem [shape: bf16[144,128], index: 1, kind: input, shape index: {}]
  %s2 = inlined_call_operand.vmem [shape: f32[1,128], index: 2, kind: input, shape index: {}]
  %s3 = inlined_call_operand.vmem [shape: bf16[2,8,128], index: 3, kind: output, shape index: {}]
  %s4 = sld [smem:[#allocation0]]
  $region45: #{_lambda_.14} parent=0
    _
  %s6 = ssub.s32 1, %s4
  %s7 = scalar_select 0, %s6, %s4
  loop: start=0, step=1, limit=4
  $region2: #{_lambda_.14} parent=0 // loop_pre_header
    _
  $region3: #{_lambda_.14} parent=0 // loop_header
    %s9 = sphi 0, %s13
    %p10 = scmp.ge.s32.totalorder %s9, 4
    %s16 = sphi 0, %s28
    %s17 = sphi 0, %s24
    %s18 = sphi 0, %s16
    %s19 = sphi 0, %s17
    %s20 = sphi 0, %s18
    %s21 = sphi 0, %s19
    %s33 = sphi 0, %s35
    %s36 = sphi 0, %s33
    %s37 = sphi 0, %s36
    %s53 = sphi 0, %s37
    %s59 = sphi 0, %s61
    %s62 = sphi 0, %s59
    %s63 = sphi 0, %s62
    %s79 = sphi 0, %s63
    %s83 = sphi 0, %s83
    %s85 = sphi 0, %s83
    %s86 = sphi 0, %s85
    %s100 = sphi 0, %s86
    %s106 = sphi 0, %s108
    %s109 = sphi 0, %s106
    %s110 = sphi 0, %s109
    %s126 = sphi 0, %s110
  $region4: #{_lambda_.14} parent=0 // loop_header_branch
    %12 = sbr.rel (%p10) target = $region8
  $region5: #{_lambda_.14} parent=0 // loop_body
    %s14 = ssub.s32 %s9, 1
    %s15 = ssub.s32 %s9, 2
    %s22 = sadd.s32 1, %s17
    %p23 = scmp.ge.s32.totalorder %s22, 1
    %s24 = scalar_select %p23, 0, %s22
    %s25 = sadd.s32 1, %s16
    %s26 = scalar_select %p23, %s25, %s16
    %p27 = scmp.ge.s32.totalorder %s26, 2
    %s28 = scalar_select %p27, 0, %s26
    %s29 = ssub.s32 %s16, %s28
    %s30 = ssub.s32 %s17, %s24
    %s31 = sor.u32 %s29, %s30
    %p32 = scmp.eq.s32.totalorder %s31, 0
    %s34 = sadd.s32 %s33, 1
    %s35 = scalar_select %p32, %s33, %s34
    %p38 = pneg %p32
    %p39 = scmp.eq.s32.totalorder %s9, 1
    %p40 = por %p38, %p39
    %p41 = scmp.ne.s32.totalorder %s33, %s36
    %p42 = scmp.eq.s32.totalorder %s9, 0
    %p43 = por %p41, %p42
    %p44 = scmp.ne.s32.totalorder %s33, %s36
    %p45 = scmp.eq.s32.totalorder %s14, 1
    %p46 = por %p44, %p45
    %p47 = scmp.ne.s32.totalorder %s36, %s37
    %p48 = scmp.eq.s32.totalorder %s14, 0
    %p49 = por %p47, %p48
    %p50 = scmp.ne.s32.totalorder %s36, %s37
    %p51 = scmp.eq.s32.totalorder %s15, 1
    %p52 = por %p50, %p51
    %p54 = scmp.ne.s32.totalorder %s37, %s53
    %p55 = scmp.eq.s32.totalorder %s15, 0
    %p56 = por %p54, %p55
    %s57 = ssub.s32 %s17, %s24
    %p58 = scmp.eq.s32.totalorder %s57, 0
    %s60 = sadd.s32 %s59, 1
    %s61 = scalar_select %p58, %s59, %s60
    %p64 = pneg %p58
    %p65 = scmp.eq.s32.totalorder %s9, 1
    %p66 = por %p64, %p65
    %p67 = scmp.ne.s32.totalorder %s59, %s62
    %p68 = scmp.eq.s32.totalorder %s9, 0
    %p69 = por %p67, %p68
    %p70 = scmp.ne.s32.totalorder %s59, %s62
    %p71 = scmp.eq.s32.totalorder %s14, 1
    %p72 = por %p70, %p71
    %p73 = scmp.ne.s32.totalorder %s62, %s63
    %p74 = scmp.eq.s32.totalorder %s14, 0
    %p75 = por %p73, %p74
    %p76 = scmp.ne.s32.totalorder %s62, %s63
    %p77 = scmp.eq.s32.totalorder %s15, 1
    %p78 = por %p76, %p77
    %p80 = scmp.ne.s32.totalorder %s63, %s79
    %p81 = scmp.eq.s32.totalorder %s15, 0
    %p82 = por %p80, %p81
    %s84 = sadd.s32 %s83, 1
    %p87 = scmp.eq.s32.totalorder %s9, 1
    %p88 = scmp.ne.s32.totalorder %s83, %s85
    %p89 = scmp.eq.s32.totalorder %s9, 0
    %p90 = por %p88, %p89
    %p91 = scmp.ne.s32.totalorder %s83, %s85
    %p92 = scmp.eq.s32.totalorder %s14, 1
    %p93 = por %p91, %p92
    %p94 = scmp.ne.s32.totalorder %s85, %s86
    %p95 = scmp.eq.s32.totalorder %s14, 0
    %p96 = por %p94, %p95
    %p97 = scmp.ne.s32.totalorder %s85, %s86
    %p98 = scmp.eq.s32.totalorder %s15, 1
    %p99 = por %p97, %p98
    %p101 = scmp.ne.s32.totalorder %s86, %s100
    %p102 = scmp.eq.s32.totalorder %s15, 0
    %p103 = por %p101, %p102
    %s104 = ssub.s32 %s16, %s28
    %p105 = scmp.eq.s32.totalorder %s104, 0
    %s107 = sadd.s32 %s106, 1
    %s108 = scalar_select %p105, %s106, %s107
    %p111 = pneg %p105
    %p112 = scmp.eq.s32.totalorder %s9, 1
    %p113 = por %p111, %p112
    %p114 = scmp.ne.s32.totalorder %s106, %s109
    %p115 = scmp.eq.s32.totalorder %s9, 0
    %p116 = por %p114, %p115
    %p117 = scmp.ne.s32.totalorder %s106, %s109
    %p118 = scmp.eq.s32.totalorder %s14, 1
    %p119 = por %p117, %p118
    %p120 = scmp.ne.s32.totalorder %s109, %s110
    %p121 = scmp.eq.s32.totalorder %s14, 0
    %p122 = por %p120, %p121
    %p123 = scmp.ne.s32.totalorder %s109, %s110
    %p124 = scmp.eq.s32.totalorder %s15, 1
    %p125 = por %p123, %p124
    %p127 = scmp.ne.s32.totalorder %s110, %s126
    %p128 = scmp.eq.s32.totalorder %s15, 0
    %p129 = por %p127, %p128
    %p130 = scmp.le.s32.totalorder 1, %s9
    %p131 = scmp.lt.s32.totalorder %s9, 3
    %p132 = pnand %p130, %p131
    %p133 = pneg %p132
    // Predicated region
    $region9: #{_lambda_.14} parent=5 // pred_check
      _
    $region10: #{_lambda_.14} parent=5 // pred_check_branch
      %135 = sbr.rel (%p132) target = $region12
    $region11: #{_lambda_.14} parent=5 // pred_region
      %s136 = ssub.s32 %s9, 1
      // Predicated region
      $region13: #{_lambda_.14} parent=11 // pred_check
        %p137 = pneg %p75
      $region14: #{_lambda_.14} parent=11 // pred_check_branch
        %139 = sbr.rel (%p137) target = $region16
      $region15: #{_lambda_.14} parent=11 // pred_region
        %s140 = smul.u32 18, %s19
        %p141 = scmp.lt.s32.totalorder %s140, 17
        %s142 = scalar_select %p141, %s140, 17
        %s143 = smul.addr %s142, 4
        %s144 = scalar_lea.vmem %s1, %s143
        %s145 = smul.u32 18, %s19
      $region16: #{_lambda_.14} parent=11 // pred_fallthru
        _
      // Predicated region
      $region17: #{_lambda_.14} parent=11 // pred_check
        %p146 = pneg %p96
      $region18: #{_lambda_.14} parent=11 // pred_check_branch
        %148 = sbr.rel (%p146) target = $region20
      $region19: #{_lambda_.14} parent=11 // pred_region
        _
      $region20: #{_lambda_.14} parent=11 // pred_fallthru
        _
    $region12: #{_lambda_.14} parent=5 // pred_fallthru
      _
    %p149 = scmp.lt.s32.totalorder %s9, 2
    // Predicated region
    $region21: #{_lambda_.14} parent=5 // pred_check
      %p150 = pneg %p149
    $region22: #{_lambda_.14} parent=5 // pred_check_branch
      %152 = sbr.rel (%p150) target = $region24
    $region23: #{_lambda_.14} parent=5 // pred_region
      // Predicated region
      $region25: #{_lambda_.14} parent=23 // pred_check
        %p153 = pneg %p43
      $region26: #{_lambda_.14} parent=23 // pred_check_branch
        %155 = sbr.rel (%p153) target = $region28
      $region27: #{_lambda_.14} parent=23 // pred_region
        %s156 = smul.u32 2, %s17
        %p157 = scmp.lt.s32.totalorder %s16, 1
        %s158 = scalar_select %p157, %s16, 1
        %p159 = scmp.lt.s32.totalorder %s156, 1
        %s160 = scalar_select %p159, %s156, 1
        %s161 = smul.addr %s158, 2
        %s162 = sadd.s32 %s160, %s161
        %s163 = smul.addr %s162, 4
        %s164 = scalar_lea.vmem %s0, %s163
        %s165 = smul.u32 2, %s17
      $region28: #{_lambda_.14} parent=23 // pred_fallthru
        _
    $region24: #{_lambda_.14} parent=5 // pred_fallthru
      _
    %p166 = scmp.le.s32.totalorder 1, %s9
    %p167 = scmp.lt.s32.totalorder %s9, 3
    %p168 = pnand %p166, %p167
    %p169 = pneg %p168
    // Predicated region
    $region29: #{_lambda_.14} parent=5 // pred_check
      _
    $region30: #{_lambda_.14} parent=5 // pred_check_branch
      %171 = sbr.rel (%p168) target = $region32
    $region31: #{_lambda_.14} parent=5 // pred_region
      %s172 = ssub.s32 %s9, 1
      %s173 = smul.u32 2, %s19
      %p174 = scmp.lt.s32.totalorder %s18, 1
      %s175 = scalar_select %p174, %s18, 1
      %p176 = scmp.lt.s32.totalorder %s173, 1
      %s177 = scalar_select %p176, %s173, 1
      %s178 = smul.addr %s175, 2
      %s179 = sadd.s32 %s177, %s178
      %s180 = smul.addr %s179, 4
      %s181 = scalar_lea.vmem %s0, %s180
      %p182 = pneg %p49
      %p183 = pneg %p46
      %s184 = smul.u32 18, %s19
      %p185 = scmp.lt.s32.totalorder %s184, 17
      %s186 = scalar_select %p185, %s184, 17
      %s187 = smul.addr %s186, 4
      %s188 = scalar_lea.vmem %s1, %s187
      %p189 = pneg %p75
      %p190 = pneg %p72
      %p191 = pneg %p96
      %p192 = pneg %p93
      %p193 = pneg %p122
      %p194 = pneg %p119
      %p195 = scmp.lt.s32.totalorder %s18, 1
      %s196 = scalar_select %p195, %s18, 1
      %s197 = smul.addr %s196, 4
      %s198 = scalar_lea.vmem %s3, %s197
      %s199 = smul.u32 2, %s19
      %p200 = scmp.lt.s32.totalorder %s18, 1
      %s201 = scalar_select %p200, %s18, 1
      %p202 = scmp.lt.s32.totalorder %s199, 1
      %s203 = scalar_select %p202, %s199, 1
      %s204 = smul.addr %s201, 2
      %s205 = sadd.s32 %s203, %s204
      %s206 = smul.addr %s205, 4
      %s207 = scalar_lea.vmem %s0, %s206
      %s208 = smul.u32 2, %s19
      %s209 = smul.u32 18, %s19
      %p210 = scmp.lt.s32.totalorder %s209, 17
      %s211 = scalar_select %p210, %s209, 17
      %s212 = smul.addr %s211, 4
      %s213 = scalar_lea.vmem %s1, %s212
      %s214 = smul.u32 18, %s19
      %p215 = scmp.lt.s32.totalorder %s18, 1
      %s216 = scalar_select %p215, %s18, 1
      %s217 = smul.addr %s216, 4
      %s218 = scalar_lea.vmem %s3, %s217
      %v220 = vld [vmem:[%s207] sm:$0xff]
      %v221 = vld [vmem:[%s213] sm:$0xf]
      %v222 = vld [vmem:[%s213 + $0x4] sm:$0xf]
      %v223 = vld [vmem:[%s213 + $0x8] sm:$0xf]
      %v224 = vld [vmem:[%s213 + $0xc] sm:$0xf]
      %v225 = vld [vmem:[%s213 + $0x10] sm:$0xf]
      %v226 = vld [vmem:[%s213 + $0x14] sm:$0xf]
      %v227 = vld [vmem:[%s213 + $0x18] sm:$0xf]
      %v228 = vld [vmem:[%s213 + $0x1c] sm:$0xf]
      %v229 = vld [vmem:[%s213 + $0x20] sm:$0xf]
      %v230 = vld [vmem:[%s213 + $0x24] sm:$0xf]
      %v231 = vld [vmem:[%s213 + $0x28] sm:$0xf]
      %v232 = vld [vmem:[%s213 + $0x2c] sm:$0xf]
      %v233 = vld [vmem:[%s213 + $0x30] sm:$0xf]
      %v234 = vld [vmem:[%s213 + $0x34] sm:$0xf]
      %v235 = vld [vmem:[%s213 + $0x38] sm:$0xf]
      %v236 = vld [vmem:[%s213 + $0x3c] sm:$0xf]
      %v237 = vld [vmem:[%s213 + $0x40] sm:$0xf]
      %v238 = vld [vmem:[%s213 + $0x44] sm:$0xf]
      %v239 = vld [vmem:[%s2] sm:$0x1]
      %v241 = vperm.slane %v239, 0
      %v244 = vunpack.c.l.b16 %v220
      %v245 = vunpack.c.h.b16 %v220
      %v246 = vpack.c.b16 %v244, %v244
      %v247 = vpack.c.b16 %v245, %v245
      %v267 = vunpack.c.l.b16 %v221
      %v268 = vunpack.c.l.b16 %v222
      %v269 = vunpack.c.l.b16 %v223
      %v270 = vunpack.c.l.b16 %v224
      %v271 = vunpack.c.l.b16 %v225
      %v272 = vunpack.c.l.b16 %v226
      %v273 = vunpack.c.l.b16 %v227
      %v274 = vunpack.c.l.b16 %v228
      %v275 = vunpack.c.l.b16 %v229
      %v276 = vunpack.c.l.b16 %v230
      %v277 = vunpack.c.l.b16 %v231
      %v278 = vunpack.c.l.b16 %v232
      %v279 = vunpack.c.l.b16 %v233
      %v280 = vunpack.c.l.b16 %v234
      %v281 = vunpack.c.l.b16 %v235
      %v282 = vunpack.c.l.b16 %v236
      %v283 = vunpack.c.l.b16 %v237
      %v284 = vunpack.c.l.b16 %v238
      %v285 = vpack.c.b16 %v268, %v267
      %v286 = vpack.c.b16 %v270, %v269
      %v287 = vpack.c.b16 %v272, %v271
      %v288 = vpack.c.b16 %v274, %v273
      %v289 = vpack.c.b16 %v276, %v275
      %v290 = vpack.c.b16 %v278, %v277
      %v291 = vpack.c.b16 %v280, %v279
      %v292 = vpack.c.b16 %v282, %v281
      %v293 = vpack.c.b16 %v284, %v283
      %vm303 = vcmask 130048
      %v305 = vsel %vm303, %v247, 0
      %307 = vmatpush.bf16.msra.mxu0 %v292
      %308 = vmatpush.bf16.msra.mxu0 %v291
      %309 = vmatpush.bf16.msra.mxu0 %v290
      %310 = vmatpush.bf16.msra.mxu0 %v289
      %311 = vmatpush.bf16.msra.mxu0 %v288
      %312 = vmatpush.bf16.msra.mxu0 %v287
      %313 = vmatpush.bf16.msra.mxu0 %v286
      %314 = vmatpush.bf16.msra.mxu0 %v285
      %315 = vmatmul.bf16.gmra.mxu0 %v246
      %v316 = vpop.f32.mrf.mxu0
      %v317 = vadd.f32 %v241, %v316
      %v318 = vpop.f32.mrf.mxu0
      %319 = vdwg.mxu0
      %320 = vmatpush.bf16.msra.mxu0 0
      %321 = vmatpush.bf16.msra.mxu0 0
      %322 = vmatpush.bf16.msra.mxu0 0
      %323 = vmatpush.bf16.msra.mxu0 0
      %324 = vmatpush.bf16.msra.mxu0 0
      %325 = vmatpush.bf16.msra.mxu0 0
      %326 = vmatpush.bf16.msra.mxu0 0
      %327 = vmatpush.bf16.msra.mxu0 %v293
      %328 = vmatmul.bf16.gmra.mxu0 %v305
      %v329 = vpop.f32.mrf.mxu0
      %v330 = vadd.f32 %v317, %v329
      %v331 = vpop.f32.mrf.mxu0
      %332 = vdwg.mxu0
      %v333 = vlaneseq
      %v334 = vshrl.u32 %v333, 7
      %vm335 = vcmp.lt.s32.totalorder %v334, 4
      %v336 = vsel %vm335, 1, 0
      %v337 = vcvt.s32.f32 %v336
      %v338 = vmul.f32 %v330, %v337
      %v339 = vrot.slane %v338, 4
      %v340 = vadd.f32 %v338, %v339
      %v341 = vrot.slane %v340, 2
      %v342 = vadd.f32 %v340, %v341
      %v343 = vrot.slane %v342, 1
      %v344 = vadd.f32 %v342, %v343
      %v345 = vmul.f32 %v344, 0.25
      %v346 = vsub.f32 %v330, %v345
      %v347 = vmul.f32 %v346, %v346
      %v348 = vmul.f32 %v347, %v337
      %v349 = vrot.slane %v348, 4
      %v350 = vadd.f32 %v348, %v349
      %v351 = vrot.slane %v350, 2
      %v352 = vadd.f32 %v350, %v351
      %v353 = vrot.slane %v352, 1
      %v354 = vadd.f32 %v352, %v353
      %v355 = vmul.f32 %v354, 0.25
      %v356 = vadd.f32 %v355, 1e-05
      %v357 = vrsqrt.pop %v356
      %v358 = vmul.f32 %v357, %v356
      %v359 = vmul.f32 %v358, %v357
      %v360 = vmul.f32 0.5, %v359
      %v361 = vsub.f32 1.5, %v360
      %v362 = vmul.f32 %v357, %v361
      %vm363 = vweird.f32 %v356
      %vm364 = vweird.f32 %v357
      %vm365 = vmor %vm363, %vm364
      %v366 = vsel %vm365, %v357, %v362
      %v367 = vmul.f32 %v346, %v366
      %v368 = vmax.f32 %v367, 0.0
      %v369 = vpack.c.bf16 %v368, %v368
      %370 = vst [vmem:[%s218] sm:$0xf] %v369
      %p371 = scmp.lt.s32.totalorder %s18, 1
      %s372 = scalar_select %p371, %s18, 1
      %s373 = smul.addr %s372, 4
      %s374 = scalar_lea.vmem %s3, %s373
      // Predicated region
      $region33: #{_lambda_.14} parent=31 // pred_check
        %p375 = pneg %p119
      $region34: #{_lambda_.14} parent=31 // pred_check_branch
        %377 = sbr.rel (%p375) target = $region36
      $region35: #{_lambda_.14} parent=31 // pred_region
        _
      $region36: #{_lambda_.14} parent=31 // pred_fallthru
        _
    $region32: #{_lambda_.14} parent=5 // pred_fallthru
      _
    %p378 = scmp.le.s32.totalorder 2, %s9
    // Predicated region
    $region37: #{_lambda_.14} parent=5 // pred_check
      %p379 = pneg %p378
    $region38: #{_lambda_.14} parent=5 // pred_check_branch
      %381 = sbr.rel (%p379) target = $region40
    $region39: #{_lambda_.14} parent=5 // pred_region
      %s382 = ssub.s32 %s9, 2
      // Predicated region
      $region41: #{_lambda_.14} parent=39 // pred_check
        %p383 = pneg %p125
      $region42: #{_lambda_.14} parent=39 // pred_check_branch
        %385 = sbr.rel (%p383) target = $region44
      $region43: #{_lambda_.14} parent=39 // pred_region
        %p386 = scmp.lt.s32.totalorder %s20, 1
        %s387 = scalar_select %p386, %s20, 1
        %s388 = smul.addr %s387, 4
        %s389 = scalar_lea.vmem %s3, %s388
      $region44: #{_lambda_.14} parent=39 // pred_fallthru
        _
    $region40: #{_lambda_.14} parent=5 // pred_fallthru
      _
  $region6: #{_lambda_.14} parent=0 // loop_footer
    %s13 = sadd.s32 1, %s9
  $region7: #{_lambda_.14} parent=0 // loop_footer_branch
    %8 = sbr.rel target = $region3
  $region8: #{_lambda_.14} parent=0 // loop_exit
    _

// kernel: _lambda_.15
$region0: #{_lambda_.15}
  #allocation0 [shape = 'u32[]', space=smem, size = 0x4, offset = 0x4, fixed_abs, tag = 'smem constant byte address 0x4 - core index']
  #allocation1 [shape = 'u32[72,128]{1,0:T(1,128)}', space=vmem, size = 0x9000, scoped, tag = 'internal scratch']
  %s0 = inlined_call_operand.vmem [shape: bf16[2,8,288], index: 0, kind: input, shape index: {}]
  %s1 = inlined_call_operand.vmem [shape: bf16[288,128], index: 1, kind: input, shape index: {}]
  %s2 = inlined_call_operand.vmem [shape: f32[1,128], index: 2, kind: input, shape index: {}]
  %s3 = inlined_call_operand.vmem [shape: bf16[2,8,128], index: 3, kind: output, shape index: {}]
  %s4 = sld [smem:[#allocation0]]
  $region45: #{_lambda_.15} parent=0
    _
  %s6 = ssub.s32 1, %s4
  %s7 = scalar_select 0, %s6, %s4
  loop: start=0, step=1, limit=4
  $region2: #{_lambda_.15} parent=0 // loop_pre_header
    _
  $region3: #{_lambda_.15} parent=0 // loop_header
    %s9 = sphi 0, %s13
    %p10 = scmp.ge.s32.totalorder %s9, 4
    %s16 = sphi 0, %s28
    %s17 = sphi 0, %s24
    %s18 = sphi 0, %s16
    %s19 = sphi 0, %s17
    %s20 = sphi 0, %s18
    %s21 = sphi 0, %s19
    %s33 = sphi 0, %s35
    %s36 = sphi 0, %s33
    %s37 = sphi 0, %s36
    %s53 = sphi 0, %s37
    %s59 = sphi 0, %s61
    %s62 = sphi 0, %s59
    %s63 = sphi 0, %s62
    %s79 = sphi 0, %s63
    %s83 = sphi 0, %s83
    %s85 = sphi 0, %s83
    %s86 = sphi 0, %s85
    %s100 = sphi 0, %s86
    %s106 = sphi 0, %s108
    %s109 = sphi 0, %s106
    %s110 = sphi 0, %s109
    %s126 = sphi 0, %s110
  $region4: #{_lambda_.15} parent=0 // loop_header_branch
    %12 = sbr.rel (%p10) target = $region8
  $region5: #{_lambda_.15} parent=0 // loop_body
    %s14 = ssub.s32 %s9, 1
    %s15 = ssub.s32 %s9, 2
    %s22 = sadd.s32 1, %s17
    %p23 = scmp.ge.s32.totalorder %s22, 1
    %s24 = scalar_select %p23, 0, %s22
    %s25 = sadd.s32 1, %s16
    %s26 = scalar_select %p23, %s25, %s16
    %p27 = scmp.ge.s32.totalorder %s26, 2
    %s28 = scalar_select %p27, 0, %s26
    %s29 = ssub.s32 %s16, %s28
    %s30 = ssub.s32 %s17, %s24
    %s31 = sor.u32 %s29, %s30
    %p32 = scmp.eq.s32.totalorder %s31, 0
    %s34 = sadd.s32 %s33, 1
    %s35 = scalar_select %p32, %s33, %s34
    %p38 = pneg %p32
    %p39 = scmp.eq.s32.totalorder %s9, 1
    %p40 = por %p38, %p39
    %p41 = scmp.ne.s32.totalorder %s33, %s36
    %p42 = scmp.eq.s32.totalorder %s9, 0
    %p43 = por %p41, %p42
    %p44 = scmp.ne.s32.totalorder %s33, %s36
    %p45 = scmp.eq.s32.totalorder %s14, 1
    %p46 = por %p44, %p45
    %p47 = scmp.ne.s32.totalorder %s36, %s37
    %p48 = scmp.eq.s32.totalorder %s14, 0
    %p49 = por %p47, %p48
    %p50 = scmp.ne.s32.totalorder %s36, %s37
    %p51 = scmp.eq.s32.totalorder %s15, 1
    %p52 = por %p50, %p51
    %p54 = scmp.ne.s32.totalorder %s37, %s53
    %p55 = scmp.eq.s32.totalorder %s15, 0
    %p56 = por %p54, %p55
    %s57 = ssub.s32 %s17, %s24
    %p58 = scmp.eq.s32.totalorder %s57, 0
    %s60 = sadd.s32 %s59, 1
    %s61 = scalar_select %p58, %s59, %s60
    %p64 = pneg %p58
    %p65 = scmp.eq.s32.totalorder %s9, 1
    %p66 = por %p64, %p65
    %p67 = scmp.ne.s32.totalorder %s59, %s62
    %p68 = scmp.eq.s32.totalorder %s9, 0
    %p69 = por %p67, %p68
    %p70 = scmp.ne.s32.totalorder %s59, %s62
    %p71 = scmp.eq.s32.totalorder %s14, 1
    %p72 = por %p70, %p71
    %p73 = scmp.ne.s32.totalorder %s62, %s63
    %p74 = scmp.eq.s32.totalorder %s14, 0
    %p75 = por %p73, %p74
    %p76 = scmp.ne.s32.totalorder %s62, %s63
    %p77 = scmp.eq.s32.totalorder %s15, 1
    %p78 = por %p76, %p77
    %p80 = scmp.ne.s32.totalorder %s63, %s79
    %p81 = scmp.eq.s32.totalorder %s15, 0
    %p82 = por %p80, %p81
    %s84 = sadd.s32 %s83, 1
    %p87 = scmp.eq.s32.totalorder %s9, 1
    %p88 = scmp.ne.s32.totalorder %s83, %s85
    %p89 = scmp.eq.s32.totalorder %s9, 0
    %p90 = por %p88, %p89
    %p91 = scmp.ne.s32.totalorder %s83, %s85
    %p92 = scmp.eq.s32.totalorder %s14, 1
    %p93 = por %p91, %p92
    %p94 = scmp.ne.s32.totalorder %s85, %s86
    %p95 = scmp.eq.s32.totalorder %s14, 0
    %p96 = por %p94, %p95
    %p97 = scmp.ne.s32.totalorder %s85, %s86
    %p98 = scmp.eq.s32.totalorder %s15, 1
    %p99 = por %p97, %p98
    %p101 = scmp.ne.s32.totalorder %s86, %s100
    %p102 = scmp.eq.s32.totalorder %s15, 0
    %p103 = por %p101, %p102
    %s104 = ssub.s32 %s16, %s28
    %p105 = scmp.eq.s32.totalorder %s104, 0
    %s107 = sadd.s32 %s106, 1
    %s108 = scalar_select %p105, %s106, %s107
    %p111 = pneg %p105
    %p112 = scmp.eq.s32.totalorder %s9, 1
    %p113 = por %p111, %p112
    %p114 = scmp.ne.s32.totalorder %s106, %s109
    %p115 = scmp.eq.s32.totalorder %s9, 0
    %p116 = por %p114, %p115
    %p117 = scmp.ne.s32.totalorder %s106, %s109
    %p118 = scmp.eq.s32.totalorder %s14, 1
    %p119 = por %p117, %p118
    %p120 = scmp.ne.s32.totalorder %s109, %s110
    %p121 = scmp.eq.s32.totalorder %s14, 0
    %p122 = por %p120, %p121
    %p123 = scmp.ne.s32.totalorder %s109, %s110
    %p124 = scmp.eq.s32.totalorder %s15, 1
    %p125 = por %p123, %p124
    %p127 = scmp.ne.s32.totalorder %s110, %s126
    %p128 = scmp.eq.s32.totalorder %s15, 0
    %p129 = por %p127, %p128
    %p130 = scmp.le.s32.totalorder 1, %s9
    %p131 = scmp.lt.s32.totalorder %s9, 3
    %p132 = pnand %p130, %p131
    %p133 = pneg %p132
    // Predicated region
    $region9: #{_lambda_.15} parent=5 // pred_check
      _
    $region10: #{_lambda_.15} parent=5 // pred_check_branch
      %135 = sbr.rel (%p132) target = $region12
    $region11: #{_lambda_.15} parent=5 // pred_region
      %s136 = ssub.s32 %s9, 1
      // Predicated region
      $region13: #{_lambda_.15} parent=11 // pred_check
        %p137 = pneg %p75
      $region14: #{_lambda_.15} parent=11 // pred_check_branch
        %139 = sbr.rel (%p137) target = $region16
      $region15: #{_lambda_.15} parent=11 // pred_region
        %s140 = smul.u32 36, %s19
        %p141 = scmp.lt.s32.totalorder %s140, 35
        %s142 = scalar_select %p141, %s140, 35
        %s143 = smul.addr %s142, 4
        %s144 = scalar_lea.vmem %s1, %s143
        %s145 = smul.u32 36, %s19
      $region16: #{_lambda_.15} parent=11 // pred_fallthru
        _
      // Predicated region
      $region17: #{_lambda_.15} parent=11 // pred_check
        %p146 = pneg %p96
      $region18: #{_lambda_.15} parent=11 // pred_check_branch
        %148 = sbr.rel (%p146) target = $region20
      $region19: #{_lambda_.15} parent=11 // pred_region
        _
      $region20: #{_lambda_.15} parent=11 // pred_fallthru
        _
    $region12: #{_lambda_.15} parent=5 // pred_fallthru
      _
    %p149 = scmp.lt.s32.totalorder %s9, 2
    // Predicated region
    $region21: #{_lambda_.15} parent=5 // pred_check
      %p150 = pneg %p149
    $region22: #{_lambda_.15} parent=5 // pred_check_branch
      %152 = sbr.rel (%p150) target = $region24
    $region23: #{_lambda_.15} parent=5 // pred_region
      // Predicated region
      $region25: #{_lambda_.15} parent=23 // pred_check
        %p153 = pneg %p43
      $region26: #{_lambda_.15} parent=23 // pred_check_branch
        %155 = sbr.rel (%p153) target = $region28
      $region27: #{_lambda_.15} parent=23 // pred_region
        %s156 = smul.u32 3, %s17
        %p157 = scmp.lt.s32.totalorder %s16, 1
        %s158 = scalar_select %p157, %s16, 1
        %p159 = scmp.lt.s32.totalorder %s156, 2
        %s160 = scalar_select %p159, %s156, 2
        %s161 = smul.addr %s158, 3
        %s162 = sadd.s32 %s160, %s161
        %s163 = smul.addr %s162, 4
        %s164 = scalar_lea.vmem %s0, %s163
        %s165 = smul.u32 3, %s17
      $region28: #{_lambda_.15} parent=23 // pred_fallthru
        _
    $region24: #{_lambda_.15} parent=5 // pred_fallthru
      _
    %p166 = scmp.le.s32.totalorder 1, %s9
    %p167 = scmp.lt.s32.totalorder %s9, 3
    %p168 = pnand %p166, %p167
    %p169 = pneg %p168
    // Predicated region
    $region29: #{_lambda_.15} parent=5 // pred_check
      _
    $region30: #{_lambda_.15} parent=5 // pred_check_branch
      %171 = sbr.rel (%p168) target = $region32
    $region31: #{_lambda_.15} parent=5 // pred_region
      %s172 = ssub.s32 %s9, 1
      %s173 = smul.u32 3, %s19
      %p174 = scmp.lt.s32.totalorder %s18, 1
      %s175 = scalar_select %p174, %s18, 1
      %p176 = scmp.lt.s32.totalorder %s173, 2
      %s177 = scalar_select %p176, %s173, 2
      %s178 = smul.addr %s175, 3
      %s179 = sadd.s32 %s177, %s178
      %s180 = smul.addr %s179, 4
      %s181 = scalar_lea.vmem %s0, %s180
      %p182 = pneg %p49
      %p183 = pneg %p46
      %s184 = smul.u32 36, %s19
      %p185 = scmp.lt.s32.totalorder %s184, 35
      %s186 = scalar_select %p185, %s184, 35
      %s187 = smul.addr %s186, 4
      %s188 = scalar_lea.vmem %s1, %s187
      %p189 = pneg %p75
      %p190 = pneg %p72
      %p191 = pneg %p96
      %p192 = pneg %p93
      %p193 = pneg %p122
      %p194 = pneg %p119
      %p195 = scmp.lt.s32.totalorder %s18, 1
      %s196 = scalar_select %p195, %s18, 1
      %s197 = smul.addr %s196, 4
      %s198 = scalar_lea.vmem %s3, %s197
      %s199 = smul.u32 3, %s19
      %p200 = scmp.lt.s32.totalorder %s18, 1
      %s201 = scalar_select %p200, %s18, 1
      %p202 = scmp.lt.s32.totalorder %s199, 2
      %s203 = scalar_select %p202, %s199, 2
      %s204 = smul.addr %s201, 3
      %s205 = sadd.s32 %s203, %s204
      %s206 = smul.addr %s205, 4
      %s207 = scalar_lea.vmem %s0, %s206
      %s208 = smul.u32 3, %s19
      %s209 = smul.u32 36, %s19
      %p210 = scmp.lt.s32.totalorder %s209, 35
      %s211 = scalar_select %p210, %s209, 35
      %s212 = smul.addr %s211, 4
      %s213 = scalar_lea.vmem %s1, %s212
      %s214 = smul.u32 36, %s19
      %p215 = scmp.lt.s32.totalorder %s18, 1
      %s216 = scalar_select %p215, %s18, 1
      %s217 = smul.addr %s216, 4
      %s218 = scalar_lea.vmem %s3, %s217
      %v220 = vld [vmem:[%s207] sm:$0xff]
      %v221 = vld [vmem:[%s207 + $0x8] sm:$0xf]
      %v222 = vld [vmem:[%s213] sm:$0xf]
      %v223 = vld [vmem:[%s213 + $0x4] sm:$0xf]
      %v224 = vld [vmem:[%s213 + $0x8] sm:$0xf]
      %v225 = vld [vmem:[%s213 + $0xc] sm:$0xf]
      %v226 = vld [vmem:[%s213 + $0x10] sm:$0xf]
      %v227 = vld [vmem:[%s213 + $0x14] sm:$0xf]
      %v228 = vld [vmem:[%s213 + $0x18] sm:$0xf]
      %v229 = vld [vmem:[%s213 + $0x1c] sm:$0xf]
      %v230 = vld [vmem:[%s213 + $0x20] sm:$0xf]
      %v231 = vld [vmem:[%s213 + $0x24] sm:$0xf]
      %v232 = vld [vmem:[%s213 + $0x28] sm:$0xf]
      %v233 = vld [vmem:[%s213 + $0x2c] sm:$0xf]
      %v234 = vld [vmem:[%s213 + $0x30] sm:$0xf]
      %v235 = vld [vmem:[%s213 + $0x34] sm:$0xf]
      %v236 = vld [vmem:[%s213 + $0x38] sm:$0xf]
      %v237 = vld [vmem:[%s213 + $0x3c] sm:$0xf]
      %v238 = vld [vmem:[%s213 + $0x40] sm:$0xf]
      %v239 = vld [vmem:[%s213 + $0x44] sm:$0xf]
      %v240 = vld [vmem:[%s213 + $0x48] sm:$0xf]
      %v241 = vld [vmem:[%s213 + $0x4c] sm:$0xf]
      %v242 = vld [vmem:[%s213 + $0x50] sm:$0xf]
      %v243 = vld [vmem:[%s213 + $0x54] sm:$0xf]
      %v244 = vld [vmem:[%s213 + $0x58] sm:$0xf]
      %v245 = vld [vmem:[%s213 + $0x5c] sm:$0xf]
      %v246 = vld [vmem:[%s213 + $0x60] sm:$0xf]
      %v247 = vld [vmem:[%s213 + $0x64] sm:$0xf]
      %v248 = vld [vmem:[%s213 + $0x68] sm:$0xf]
      %v249 = vld [vmem:[%s213 + $0x6c] sm:$0xf]
      %v250 = vld [vmem:[%s213 + $0x70] sm:$0xf]
      %v251 = vld [vmem:[%s213 + $0x74] sm:$0xf]
      %v252 = vld [vmem:[%s213 + $0x78] sm:$0xf]
      %v253 = vld [vmem:[%s213 + $0x7c] sm:$0xf]
      %v254 = vld [vmem:[%s213 + $0x80] sm:$0xf]
      %v255 = vld [vmem:[%s213 + $0x84] sm:$0xf]
      %v256 = vld [vmem:[%s213 + $0x88] sm:$0xf]
      %v257 = vld [vmem:[%s213 + $0x8c] sm:$0xf]
      %v258 = vld [vmem:[%s2] sm:$0x1]
      %v260 = vperm.slane %v258, 0
      %v264 = vunpack.c.l.b16 %v220
      %v265 = vunpack.c.h.b16 %v220
      %v266 = vunpack.c.l.b16 %v221
      %v267 = vpack.c.b16 %v264, %v264
      %v268 = vpack.c.b16 %v265, %v265
      %v269 = vpack.c.b16 %v266, %v266
      %v308 = vunpack.c.l.b16 %v222
      %v309 = vunpack.c.l.b16 %v223
      %v310 = vunpack.c.l.b16 %v224
      %v311 = vunpack.c.l.b16 %v225
      %v312 = vunpack.c.l.b16 %v226
      %v313 = vunpack.c.l.b16 %v227
      %v314 = vunpack.c.l.b16 %v228
      %v315 = vunpack.c.l.b16 %v229
      %v316 = vunpack.c.l.b16 %v230
      %v317 = vunpack.c.l.b16 %v231
      %v318 = vunpack.c.l.b16 %v232
      %v319 = vunpack.c.l.b16 %v233
      %v320 = vunpack.c.l.b16 %v234
      %v321 = vunpack.c.l.b16 %v235
      %v322 = vunpack.c.l.b16 %v236
      %v323 = vunpack.c.l.b16 %v237
      %v324 = vunpack.c.l.b16 %v238
      %v325 = vunpack.c.l.b16 %v239
      %v326 = vunpack.c.l.b16 %v240
      %v327 = vunpack.c.l.b16 %v241
      %v328 = vunpack.c.l.b16 %v242
      %v329 = vunpack.c.l.b16 %v243
      %v330 = vunpack.c.l.b16 %v244
      %v331 = vunpack.c.l.b16 %v245
      %v332 = vunpack.c.l.b16 %v246
      %v333 = vunpack.c.l.b16 %v247
      %v334 = vunpack.c.l.b16 %v248
      %v335 = vunpack.c.l.b16 %v249
      %v336 = vunpack.c.l.b16 %v250
      %v337 = vunpack.c.l.b16 %v251
      %v338 = vunpack.c.l.b16 %v252
      %v339 = vunpack.c.l.b16 %v253
      %v340 = vunpack.c.l.b16 %v254
      %v341 = vunpack.c.l.b16 %v255
      %v342 = vunpack.c.l.b16 %v256
      %v343 = vunpack.c.l.b16 %v257
      %v344 = vpack.c.b16 %v309, %v308
      %v345 = vpack.c.b16 %v311, %v310
      %v346 = vpack.c.b16 %v313, %v312
      %v347 = vpack.c.b16 %v315, %v314
      %v348 = vpack.c.b16 %v317, %v316
      %v349 = vpack.c.b16 %v319, %v318
      %v350 = vpack.c.b16 %v321, %v320
      %v351 = vpack.c.b16 %v323, %v322
      %v352 = vpack.c.b16 %v325, %v324
      %v353 = vpack.c.b16 %v327, %v326
      %v354 = vpack.c.b16 %v329, %v328
      %v355 = vpack.c.b16 %v331, %v330
      %v356 = vpack.c.b16 %v333, %v332
      %v357 = vpack.c.b16 %v335, %v334
      %v358 = vpack.c.b16 %v337, %v336
      %v359 = vpack.c.b16 %v339, %v338
      %v360 = vpack.c.b16 %v341, %v340
      %v361 = vpack.c.b16 %v343, %v342
      %vm380 = vcmask 261120
      %v382 = vsel %vm380, %v269, 0
      %384 = vmatpush.bf16.msra.mxu0 %v351
      %385 = vmatpush.bf16.msra.mxu0 %v350
      %386 = vmatpush.bf16.msra.mxu0 %v349
      %387 = vmatpush.bf16.msra.mxu0 %v348
      %388 = vmatpush.bf16.msra.mxu0 %v347
      %389 = vmatpush.bf16.msra.mxu0 %v346
      %390 = vmatpush.bf16.msra.mxu0 %v345
      %391 = vmatpush.bf16.msra.mxu0 %v344
      %392 = vmatmul.bf16.gmra.mxu0 %v267
      %v393 = vpop.f32.mrf.mxu0
      %v394 = vadd.f32 %v260, %v393
      %v395 = vpop.f32.mrf.mxu0
      %396 = vdwg.mxu0
      %397 = vmatpush.bf16.msra.mxu0 %v359
      %398 = vmatpush.bf16.msra.mxu0 %v358
      %399 = vmatpush.bf16.msra.mxu0 %v357
      %400 = vmatpush.bf16.msra.mxu0 %v356
      %401 = vmatpush.bf16.msra.mxu0 %v355
      %402 = vmatpush.bf16.msra.mxu0 %v354
      %403 = vmatpush.bf16.msra.mxu0 %v353
      %404 = vmatpush.bf16.msra.mxu0 %v352
      %405 = vmatmul.bf16.gmra.mxu0 %v268
      %v406 = vpop.f32.mrf.mxu0
      %v407 = vadd.f32 %v394, %v406
      %v408 = vpop.f32.mrf.mxu0
      %409 = vdwg.mxu0
      %410 = vmatpush.bf16.msra.mxu0 0
      %411 = vmatpush.bf16.msra.mxu0 0
      %412 = vmatpush.bf16.msra.mxu0 0
      %413 = vmatpush.bf16.msra.mxu0 0
      %414 = vmatpush.bf16.msra.mxu0 0
      %415 = vmatpush.bf16.msra.mxu0 0
      %416 = vmatpush.bf16.msra.mxu0 %v361
      %417 = vmatpush.bf16.msra.mxu0 %v360
      %418 = vmatmul.bf16.gmra.mxu0 %v382
      %v419 = vpop.f32.mrf.mxu0
      %v420 = vadd.f32 %v407, %v419
      %v421 = vpop.f32.mrf.mxu0
      %422 = vdwg.mxu0
      %v423 = vlaneseq
      %v424 = vshrl.u32 %v423, 7
      %vm425 = vcmp.lt.s32.totalorder %v424, 4
      %v426 = vsel %vm425, 1, 0
      %v427 = vcvt.s32.f32 %v426
      %v428 = vmul.f32 %v420, %v427
      %v429 = vrot.slane %v428, 4
      %v430 = vadd.f32 %v428, %v429
      %v431 = vrot.slane %v430, 2
      %v432 = vadd.f32 %v430, %v431
      %v433 = vrot.slane %v432, 1
      %v434 = vadd.f32 %v432, %v433
      %v435 = vmul.f32 %v434, 0.25
      %v436 = vsub.f32 %v420, %v435
      %v437 = vmul.f32 %v436, %v436
      %v438 = vmul.f32 %v437, %v427
      %v439 = vrot.slane %v438, 4
      %v440 = vadd.f32 %v438, %v439
      %v441 = vrot.slane %v440, 2
      %v442 = vadd.f32 %v440, %v441
      %v443 = vrot.slane %v442, 1
      %v444 = vadd.f32 %v442, %v443
      %v445 = vmul.f32 %v444, 0.25
      %v446 = vadd.f32 %v445, 1e-05
      %v447 = vrsqrt.pop %v446
      %v448 = vmul.f32 %v447, %v446
      %v449 = vmul.f32 %v448, %v447
      %v450 = vmul.f32 0.5, %v449
      %v451 = vsub.f32 1.5, %v450
      %v452 = vmul.f32 %v447, %v451
      %vm453 = vweird.f32 %v446
      %vm454 = vweird.f32 %v447
      %vm455 = vmor %vm453, %vm454
      %v456 = vsel %vm455, %v447, %v452
      %v457 = vmul.f32 %v436, %v456
      %v458 = vmax.f32 %v457, 0.0
      %v459 = vpack.c.bf16 %v458, %v458
      %460 = vst [vmem:[%s218] sm:$0xf] %v459
      %p461 = scmp.lt.s32.totalorder %s18, 1
      %s462 = scalar_select %p461, %s18, 1
      %s463 = smul.addr %s462, 4
      %s464 = scalar_lea.vmem %s3, %s463
      // Predicated region
      $region33: #{_lambda_.15} parent=31 // pred_check
        %p465 = pneg %p119
      $region34: #{_lambda_.15} parent=31 // pred_check_branch
        %467 = sbr.rel (%p465) target = $region36
      $region35: #{_lambda_.15} parent=31 // pred_region
        _
      $region36: #{_lambda_.15} parent=31 // pred_fallthru
        _
    $region32: #{_lambda_.15} parent=5 // pred_fallthru
      _
    %p468 = scmp.le.s32.totalorder 2, %s9
    // Predicated region
    $region37: #{_lambda_.15} parent=5 // pred_check
      %p469 = pneg %p468
    $region38: #{_lambda_.15} parent=5 // pred_check_branch
      %471 = sbr.rel (%p469) target = $region40
    $region39: #{_lambda_.15} parent=5 // pred_region
      %s472 = ssub.s32 %s9, 2
      // Predicated region
      $region41: #{_lambda_.15} parent=39 // pred_check
        %p473 = pneg %p125
      $region42: #{_lambda_.15} parent=39 // pred_check_branch
        %475 = sbr.rel (%p473) target = $region44
      $region43: #{_lambda_.15} parent=39 // pred_region
        %p476 = scmp.lt.s32.totalorder %s20, 1
        %s477 = scalar_select %p476, %s20, 1
        %s478 = smul.addr %s477, 4
        %s479 = scalar_lea.vmem %s3, %s478
      $region44: #{_lambda_.15} parent=39 // pred_fallthru
        _
    $region40: #{_lambda_.15} parent=5 // pred_fallthru
      _
  $region6: #{_lambda_.15} parent=0 // loop_footer
    %s13 = sadd.s32 1, %s9
  $region7: #{_lambda_.15} parent=0 // loop_footer_branch
    %8 = sbr.rel target = $region3
  $region8: #{_lambda_.15} parent=0 // loop_exit
    _

// kernel: _lambda_.16
$region0: #{_lambda_.16}
  #allocation0 [shape = 'u32[]', space=smem, size = 0x4, offset = 0x4, fixed_abs, tag = 'smem constant byte address 0x4 - core index']
  #allocation1 [shape = 'u32[72,128]{1,0:T(1,128)}', space=vmem, size = 0x9000, scoped, tag = 'internal scratch']
  %s0 = inlined_call_operand.vmem [shape: bf16[2,8,288], index: 0, kind: input, shape index: {}]
  %s1 = inlined_call_operand.vmem [shape: bf16[288,128], index: 1, kind: input, shape index: {}]
  %s2 = inlined_call_operand.vmem [shape: f32[1,128], index: 2, kind: input, shape index: {}]
  %s3 = inlined_call_operand.vmem [shape: bf16[2,8,128], index: 3, kind: input, shape index: {}]
  %s4 = inlined_call_operand.vmem [shape: bf16[2,8,128], index: 4, kind: output, shape index: {}]
  %s5 = sld [smem:[#allocation0]]
  $region49: #{_lambda_.16} parent=0
    _
  %s7 = ssub.s32 1, %s5
  %s8 = scalar_select 0, %s7, %s5
  loop: start=0, step=1, limit=4
  $region2: #{_lambda_.16} parent=0 // loop_pre_header
    _
  $region3: #{_lambda_.16} parent=0 // loop_header
    %s10 = sphi 0, %s14
    %p11 = scmp.ge.s32.totalorder %s10, 4
    %s17 = sphi 0, %s29
    %s18 = sphi 0, %s25
    %s19 = sphi 0, %s17
    %s20 = sphi 0, %s18
    %s21 = sphi 0, %s19
    %s22 = sphi 0, %s20
    %s34 = sphi 0, %s36
    %s37 = sphi 0, %s34
    %s38 = sphi 0, %s37
    %s54 = sphi 0, %s38
    %s60 = sphi 0, %s62
    %s63 = sphi 0, %s60
    %s64 = sphi 0, %s63
    %s80 = sphi 0, %s64
    %s84 = sphi 0, %s84
    %s86 = sphi 0, %s84
    %s87 = sphi 0, %s86
    %s101 = sphi 0, %s87
    %s107 = sphi 0, %s109
    %s110 = sphi 0, %s107
    %s111 = sphi 0, %s110
    %s127 = sphi 0, %s111
    %s133 = sphi 0, %s135
    %s136 = sphi 0, %s133
    %s137 = sphi 0, %s136
    %s153 = sphi 0, %s137
  $region4: #{_lambda_.16} parent=0 // loop_header_branch
    %13 = sbr.rel (%p11) target = $region8
  $region5: #{_lambda_.16} parent=0 // loop_body
    %s15 = ssub.s32 %s10, 1
    %s16 = ssub.s32 %s10, 2
    %s23 = sadd.s32 1, %s18
    %p24 = scmp.ge.s32.totalorder %s23, 1
    %s25 = scalar_select %p24, 0, %s23
    %s26 = sadd.s32 1, %s17
    %s27 = scalar_select %p24, %s26, %s17
    %p28 = scmp.ge.s32.totalorder %s27, 2
    %s29 = scalar_select %p28, 0, %s27
    %s30 = ssub.s32 %s17, %s29
    %s31 = ssub.s32 %s18, %s25
    %s32 = sor.u32 %s30, %s31
    %p33 = scmp.eq.s32.totalorder %s32, 0
    %s35 = sadd.s32 %s34, 1
    %s36 = scalar_select %p33, %s34, %s35
    %p39 = pneg %p33
    %p40 = scmp.eq.s32.totalorder %s10, 1
    %p41 = por %p39, %p40
    %p42 = scmp.ne.s32.totalorder %s34, %s37
    %p43 = scmp.eq.s32.totalorder %s10, 0
    %p44 = por %p42, %p43
    %p45 = scmp.ne.s32.totalorder %s34, %s37
    %p46 = scmp.eq.s32.totalorder %s15, 1
    %p47 = por %p45, %p46
    %p48 = scmp.ne.s32.totalorder %s37, %s38
    %p49 = scmp.eq.s32.totalorder %s15, 0
    %p50 = por %p48, %p49
    %p51 = scmp.ne.s32.totalorder %s37, %s38
    %p52 = scmp.eq.s32.totalorder %s16, 1
    %p53 = por %p51, %p52
    %p55 = scmp.ne.s32.totalorder %s38, %s54
    %p56 = scmp.eq.s32.totalorder %s16, 0
    %p57 = por %p55, %p56
    %s58 = ssub.s32 %s18, %s25
    %p59 = scmp.eq.s32.totalorder %s58, 0
    %s61 = sadd.s32 %s60, 1
    %s62 = scalar_select %p59, %s60, %s61
    %p65 = pneg %p59
    %p66 = scmp.eq.s32.totalorder %s10, 1
    %p67 = por %p65, %p66
    %p68 = scmp.ne.s32.totalorder %s60, %s63
    %p69 = scmp.eq.s32.totalorder %s10, 0
    %p70 = por %p68, %p69
    %p71 = scmp.ne.s32.totalorder %s60, %s63
    %p72 = scmp.eq.s32.totalorder %s15, 1
    %p73 = por %p71, %p72
    %p74 = scmp.ne.s32.totalorder %s63, %s64
    %p75 = scmp.eq.s32.totalorder %s15, 0
    %p76 = por %p74, %p75
    %p77 = scmp.ne.s32.totalorder %s63, %s64
    %p78 = scmp.eq.s32.totalorder %s16, 1
    %p79 = por %p77, %p78
    %p81 = scmp.ne.s32.totalorder %s64, %s80
    %p82 = scmp.eq.s32.totalorder %s16, 0
    %p83 = por %p81, %p82
    %s85 = sadd.s32 %s84, 1
    %p88 = scmp.eq.s32.totalorder %s10, 1
    %p89 = scmp.ne.s32.totalorder %s84, %s86
    %p90 = scmp.eq.s32.totalorder %s10, 0
    %p91 = por %p89, %p90
    %p92 = scmp.ne.s32.totalorder %s84, %s86
    %p93 = scmp.eq.s32.totalorder %s15, 1
    %p94 = por %p92, %p93
    %p95 = scmp.ne.s32.totalorder %s86, %s87
    %p96 = scmp.eq.s32.totalorder %s15, 0
    %p97 = por %p95, %p96
    %p98 = scmp.ne.s32.totalorder %s86, %s87
    %p99 = scmp.eq.s32.totalorder %s16, 1
    %p100 = por %p98, %p99
    %p102 = scmp.ne.s32.totalorder %s87, %s101
    %p103 = scmp.eq.s32.totalorder %s16, 0
    %p104 = por %p102, %p103
    %s105 = ssub.s32 %s17, %s29
    %p106 = scmp.eq.s32.totalorder %s105, 0
    %s108 = sadd.s32 %s107, 1
    %s109 = scalar_select %p106, %s107, %s108
    %p112 = pneg %p106
    %p113 = scmp.eq.s32.totalorder %s10, 1
    %p114 = por %p112, %p113
    %p115 = scmp.ne.s32.totalorder %s107, %s110
    %p116 = scmp.eq.s32.totalorder %s10, 0
    %p117 = por %p115, %p116
    %p118 = scmp.ne.s32.totalorder %s107, %s110
    %p119 = scmp.eq.s32.totalorder %s15, 1
    %p120 = por %p118, %p119
    %p121 = scmp.ne.s32.totalorder %s110, %s111
    %p122 = scmp.eq.s32.totalorder %s15, 0
    %p123 = por %p121, %p122
    %p124 = scmp.ne.s32.totalorder %s110, %s111
    %p125 = scmp.eq.s32.totalorder %s16, 1
    %p126 = por %p124, %p125
    %p128 = scmp.ne.s32.totalorder %s111, %s127
    %p129 = scmp.eq.s32.totalorder %s16, 0
    %p130 = por %p128, %p129
    %s131 = ssub.s32 %s17, %s29
    %p132 = scmp.eq.s32.totalorder %s131, 0
    %s134 = sadd.s32 %s133, 1
    %s135 = scalar_select %p132, %s133, %s134
    %p138 = pneg %p132
    %p139 = scmp.eq.s32.totalorder %s10, 1
    %p140 = por %p138, %p139
    %p141 = scmp.ne.s32.totalorder %s133, %s136
    %p142 = scmp.eq.s32.totalorder %s10, 0
    %p143 = por %p141, %p142
    %p144 = scmp.ne.s32.totalorder %s133, %s136
    %p145 = scmp.eq.s32.totalorder %s15, 1
    %p146 = por %p144, %p145
    %p147 = scmp.ne.s32.totalorder %s136, %s137
    %p148 = scmp.eq.s32.totalorder %s15, 0
    %p149 = por %p147, %p148
    %p150 = scmp.ne.s32.totalorder %s136, %s137
    %p151 = scmp.eq.s32.totalorder %s16, 1
    %p152 = por %p150, %p151
    %p154 = scmp.ne.s32.totalorder %s137, %s153
    %p155 = scmp.eq.s32.totalorder %s16, 0
    %p156 = por %p154, %p155
    %p157 = scmp.le.s32.totalorder 1, %s10
    %p158 = scmp.lt.s32.totalorder %s10, 3
    %p159 = pnand %p157, %p158
    %p160 = pneg %p159
    // Predicated region
    $region9: #{_lambda_.16} parent=5 // pred_check
      _
    $region10: #{_lambda_.16} parent=5 // pred_check_branch
      %162 = sbr.rel (%p159) target = $region12
    $region11: #{_lambda_.16} parent=5 // pred_region
      %s163 = ssub.s32 %s10, 1
      // Predicated region
      $region13: #{_lambda_.16} parent=11 // pred_check
        %p164 = pneg %p76
      $region14: #{_lambda_.16} parent=11 // pred_check_branch
        %166 = sbr.rel (%p164) target = $region16
      $region15: #{_lambda_.16} parent=11 // pred_region
        %s167 = smul.u32 36, %s20
        %p168 = scmp.lt.s32.totalorder %s167, 35
        %s169 = scalar_select %p168, %s167, 35
        %s170 = smul.addr %s169, 4
        %s171 = scalar_lea.vmem %s1, %s170
        %s172 = smul.u32 36, %s20
      $region16: #{_lambda_.16} parent=11 // pred_fallthru
        _
      // Predicated region
      $region17: #{_lambda_.16} parent=11 // pred_check
        %p173 = pneg %p97
      $region18: #{_lambda_.16} parent=11 // pred_check_branch
        %175 = sbr.rel (%p173) target = $region20
      $region19: #{_lambda_.16} parent=11 // pred_region
        _
      $region20: #{_lambda_.16} parent=11 // pred_fallthru
        _
    $region12: #{_lambda_.16} parent=5 // pred_fallthru
      _
    %p176 = scmp.lt.s32.totalorder %s10, 2
    // Predicated region
    $region21: #{_lambda_.16} parent=5 // pred_check
      %p177 = pneg %p176
    $region22: #{_lambda_.16} parent=5 // pred_check_branch
      %179 = sbr.rel (%p177) target = $region24
    $region23: #{_lambda_.16} parent=5 // pred_region
      // Predicated region
      $region25: #{_lambda_.16} parent=23 // pred_check
        %p180 = pneg %p44
      $region26: #{_lambda_.16} parent=23 // pred_check_branch
        %182 = sbr.rel (%p180) target = $region28
      $region27: #{_lambda_.16} parent=23 // pred_region
        %s183 = smul.u32 3, %s18
        %p184 = scmp.lt.s32.totalorder %s17, 1
        %s185 = scalar_select %p184, %s17, 1
        %p186 = scmp.lt.s32.totalorder %s183, 2
        %s187 = scalar_select %p186, %s183, 2
        %s188 = smul.addr %s185, 3
        %s189 = sadd.s32 %s187, %s188
        %s190 = smul.addr %s189, 4
        %s191 = scalar_lea.vmem %s0, %s190
        %s192 = smul.u32 3, %s18
      $region28: #{_lambda_.16} parent=23 // pred_fallthru
        _
      // Predicated region
      $region29: #{_lambda_.16} parent=23 // pred_check
        %p193 = pneg %p117
      $region30: #{_lambda_.16} parent=23 // pred_check_branch
        %195 = sbr.rel (%p193) target = $region32
      $region31: #{_lambda_.16} parent=23 // pred_region
        %p196 = scmp.lt.s32.totalorder %s17, 1
        %s197 = scalar_select %p196, %s17, 1
        %s198 = smul.addr %s197, 4
        %s199 = scalar_lea.vmem %s3, %s198
      $region32: #{_lambda_.16} parent=23 // pred_fallthru
        _
    $region24: #{_lambda_.16} parent=5 // pred_fallthru
      _
    %p200 = scmp.le.s32.totalorder 1, %s10
    %p201 = scmp.lt.s32.totalorder %s10, 3
    %p202 = pnand %p200, %p201
    %p203 = pneg %p202
    // Predicated region
    $region33: #{_lambda_.16} parent=5 // pred_check
      _
    $region34: #{_lambda_.16} parent=5 // pred_check_branch
      %205 = sbr.rel (%p202) target = $region36
    $region35: #{_lambda_.16} parent=5 // pred_region
      %s206 = ssub.s32 %s10, 1
      %s207 = smul.u32 3, %s20
      %p208 = scmp.lt.s32.totalorder %s19, 1
      %s209 = scalar_select %p208, %s19, 1
      %p210 = scmp.lt.s32.totalorder %s207, 2
      %s211 = scalar_select %p210, %s207, 2
      %s212 = smul.addr %s209, 3
      %s213 = sadd.s32 %s211, %s212
      %s214 = smul.addr %s213, 4
      %s215 = scalar_lea.vmem %s0, %s214
      %p216 = pneg %p50
      %p217 = pneg %p47
      %s218 = smul.u32 36, %s20
      %p219 = scmp.lt.s32.totalorder %s218, 35
      %s220 = scalar_select %p219, %s218, 35
      %s221 = smul.addr %s220, 4
      %s222 = scalar_lea.vmem %s1, %s221
      %p223 = pneg %p76
      %p224 = pneg %p73
      %p225 = pneg %p97
      %p226 = pneg %p94
      %p227 = scmp.lt.s32.totalorder %s19, 1
      %s228 = scalar_select %p227, %s19, 1
      %s229 = smul.addr %s228, 4
      %s230 = scalar_lea.vmem %s3, %s229
      %p231 = pneg %p123
      %p232 = pneg %p120
      %p233 = pneg %p149
      %p234 = pneg %p146
      %p235 = scmp.lt.s32.totalorder %s19, 1
      %s236 = scalar_select %p235, %s19, 1
      %s237 = smul.addr %s236, 4
      %s238 = scalar_lea.vmem %s4, %s237
      %s239 = smul.u32 3, %s20
      %p240 = scmp.lt.s32.totalorder %s19, 1
      %s241 = scalar_select %p240, %s19, 1
      %p242 = scmp.lt.s32.totalorder %s239, 2
      %s243 = scalar_select %p242, %s239, 2
      %s244 = smul.addr %s241, 3
      %s245 = sadd.s32 %s243, %s244
      %s246 = smul.addr %s245, 4
      %s247 = scalar_lea.vmem %s0, %s246
      %s248 = smul.u32 3, %s20
      %s249 = smul.u32 36, %s20
      %p250 = scmp.lt.s32.totalorder %s249, 35
      %s251 = scalar_select %p250, %s249, 35
      %s252 = smul.addr %s251, 4
      %s253 = scalar_lea.vmem %s1, %s252
      %s254 = smul.u32 36, %s20
      %p255 = scmp.lt.s32.totalorder %s19, 1
      %s256 = scalar_select %p255, %s19, 1
      %s257 = smul.addr %s256, 4
      %s258 = scalar_lea.vmem %s3, %s257
      %p259 = scmp.lt.s32.totalorder %s19, 1
      %s260 = scalar_select %p259, %s19, 1
      %s261 = smul.addr %s260, 4
      %s262 = scalar_lea.vmem %s4, %s261
      %v264 = vld [vmem:[%s247] sm:$0xff]
      %v265 = vld [vmem:[%s247 + $0x8] sm:$0xf]
      %v266 = vld [vmem:[%s253] sm:$0xf]
      %v267 = vld [vmem:[%s253 + $0x4] sm:$0xf]
      %v268 = vld [vmem:[%s253 + $0x8] sm:$0xf]
      %v269 = vld [vmem:[%s253 + $0xc] sm:$0xf]
      %v270 = vld [vmem:[%s253 + $0x10] sm:$0xf]
      %v271 = vld [vmem:[%s253 + $0x14] sm:$0xf]
      %v272 = vld [vmem:[%s253 + $0x18] sm:$0xf]
      %v273 = vld [vmem:[%s253 + $0x1c] sm:$0xf]
      %v274 = vld [vmem:[%s253 + $0x20] sm:$0xf]
      %v275 = vld [vmem:[%s253 + $0x24] sm:$0xf]
      %v276 = vld [vmem:[%s253 + $0x28] sm:$0xf]
      %v277 = vld [vmem:[%s253 + $0x2c] sm:$0xf]
      %v278 = vld [vmem:[%s253 + $0x30] sm:$0xf]
      %v279 = vld [vmem:[%s253 + $0x34] sm:$0xf]
      %v280 = vld [vmem:[%s253 + $0x38] sm:$0xf]
      %v281 = vld [vmem:[%s253 + $0x3c] sm:$0xf]
      %v282 = vld [vmem:[%s253 + $0x40] sm:$0xf]
      %v283 = vld [vmem:[%s253 + $0x44] sm:$0xf]
      %v284 = vld [vmem:[%s253 + $0x48] sm:$0xf]
      %v285 = vld [vmem:[%s253 + $0x4c] sm:$0xf]
      %v286 = vld [vmem:[%s253 + $0x50] sm:$0xf]
      %v287 = vld [vmem:[%s253 + $0x54] sm:$0xf]
      %v288 = vld [vmem:[%s253 + $0x58] sm:$0xf]
      %v289 = vld [vmem:[%s253 + $0x5c] sm:$0xf]
      %v290 = vld [vmem:[%s253 + $0x60] sm:$0xf]
      %v291 = vld [vmem:[%s253 + $0x64] sm:$0xf]
      %v292 = vld [vmem:[%s253 + $0x68] sm:$0xf]
      %v293 = vld [vmem:[%s253 + $0x6c] sm:$0xf]
      %v294 = vld [vmem:[%s253 + $0x70] sm:$0xf]
      %v295 = vld [vmem:[%s253 + $0x74] sm:$0xf]
      %v296 = vld [vmem:[%s253 + $0x78] sm:$0xf]
      %v297 = vld [vmem:[%s253 + $0x7c] sm:$0xf]
      %v298 = vld [vmem:[%s253 + $0x80] sm:$0xf]
      %v299 = vld [vmem:[%s253 + $0x84] sm:$0xf]
      %v300 = vld [vmem:[%s253 + $0x88] sm:$0xf]
      %v301 = vld [vmem:[%s253 + $0x8c] sm:$0xf]
      %v302 = vld [vmem:[%s2] sm:$0x1]
      %v304 = vperm.slane %v302, 0
      %v308 = vunpack.c.l.b16 %v264
      %v309 = vunpack.c.h.b16 %v264
      %v310 = vunpack.c.l.b16 %v265
      %v311 = vpack.c.b16 %v308, %v308
      %v312 = vpack.c.b16 %v309, %v309
      %v313 = vpack.c.b16 %v310, %v310
      %v352 = vunpack.c.l.b16 %v266
      %v353 = vunpack.c.l.b16 %v267
      %v354 = vunpack.c.l.b16 %v268
      %v355 = vunpack.c.l.b16 %v269
      %v356 = vunpack.c.l.b16 %v270
      %v357 = vunpack.c.l.b16 %v271
      %v358 = vunpack.c.l.b16 %v272
      %v359 = vunpack.c.l.b16 %v273
      %v360 = vunpack.c.l.b16 %v274
      %v361 = vunpack.c.l.b16 %v275
      %v362 = vunpack.c.l.b16 %v276
      %v363 = vunpack.c.l.b16 %v277
      %v364 = vunpack.c.l.b16 %v278
      %v365 = vunpack.c.l.b16 %v279
      %v366 = vunpack.c.l.b16 %v280
      %v367 = vunpack.c.l.b16 %v281
      %v368 = vunpack.c.l.b16 %v282
      %v369 = vunpack.c.l.b16 %v283
      %v370 = vunpack.c.l.b16 %v284
      %v371 = vunpack.c.l.b16 %v285
      %v372 = vunpack.c.l.b16 %v286
      %v373 = vunpack.c.l.b16 %v287
      %v374 = vunpack.c.l.b16 %v288
      %v375 = vunpack.c.l.b16 %v289
      %v376 = vunpack.c.l.b16 %v290
      %v377 = vunpack.c.l.b16 %v291
      %v378 = vunpack.c.l.b16 %v292
      %v379 = vunpack.c.l.b16 %v293
      %v380 = vunpack.c.l.b16 %v294
      %v381 = vunpack.c.l.b16 %v295
      %v382 = vunpack.c.l.b16 %v296
      %v383 = vunpack.c.l.b16 %v297
      %v384 = vunpack.c.l.b16 %v298
      %v385 = vunpack.c.l.b16 %v299
      %v386 = vunpack.c.l.b16 %v300
      %v387 = vunpack.c.l.b16 %v301
      %v388 = vpack.c.b16 %v353, %v352
      %v389 = vpack.c.b16 %v355, %v354
      %v390 = vpack.c.b16 %v357, %v356
      %v391 = vpack.c.b16 %v359, %v358
      %v392 = vpack.c.b16 %v361, %v360
      %v393 = vpack.c.b16 %v363, %v362
      %v394 = vpack.c.b16 %v365, %v364
      %v395 = vpack.c.b16 %v367, %v366
      %v396 = vpack.c.b16 %v369, %v368
      %v397 = vpack.c.b16 %v371, %v370
      %v398 = vpack.c.b16 %v373, %v372
      %v399 = vpack.c.b16 %v375, %v374
      %v400 = vpack.c.b16 %v377, %v376
      %v401 = vpack.c.b16 %v379, %v378
      %v402 = vpack.c.b16 %v381, %v380
      %v403 = vpack.c.b16 %v383, %v382
      %v404 = vpack.c.b16 %v385, %v384
      %v405 = vpack.c.b16 %v387, %v386
      %vm424 = vcmask 261120
      %v426 = vsel %vm424, %v313, 0
      %428 = vmatpush.bf16.msra.mxu0 %v395
      %429 = vmatpush.bf16.msra.mxu0 %v394
      %430 = vmatpush.bf16.msra.mxu0 %v393
      %431 = vmatpush.bf16.msra.mxu0 %v392
      %432 = vmatpush.bf16.msra.mxu0 %v391
      %433 = vmatpush.bf16.msra.mxu0 %v390
      %434 = vmatpush.bf16.msra.mxu0 %v389
      %435 = vmatpush.bf16.msra.mxu0 %v388
      %436 = vmatmul.bf16.gmra.mxu0 %v311
      %v437 = vpop.f32.mrf.mxu0
      %v438 = vadd.f32 %v304, %v437
      %v439 = vpop.f32.mrf.mxu0
      %440 = vdwg.mxu0
      %441 = vmatpush.bf16.msra.mxu0 %v403
      %442 = vmatpush.bf16.msra.mxu0 %v402
      %443 = vmatpush.bf16.msra.mxu0 %v401
      %444 = vmatpush.bf16.msra.mxu0 %v400
      %445 = vmatpush.bf16.msra.mxu0 %v399
      %446 = vmatpush.bf16.msra.mxu0 %v398
      %447 = vmatpush.bf16.msra.mxu0 %v397
      %448 = vmatpush.bf16.msra.mxu0 %v396
      %449 = vmatmul.bf16.gmra.mxu0 %v312
      %v450 = vpop.f32.mrf.mxu0
      %v451 = vadd.f32 %v438, %v450
      %v452 = vpop.f32.mrf.mxu0
      %453 = vdwg.mxu0
      %454 = vmatpush.bf16.msra.mxu0 0
      %455 = vmatpush.bf16.msra.mxu0 0
      %456 = vmatpush.bf16.msra.mxu0 0
      %457 = vmatpush.bf16.msra.mxu0 0
      %458 = vmatpush.bf16.msra.mxu0 0
      %459 = vmatpush.bf16.msra.mxu0 0
      %460 = vmatpush.bf16.msra.mxu0 %v405
      %461 = vmatpush.bf16.msra.mxu0 %v404
      %462 = vmatmul.bf16.gmra.mxu0 %v426
      %v463 = vpop.f32.mrf.mxu0
      %v464 = vadd.f32 %v451, %v463
      %v465 = vpop.f32.mrf.mxu0
      %466 = vdwg.mxu0
      %v467 = vld [vmem:[%s258] sm:$0xf]
      %v468 = vunpack.c.l.bf16 %v467
      %v469 = vlaneseq
      %v470 = vshrl.u32 %v469, 7
      %vm471 = vcmp.lt.s32.totalorder %v470, 4
      %v472 = vsel %vm471, 1, 0
      %v473 = vcvt.s32.f32 %v472
      %v474 = vmul.f32 %v464, %v473
      %v475 = vrot.slane %v474, 4
      %v476 = vadd.f32 %v474, %v475
      %v477 = vrot.slane %v476, 2
      %v478 = vadd.f32 %v476, %v477
      %v479 = vrot.slane %v478, 1
      %v480 = vadd.f32 %v478, %v479
      %v481 = vmul.f32 %v480, 0.25
      %v482 = vsub.f32 %v464, %v481
      %v483 = vmul.f32 %v482, %v482
      %v484 = vmul.f32 %v483, %v473
      %v485 = vrot.slane %v484, 4
      %v486 = vadd.f32 %v484, %v485
      %v487 = vrot.slane %v486, 2
      %v488 = vadd.f32 %v486, %v487
      %v489 = vrot.slane %v488, 1
      %v490 = vadd.f32 %v488, %v489
      %v491 = vmul.f32 %v490, 0.25
      %v492 = vadd.f32 %v491, 1e-05
      %v493 = vrsqrt.pop %v492
      %v494 = vmul.f32 %v493, %v492
      %v495 = vmul.f32 %v494, %v493
      %v496 = vmul.f32 0.5, %v495
      %v497 = vsub.f32 1.5, %v496
      %v498 = vmul.f32 %v493, %v497
      %vm499 = vweird.f32 %v492
      %vm500 = vweird.f32 %v493
      %vm501 = vmor %vm499, %vm500
      %v502 = vsel %vm501, %v493, %v498
      %v503 = vmul.f32 %v482, %v502
      %v504 = vadd.f32 %v503, %v468
      %v505 = vpack.c.bf16 %v504, %v504
      %506 = vst [vmem:[%s262] sm:$0xf] %v505
      %p507 = scmp.lt.s32.totalorder %s19, 1
      %s508 = scalar_select %p507, %s19, 1
      %s509 = smul.addr %s508, 4
      %s510 = scalar_lea.vmem %s4, %s509
      // Predicated region
      $region37: #{_lambda_.16} parent=35 // pred_check
        %p511 = pneg %p146
      $region38: #{_lambda_.16} parent=35 // pred_check_branch
        %513 = sbr.rel (%p511) target = $region40
      $region39: #{_lambda_.16} parent=35 // pred_region
        _
      $region40: #{_lambda_.16} parent=35 // pred_fallthru
        _
    $region36: #{_lambda_.16} parent=5 // pred_fallthru
      _
    %p514 = scmp.le.s32.totalorder 2, %s10
    // Predicated region
    $region41: #{_lambda_.16} parent=5 // pred_check
      %p515 = pneg %p514
    $region42: #{_lambda_.16} parent=5 // pred_check_branch
      %517 = sbr.rel (%p515) target = $region44
    $region43: #{_lambda_.16} parent=5 // pred_region
      %s518 = ssub.s32 %s10, 2
      // Predicated region
      $region45: #{_lambda_.16} parent=43 // pred_check
        %p519 = pneg %p152
      $region46: #{_lambda_.16} parent=43 // pred_check_branch
        %521 = sbr.rel (%p519) target = $region48
      $region47: #{_lambda_.16} parent=43 // pred_region
        %p522 = scmp.lt.s32.totalorder %s21, 1
        %s523 = scalar_select %p522, %s21, 1
        %s524 = smul.addr %s523, 4
        %s525 = scalar_lea.vmem %s4, %s524
      $region48: #{_lambda_.16} parent=43 // pred_fallthru
        _
    $region44: #{_lambda_.16} parent=5 // pred_fallthru
      _
  $region6: #{_lambda_.16} parent=0 // loop_footer
    %s14 = sadd.s32 1, %s10
  $region7: #{_lambda_.16} parent=0 // loop_footer_branch
    %9 = sbr.rel target = $region3
  $region8: #{_lambda_.16} parent=0 // loop_exit
    _

// kernel: _lambda_.19
$region0: #{_lambda_.19}
  #allocation0 [shape = 'u32[]', space=smem, size = 0x4, offset = 0x4, fixed_abs, tag = 'smem constant byte address 0x4 - core index']
  #allocation1 [shape = 'u32[72,128]{1,0:T(1,128)}', space=vmem, size = 0x9000, scoped, tag = 'internal scratch']
  %s0 = inlined_call_operand.vmem [shape: bf16[2,8,128], index: 0, kind: input, shape index: {}]
  %s1 = inlined_call_operand.vmem [shape: bf16[128,512], index: 1, kind: input, shape index: {}]
  %s2 = inlined_call_operand.vmem [shape: f32[1,512], index: 2, kind: input, shape index: {}]
  %s3 = inlined_call_operand.vmem [shape: bf16[2,8,512], index: 3, kind: output, shape index: {}]
  %s4 = sld [smem:[#allocation0]]
  $region45: #{_lambda_.19} parent=0
    _
  %s6 = ssub.s32 1, %s4
  %s7 = scalar_select 0, %s6, %s4
  loop: start=0, step=1, limit=4
  $region2: #{_lambda_.19} parent=0 // loop_pre_header
    _
  $region3: #{_lambda_.19} parent=0 // loop_header
    %s9 = sphi 0, %s13
    %p10 = scmp.ge.s32.totalorder %s9, 4
    %s16 = sphi 0, %s28
    %s17 = sphi 0, %s24
    %s18 = sphi 0, %s16
    %s19 = sphi 0, %s17
    %s20 = sphi 0, %s18
    %s21 = sphi 0, %s19
    %s33 = sphi 0, %s35
    %s36 = sphi 0, %s33
    %s37 = sphi 0, %s36
    %s53 = sphi 0, %s37
    %s59 = sphi 0, %s61
    %s62 = sphi 0, %s59
    %s63 = sphi 0, %s62
    %s79 = sphi 0, %s63
    %s83 = sphi 0, %s83
    %s85 = sphi 0, %s83
    %s86 = sphi 0, %s85
    %s100 = sphi 0, %s86
    %s106 = sphi 0, %s108
    %s109 = sphi 0, %s106
    %s110 = sphi 0, %s109
    %s126 = sphi 0, %s110
  $region4: #{_lambda_.19} parent=0 // loop_header_branch
    %12 = sbr.rel (%p10) target = $region8
  $region5: #{_lambda_.19} parent=0 // loop_body
    %s14 = ssub.s32 %s9, 1
    %s15 = ssub.s32 %s9, 2
    %s22 = sadd.s32 1, %s17
    %p23 = scmp.ge.s32.totalorder %s22, 1
    %s24 = scalar_select %p23, 0, %s22
    %s25 = sadd.s32 1, %s16
    %s26 = scalar_select %p23, %s25, %s16
    %p27 = scmp.ge.s32.totalorder %s26, 2
    %s28 = scalar_select %p27, 0, %s26
    %s29 = ssub.s32 %s16, %s28
    %s30 = ssub.s32 %s17, %s24
    %s31 = sor.u32 %s29, %s30
    %p32 = scmp.eq.s32.totalorder %s31, 0
    %s34 = sadd.s32 %s33, 1
    %s35 = scalar_select %p32, %s33, %s34
    %p38 = pneg %p32
    %p39 = scmp.eq.s32.totalorder %s9, 1
    %p40 = por %p38, %p39
    %p41 = scmp.ne.s32.totalorder %s33, %s36
    %p42 = scmp.eq.s32.totalorder %s9, 0
    %p43 = por %p41, %p42
    %p44 = scmp.ne.s32.totalorder %s33, %s36
    %p45 = scmp.eq.s32.totalorder %s14, 1
    %p46 = por %p44, %p45
    %p47 = scmp.ne.s32.totalorder %s36, %s37
    %p48 = scmp.eq.s32.totalorder %s14, 0
    %p49 = por %p47, %p48
    %p50 = scmp.ne.s32.totalorder %s36, %s37
    %p51 = scmp.eq.s32.totalorder %s15, 1
    %p52 = por %p50, %p51
    %p54 = scmp.ne.s32.totalorder %s37, %s53
    %p55 = scmp.eq.s32.totalorder %s15, 0
    %p56 = por %p54, %p55
    %s57 = ssub.s32 %s17, %s24
    %p58 = scmp.eq.s32.totalorder %s57, 0
    %s60 = sadd.s32 %s59, 1
    %s61 = scalar_select %p58, %s59, %s60
    %p64 = pneg %p58
    %p65 = scmp.eq.s32.totalorder %s9, 1
    %p66 = por %p64, %p65
    %p67 = scmp.ne.s32.totalorder %s59, %s62
    %p68 = scmp.eq.s32.totalorder %s9, 0
    %p69 = por %p67, %p68
    %p70 = scmp.ne.s32.totalorder %s59, %s62
    %p71 = scmp.eq.s32.totalorder %s14, 1
    %p72 = por %p70, %p71
    %p73 = scmp.ne.s32.totalorder %s62, %s63
    %p74 = scmp.eq.s32.totalorder %s14, 0
    %p75 = por %p73, %p74
    %p76 = scmp.ne.s32.totalorder %s62, %s63
    %p77 = scmp.eq.s32.totalorder %s15, 1
    %p78 = por %p76, %p77
    %p80 = scmp.ne.s32.totalorder %s63, %s79
    %p81 = scmp.eq.s32.totalorder %s15, 0
    %p82 = por %p80, %p81
    %s84 = sadd.s32 %s83, 1
    %p87 = scmp.eq.s32.totalorder %s9, 1
    %p88 = scmp.ne.s32.totalorder %s83, %s85
    %p89 = scmp.eq.s32.totalorder %s9, 0
    %p90 = por %p88, %p89
    %p91 = scmp.ne.s32.totalorder %s83, %s85
    %p92 = scmp.eq.s32.totalorder %s14, 1
    %p93 = por %p91, %p92
    %p94 = scmp.ne.s32.totalorder %s85, %s86
    %p95 = scmp.eq.s32.totalorder %s14, 0
    %p96 = por %p94, %p95
    %p97 = scmp.ne.s32.totalorder %s85, %s86
    %p98 = scmp.eq.s32.totalorder %s15, 1
    %p99 = por %p97, %p98
    %p101 = scmp.ne.s32.totalorder %s86, %s100
    %p102 = scmp.eq.s32.totalorder %s15, 0
    %p103 = por %p101, %p102
    %s104 = ssub.s32 %s16, %s28
    %p105 = scmp.eq.s32.totalorder %s104, 0
    %s107 = sadd.s32 %s106, 1
    %s108 = scalar_select %p105, %s106, %s107
    %p111 = pneg %p105
    %p112 = scmp.eq.s32.totalorder %s9, 1
    %p113 = por %p111, %p112
    %p114 = scmp.ne.s32.totalorder %s106, %s109
    %p115 = scmp.eq.s32.totalorder %s9, 0
    %p116 = por %p114, %p115
    %p117 = scmp.ne.s32.totalorder %s106, %s109
    %p118 = scmp.eq.s32.totalorder %s14, 1
    %p119 = por %p117, %p118
    %p120 = scmp.ne.s32.totalorder %s109, %s110
    %p121 = scmp.eq.s32.totalorder %s14, 0
    %p122 = por %p120, %p121
    %p123 = scmp.ne.s32.totalorder %s109, %s110
    %p124 = scmp.eq.s32.totalorder %s15, 1
    %p125 = por %p123, %p124
    %p127 = scmp.ne.s32.totalorder %s110, %s126
    %p128 = scmp.eq.s32.totalorder %s15, 0
    %p129 = por %p127, %p128
    %p130 = scmp.le.s32.totalorder 1, %s9
    %p131 = scmp.lt.s32.totalorder %s9, 3
    %p132 = pnand %p130, %p131
    %p133 = pneg %p132
    // Predicated region
    $region9: #{_lambda_.19} parent=5 // pred_check
      _
    $region10: #{_lambda_.19} parent=5 // pred_check_branch
      %135 = sbr.rel (%p132) target = $region12
    $region11: #{_lambda_.19} parent=5 // pred_region
      %s136 = ssub.s32 %s9, 1
      // Predicated region
      $region13: #{_lambda_.19} parent=11 // pred_check
        %p137 = pneg %p75
      $region14: #{_lambda_.19} parent=11 // pred_check_branch
        %139 = sbr.rel (%p137) target = $region16
      $region15: #{_lambda_.19} parent=11 // pred_region
        %s140 = smul.u32 16, %s19
        %p141 = scmp.lt.s32.totalorder %s140, 15
        %s142 = scalar_select %p141, %s140, 15
        %s143 = smul.addr %s142, 4
        %s144 = smul.addr %s143, 4
        %s145 = scalar_lea.vmem %s1, %s144
        %s146 = smul.u32 16, %s19
      $region16: #{_lambda_.19} parent=11 // pred_fallthru
        _
      // Predicated region
      $region17: #{_lambda_.19} parent=11 // pred_check
        %p147 = pneg %p96
      $region18: #{_lambda_.19} parent=11 // pred_check_branch
        %149 = sbr.rel (%p147) target = $region20
      $region19: #{_lambda_.19} parent=11 // pred_region
        _
      $region20: #{_lambda_.19} parent=11 // pred_fallthru
        _
    $region12: #{_lambda_.19} parent=5 // pred_fallthru
      _
    %p150 = scmp.lt.s32.totalorder %s9, 2
    // Predicated region
    $region21: #{_lambda_.19} parent=5 // pred_check
      %p151 = pneg %p150
    $region22: #{_lambda_.19} parent=5 // pred_check_branch
      %153 = sbr.rel (%p151) target = $region24
    $region23: #{_lambda_.19} parent=5 // pred_region
      // Predicated region
      $region25: #{_lambda_.19} parent=23 // pred_check
        %p154 = pneg %p43
      $region26: #{_lambda_.19} parent=23 // pred_check_branch
        %156 = sbr.rel (%p154) target = $region28
      $region27: #{_lambda_.19} parent=23 // pred_region
        %p157 = scmp.lt.s32.totalorder %s16, 1
        %s158 = scalar_select %p157, %s16, 1
        %p159 = scmp.lt.s32.totalorder %s17, 0
        %s160 = scalar_select %p159, %s17, 0
        %s161 = sadd.s32 %s160, %s158
        %s162 = smul.addr %s161, 4
        %s163 = scalar_lea.vmem %s0, %s162
      $region28: #{_lambda_.19} parent=23 // pred_fallthru
        _
    $region24: #{_lambda_.19} parent=5 // pred_fallthru
      _
    %p164 = scmp.le.s32.totalorder 1, %s9
    %p165 = scmp.lt.s32.totalorder %s9, 3
    %p166 = pnand %p164, %p165
    %p167 = pneg %p166
    // Predicated region
    $region29: #{_lambda_.19} parent=5 // pred_check
      _
    $region30: #{_lambda_.19} parent=5 // pred_check_branch
      %169 = sbr.rel (%p166) target = $region32
    $region31: #{_lambda_.19} parent=5 // pred_region
      %s170 = ssub.s32 %s9, 1
      %p171 = scmp.lt.s32.totalorder %s18, 1
      %s172 = scalar_select %p171, %s18, 1
      %p173 = scmp.lt.s32.totalorder %s19, 0
      %s174 = scalar_select %p173, %s19, 0
      %s175 = sadd.s32 %s174, %s172
      %s176 = smul.addr %s175, 4
      %s177 = scalar_lea.vmem %s0, %s176
      %p178 = pneg %p49
      %p179 = pneg %p46
      %s180 = smul.u32 16, %s19
      %p181 = scmp.lt.s32.totalorder %s180, 15
      %s182 = scalar_select %p181, %s180, 15
      %s183 = smul.addr %s182, 4
      %s184 = smul.addr %s183, 4
      %s185 = scalar_lea.vmem %s1, %s184
      %p186 = pneg %p75
      %p187 = pneg %p72
      %p188 = pneg %p96
      %p189 = pneg %p93
      %p190 = pneg %p122
      %p191 = pneg %p119
      %p192 = scmp.lt.s32.totalorder %s18, 1
      %s193 = scalar_select %p192, %s18, 1
      %s194 = smul.addr %s193, 4
      %s195 = smul.addr %s194, 4
      %s196 = scalar_lea.vmem %s3, %s195
      %p197 = scmp.lt.s32.totalorder %s18, 1
      %s198 = scalar_select %p197, %s18, 1
      %p199 = scmp.lt.s32.totalorder %s19, 0
      %s200 = scalar_select %p199, %s19, 0
      %s201 = sadd.s32 %s200, %s198
      %s202 = smul.addr %s201, 4
      %s203 = scalar_lea.vmem %s0, %s202
      %s204 = smul.u32 16, %s19
      %p205 = scmp.lt.s32.totalorder %s204, 15
      %s206 = scalar_select %p205, %s204, 15
      %s207 = smul.addr %s206, 4
      %s208 = smul.addr %s207, 4
      %s209 = scalar_lea.vmem %s1, %s208
      %s210 = smul.u32 16, %s19
      %p211 = scmp.lt.s32.totalorder %s18, 1
      %s212 = scalar_select %p211, %s18, 1
      %s213 = smul.addr %s212, 4
      %s214 = smul.addr %s213, 4
      %s215 = scalar_lea.vmem %s3, %s214
      %v216 = vld [vmem:[%s203] sm:$0xf]
      %v217 = vld [vmem:[%s209] sm:$0xff]
      %v218 = vld [vmem:[%s209 + $0x8] sm:$0xff]
      %v219 = vld [vmem:[%s209 + $0x10] sm:$0xff]
      %v220 = vld [vmem:[%s209 + $0x18] sm:$0xff]
      %v221 = vld [vmem:[%s209 + $0x20] sm:$0xff]
      %v222 = vld [vmem:[%s209 + $0x28] sm:$0xff]
      %v223 = vld [vmem:[%s209 + $0x30] sm:$0xff]
      %v224 = vld [vmem:[%s209 + $0x38] sm:$0xff]
      %v225 = vld [vmem:[%s209 + $0x40] sm:$0xff]
      %v226 = vld [vmem:[%s209 + $0x48] sm:$0xff]
      %v227 = vld [vmem:[%s209 + $0x50] sm:$0xff]
      %v228 = vld [vmem:[%s209 + $0x58] sm:$0xff]
      %v229 = vld [vmem:[%s209 + $0x60] sm:$0xff]
      %v230 = vld [vmem:[%s209 + $0x68] sm:$0xff]
      %v231 = vld [vmem:[%s209 + $0x70] sm:$0xff]
      %v232 = vld [vmem:[%s209 + $0x78] sm:$0xff]
      %v233 = vld [vmem:[%s209 + $0x80] sm:$0xff]
      %v234 = vld [vmem:[%s209 + $0x88] sm:$0xff]
      %v235 = vld [vmem:[%s209 + $0x90] sm:$0xff]
      %v236 = vld [vmem:[%s209 + $0x98] sm:$0xff]
      %v237 = vld [vmem:[%s209 + $0xa0] sm:$0xff]
      %v238 = vld [vmem:[%s209 + $0xa8] sm:$0xff]
      %v239 = vld [vmem:[%s209 + $0xb0] sm:$0xff]
      %v240 = vld [vmem:[%s209 + $0xb8] sm:$0xff]
      %v241 = vld [vmem:[%s209 + $0xc0] sm:$0xff]
      %v242 = vld [vmem:[%s209 + $0xc8] sm:$0xff]
      %v243 = vld [vmem:[%s209 + $0xd0] sm:$0xff]
      %v244 = vld [vmem:[%s209 + $0xd8] sm:$0xff]
      %v245 = vld [vmem:[%s209 + $0xe0] sm:$0xff]
      %v246 = vld [vmem:[%s209 + $0xe8] sm:$0xff]
      %v247 = vld [vmem:[%s209 + $0xf0] sm:$0xff]
      %v248 = vld [vmem:[%s209 + $0xf8] sm:$0xff]
      %v249 = vld [vmem:[%s2] sm:$0xf]
      %v251 = vperm.slane %v249, 0
      %v252 = vperm.slane %v249, 1
      %v253 = vperm.slane %v249, 2
      %v254 = vperm.slane %v249, 3
      %v291 = vunpack.c.l.b16 %v217
      %v292 = vunpack.c.h.b16 %v217
      %v293 = vunpack.c.l.b16 %v218
      %v294 = vunpack.c.h.b16 %v218
      %v295 = vunpack.c.l.b16 %v219
      %v296 = vunpack.c.h.b16 %v219
      %v297 = vunpack.c.l.b16 %v220
      %v298 = vunpack.c.h.b16 %v220
      %v299 = vunpack.c.l.b16 %v221
      %v300 = vunpack.c.h.b16 %v221
      %v301 = vunpack.c.l.b16 %v222
      %v302 = vunpack.c.h.b16 %v222
      %v303 = vunpack.c.l.b16 %v223
      %v304 = vunpack.c.h.b16 %v223
      %v305 = vunpack.c.l.b16 %v224
      %v306 = vunpack.c.h.b16 %v224
      %v307 = vunpack.c.l.b16 %v225
      %v308 = vunpack.c.h.b16 %v225
      %v309 = vunpack.c.l.b16 %v226
      %v310 = vunpack.c.h.b16 %v226
      %v311 = vunpack.c.l.b16 %v227
      %v312 = vunpack.c.h.b16 %v227
      %v313 = vunpack.c.l.b16 %v228
      %v314 = vunpack.c.h.b16 %v228
      %v315 = vunpack.c.l.b16 %v229
      %v316 = vunpack.c.h.b16 %v229
      %v317 = vunpack.c.l.b16 %v230
      %v318 = vunpack.c.h.b16 %v230
      %v319 = vunpack.c.l.b16 %v231
      %v320 = vunpack.c.h.b16 %v231
      %v321 = vunpack.c.l.b16 %v232
      %v322 = vunpack.c.h.b16 %v232
      %v323 = vunpack.c.l.b16 %v233
      %v324 = vunpack.c.h.b16 %v233
      %v325 = vunpack.c.l.b16 %v234
      %v326 = vunpack.c.h.b16 %v234
      %v327 = vunpack.c.l.b16 %v235
      %v328 = vunpack.c.h.b16 %v235
      %v329 = vunpack.c.l.b16 %v236
      %v330 = vunpack.c.h.b16 %v236
      %v331 = vunpack.c.l.b16 %v237
      %v332 = vunpack.c.h.b16 %v237
      %v333 = vunpack.c.l.b16 %v238
      %v334 = vunpack.c.h.b16 %v238
      %v335 = vunpack.c.l.b16 %v239
      %v336 = vunpack.c.h.b16 %v239
      %v337 = vunpack.c.l.b16 %v240
      %v338 = vunpack.c.h.b16 %v240
      %v339 = vunpack.c.l.b16 %v241
      %v340 = vunpack.c.h.b16 %v241
      %v341 = vunpack.c.l.b16 %v242
      %v342 = vunpack.c.h.b16 %v242
      %v343 = vunpack.c.l.b16 %v243
      %v344 = vunpack.c.h.b16 %v243
      %v345 = vunpack.c.l.b16 %v244
      %v346 = vunpack.c.h.b16 %v244
      %v347 = vunpack.c.l.b16 %v245
      %v348 = vunpack.c.h.b16 %v245
      %v349 = vunpack.c.l.b16 %v246
      %v350 = vunpack.c.h.b16 %v246
      %v351 = vunpack.c.l.b16 %v247
      %v352 = vunpack.c.h.b16 %v247
      %v353 = vunpack.c.l.b16 %v248
      %v354 = vunpack.c.h.b16 %v248
      %v355 = vpack.c.b16 %v295, %v291
      %v356 = vpack.c.b16 %v296, %v292
      %v357 = vpack.c.b16 %v297, %v293
      %v358 = vpack.c.b16 %v298, %v294
      %v359 = vpack.c.b16 %v303, %v299
      %v360 = vpack.c.b16 %v304, %v300
      %v361 = vpack.c.b16 %v305, %v301
      %v362 = vpack.c.b16 %v306, %v302
      %v363 = vpack.c.b16 %v311, %v307
      %v364 = vpack.c.b16 %v312, %v308
      %v365 = vpack.c.b16 %v313, %v309
      %v366 = vpack.c.b16 %v314, %v310
      %v367 = vpack.c.b16 %v319, %v315
      %v368 = vpack.c.b16 %v320, %v316
      %v369 = vpack.c.b16 %v321, %v317
      %v370 = vpack.c.b16 %v322, %v318
      %v371 = vpack.c.b16 %v327, %v323
      %v372 = vpack.c.b16 %v328, %v324
      %v373 = vpack.c.b16 %v329, %v325
      %v374 = vpack.c.b16 %v330, %v326
      %v375 = vpack.c.b16 %v335, %v331
      %v376 = vpack.c.b16 %v336, %v332
      %v377 = vpack.c.b16 %v337, %v333
      %v378 = vpack.c.b16 %v338, %v334
      %v379 = vpack.c.b16 %v343, %v339
      %v380 = vpack.c.b16 %v344, %v340
      %v381 = vpack.c.b16 %v345, %v341
      %v382 = vpack.c.b16 %v346, %v342
      %v383 = vpack.c.b16 %v351, %v347
      %v384 = vpack.c.b16 %v352, %v348
      %v385 = vpack.c.b16 %v353, %v349
      %v386 = vpack.c.b16 %v354, %v350
      %419 = vmatpush.bf16.msra.mxu0 %v383
      %420 = vmatpush.bf16.msra.mxu0 %v379
      %421 = vmatpush.bf16.msra.mxu0 %v375
      %422 = vmatpush.bf16.msra.mxu0 %v371
      %423 = vmatpush.bf16.msra.mxu0 %v367
      %424 = vmatpush.bf16.msra.mxu0 %v363
      %425 = vmatpush.bf16.msra.mxu0 %v359
      %426 = vmatpush.bf16.msra.mxu0 %v355
      %427 = vmatmul.bf16.gmra.mxu0 %v216
      %v428 = vpop.f32.mrf.mxu0
      %v429 = vadd.f32 %v251, %v428
      %v430 = vpop.f32.mrf.mxu0
      %431 = vdwg.mxu0
      %432 = vmatpush.bf16.msra.mxu0 %v384
      %433 = vmatpush.bf16.msra.mxu0 %v380
      %434 = vmatpush.bf16.msra.mxu0 %v376
      %435 = vmatpush.bf16.msra.mxu0 %v372
      %436 = vmatpush.bf16.msra.mxu0 %v368
      %437 = vmatpush.bf16.msra.mxu0 %v364
      %438 = vmatpush.bf16.msra.mxu0 %v360
      %439 = vmatpush.bf16.msra.mxu0 %v356
      %440 = vmatmul.bf16.gmra.mxu0 %v216
      %v441 = vpop.f32.mrf.mxu0
      %v442 = vadd.f32 %v252, %v441
      %v443 = vpop.f32.mrf.mxu0
      %444 = vdwg.mxu0
      %445 = vmatpush.bf16.msra.mxu0 %v385
      %446 = vmatpush.bf16.msra.mxu0 %v381
      %447 = vmatpush.bf16.msra.mxu0 %v377
      %448 = vmatpush.bf16.msra.mxu0 %v373
      %449 = vmatpush.bf16.msra.mxu0 %v369
      %450 = vmatpush.bf16.msra.mxu0 %v365
      %451 = vmatpush.bf16.msra.mxu0 %v361
      %452 = vmatpush.bf16.msra.mxu0 %v357
      %453 = vmatmul.bf16.gmra.mxu0 %v216
      %v454 = vpop.f32.mrf.mxu0
      %v455 = vadd.f32 %v253, %v454
      %v456 = vpop.f32.mrf.mxu0
      %457 = vdwg.mxu0
      %458 = vmatpush.bf16.msra.mxu0 %v386
      %459 = vmatpush.bf16.msra.mxu0 %v382
      %460 = vmatpush.bf16.msra.mxu0 %v378
      %461 = vmatpush.bf16.msra.mxu0 %v374
      %462 = vmatpush.bf16.msra.mxu0 %v370
      %463 = vmatpush.bf16.msra.mxu0 %v366
      %464 = vmatpush.bf16.msra.mxu0 %v362
      %465 = vmatpush.bf16.msra.mxu0 %v358
      %466 = vmatmul.bf16.gmra.mxu0 %v216
      %v467 = vpop.f32.mrf.mxu0
      %v468 = vadd.f32 %v254, %v467
      %v469 = vpop.f32.mrf.mxu0
      %470 = vdwg.mxu0
      %v471 = vlaneseq
      %v472 = vshrl.u32 %v471, 7
      %vm473 = vcmp.lt.s32.totalorder %v472, 4
      %v474 = vsel %vm473, 1, 0
      %v475 = vcvt.s32.f32 %v474
      %v476 = vmul.f32 %v429, %v475
      %v477 = vmul.f32 %v442, %v475
      %v478 = vmul.f32 %v455, %v475
      %v479 = vmul.f32 %v468, %v475
      %v480 = vrot.slane %v476, 4
      %v481 = vadd.f32 %v476, %v480
      %v482 = vrot.slane %v481, 2
      %v483 = vadd.f32 %v481, %v482
      %v484 = vrot.slane %v483, 1
      %v485 = vadd.f32 %v483, %v484
      %v486 = vrot.slane %v477, 4
      %v487 = vadd.f32 %v477, %v486
      %v488 = vrot.slane %v487, 2
      %v489 = vadd.f32 %v487, %v488
      %v490 = vrot.slane %v489, 1
      %v491 = vadd.f32 %v489, %v490
      %v492 = vrot.slane %v478, 4
      %v493 = vadd.f32 %v478, %v492
      %v494 = vrot.slane %v493, 2
      %v495 = vadd.f32 %v493, %v494
      %v496 = vrot.slane %v495, 1
      %v497 = vadd.f32 %v495, %v496
      %v498 = vrot.slane %v479, 4
      %v499 = vadd.f32 %v479, %v498
      %v500 = vrot.slane %v499, 2
      %v501 = vadd.f32 %v499, %v500
      %v502 = vrot.slane %v501, 1
      %v503 = vadd.f32 %v501, %v502
      %v504 = vadd.f32 %v485, %v491
      %v505 = vadd.f32 %v504, %v497
      %v506 = vadd.f32 %v505, %v503
      %v507 = vmul.f32 %v506, 0.0625
      %v508 = vperm.slane %v507, 0
      %v509 = vsub.f32 %v429, %v508
      %v510 = vsub.f32 %v442, %v508
      %v511 = vsub.f32 %v455, %v508
      %v512 = vsub.f32 %v468, %v508
      %v513 = vmul.f32 %v509, %v509
      %v514 = vmul.f32 %v510, %v510
      %v515 = vmul.f32 %v511, %v511
      %v516 = vmul.f32 %v512, %v512
      %v517 = vmul.f32 %v513, %v475
      %v518 = vmul.f32 %v514, %v475
      %v519 = vmul.f32 %v515, %v475
      %v520 = vmul.f32 %v516, %v475
      %v521 = vrot.slane %v517, 4
      %v522 = vadd.f32 %v517, %v521
      %v523 = vrot.slane %v522, 2
      %v524 = vadd.f32 %v522, %v523
      %v525 = vrot.slane %v524, 1
      %v526 = vadd.f32 %v524, %v525
      %v527 = vrot.slane %v518, 4
      %v528 = vadd.f32 %v518, %v527
      %v529 = vrot.slane %v528, 2
      %v530 = vadd.f32 %v528, %v529
      %v531 = vrot.slane %v530, 1
      %v532 = vadd.f32 %v530, %v531
      %v533 = vrot.slane %v519, 4
      %v534 = vadd.f32 %v519, %v533
      %v535 = vrot.slane %v534, 2
      %v536 = vadd.f32 %v534, %v535
      %v537 = vrot.slane %v536, 1
      %v538 = vadd.f32 %v536, %v537
      %v539 = vrot.slane %v520, 4
      %v540 = vadd.f32 %v520, %v539
      %v541 = vrot.slane %v540, 2
      %v542 = vadd.f32 %v540, %v541
      %v543 = vrot.slane %v542, 1
      %v544 = vadd.f32 %v542, %v543
      %v545 = vadd.f32 %v526, %v532
      %v546 = vadd.f32 %v545, %v538
      %v547 = vadd.f32 %v546, %v544
      %v548 = vmul.f32 %v547, 0.0625
      %v549 = vadd.f32 %v548, 1e-05
      %v550 = vrsqrt.pop %v549
      %v551 = vmul.f32 %v550, %v549
      %v552 = vmul.f32 %v551, %v550
      %v553 = vmul.f32 0.5, %v552
      %v554 = vsub.f32 1.5, %v553
      %v555 = vmul.f32 %v550, %v554
      %vm556 = vweird.f32 %v549
      %vm557 = vweird.f32 %v550
      %vm558 = vmor %vm556, %vm557
      %v559 = vsel %vm558, %v550, %v555
      %v560 = vperm.slane %v559, 0
      %v561 = vmul.f32 %v509, %v560
      %v562 = vmul.f32 %v510, %v560
      %v563 = vmul.f32 %v511, %v560
      %v564 = vmul.f32 %v512, %v560
      %v565 = vmax.f32 %v561, 0.0
      %v566 = vmax.f32 %v562, 0.0
      %v567 = vmax.f32 %v563, 0.0
      %v568 = vmax.f32 %v564, 0.0
      %v569 = vpack.c.bf16 %v566, %v565
      %v570 = vpack.c.bf16 %v568, %v567
      %571 = vst [vmem:[%s215] sm:$0xff] %v569
      %572 = vst [vmem:[%s215 + $0x8] sm:$0xff] %v570
      %p573 = scmp.lt.s32.totalorder %s18, 1
      %s574 = scalar_select %p573, %s18, 1
      %s575 = smul.addr %s574, 4
      %s576 = smul.addr %s575, 4
      %s577 = scalar_lea.vmem %s3, %s576
      // Predicated region
      $region33: #{_lambda_.19} parent=31 // pred_check
        %p578 = pneg %p119
      $region34: #{_lambda_.19} parent=31 // pred_check_branch
        %580 = sbr.rel (%p578) target = $region36
      $region35: #{_lambda_.19} parent=31 // pred_region
        _
      $region36: #{_lambda_.19} parent=31 // pred_fallthru
        _
    $region32: #{_lambda_.19} parent=5 // pred_fallthru
      _
    %p581 = scmp.le.s32.totalorder 2, %s9
    // Predicated region
    $region37: #{_lambda_.19} parent=5 // pred_check
      %p582 = pneg %p581
    $region38: #{_lambda_.19} parent=5 // pred_check_branch
      %584 = sbr.rel (%p582) target = $region40
    $region39: #{_lambda_.19} parent=5 // pred_region
      %s585 = ssub.s32 %s9, 2
      // Predicated region
      $region41: #{_lambda_.19} parent=39 // pred_check
        %p586 = pneg %p125
      $region42: #{_lambda_.19} parent=39 // pred_check_branch
        %588 = sbr.rel (%p586) target = $region44
      $region43: #{_lambda_.19} parent=39 // pred_region
        %p589 = scmp.lt.s32.totalorder %s20, 1
        %s590 = scalar_select %p589, %s20, 1
        %s591 = smul.addr %s590, 4
        %s592 = smul.addr %s591, 4
        %s593 = scalar_lea.vmem %s3, %s592
      $region44: #{_lambda_.19} parent=39 // pred_fallthru
        _
    $region40: #{_lambda_.19} parent=5 // pred_fallthru
      _
  $region6: #{_lambda_.19} parent=0 // loop_footer
    %s13 = sadd.s32 1, %s9
  $region7: #{_lambda_.19} parent=0 // loop_footer_branch
    %8 = sbr.rel target = $region3
  $region8: #{_lambda_.19} parent=0 // loop_exit
    _

// kernel: _lambda_.20
$region0: #{_lambda_.20}
  #allocation0 [shape = 'u32[]', space=smem, size = 0x4, offset = 0x4, fixed_abs, tag = 'smem constant byte address 0x4 - core index']
  #allocation1 [shape = 'u32[72,128]{1,0:T(1,128)}', space=vmem, size = 0x9000, scoped, tag = 'internal scratch']
  %s0 = inlined_call_operand.vmem [shape: bf16[2,16,64], index: 0, kind: input, shape index: {}]
  %s1 = inlined_call_operand.vmem [shape: bf16[64,512], index: 1, kind: input, shape index: {}]
  %s2 = inlined_call_operand.vmem [shape: f32[1,512], index: 2, kind: input, shape index: {}]
  %s3 = inlined_call_operand.vmem [shape: bf16[2,16,512], index: 3, kind: output, shape index: {}]
  %s4 = sld [smem:[#allocation0]]
  $region45: #{_lambda_.20} parent=0
    _
  %s6 = ssub.s32 1, %s4
  %s7 = scalar_select 0, %s6, %s4
  loop: start=0, step=1, limit=4
  $region2: #{_lambda_.20} parent=0 // loop_pre_header
    _
  $region3: #{_lambda_.20} parent=0 // loop_header
    %s9 = sphi 0, %s13
    %p10 = scmp.ge.s32.totalorder %s9, 4
    %s16 = sphi 0, %s28
    %s17 = sphi 0, %s24
    %s18 = sphi 0, %s16
    %s19 = sphi 0, %s17
    %s20 = sphi 0, %s18
    %s21 = sphi 0, %s19
    %s33 = sphi 0, %s35
    %s36 = sphi 0, %s33
    %s37 = sphi 0, %s36
    %s53 = sphi 0, %s37
    %s59 = sphi 0, %s61
    %s62 = sphi 0, %s59
    %s63 = sphi 0, %s62
    %s79 = sphi 0, %s63
    %s83 = sphi 0, %s83
    %s85 = sphi 0, %s83
    %s86 = sphi 0, %s85
    %s100 = sphi 0, %s86
    %s106 = sphi 0, %s108
    %s109 = sphi 0, %s106
    %s110 = sphi 0, %s109
    %s126 = sphi 0, %s110
  $region4: #{_lambda_.20} parent=0 // loop_header_branch
    %12 = sbr.rel (%p10) target = $region8
  $region5: #{_lambda_.20} parent=0 // loop_body
    %s14 = ssub.s32 %s9, 1
    %s15 = ssub.s32 %s9, 2
    %s22 = sadd.s32 1, %s17
    %p23 = scmp.ge.s32.totalorder %s22, 1
    %s24 = scalar_select %p23, 0, %s22
    %s25 = sadd.s32 1, %s16
    %s26 = scalar_select %p23, %s25, %s16
    %p27 = scmp.ge.s32.totalorder %s26, 2
    %s28 = scalar_select %p27, 0, %s26
    %s29 = ssub.s32 %s16, %s28
    %s30 = ssub.s32 %s17, %s24
    %s31 = sor.u32 %s29, %s30
    %p32 = scmp.eq.s32.totalorder %s31, 0
    %s34 = sadd.s32 %s33, 1
    %s35 = scalar_select %p32, %s33, %s34
    %p38 = pneg %p32
    %p39 = scmp.eq.s32.totalorder %s9, 1
    %p40 = por %p38, %p39
    %p41 = scmp.ne.s32.totalorder %s33, %s36
    %p42 = scmp.eq.s32.totalorder %s9, 0
    %p43 = por %p41, %p42
    %p44 = scmp.ne.s32.totalorder %s33, %s36
    %p45 = scmp.eq.s32.totalorder %s14, 1
    %p46 = por %p44, %p45
    %p47 = scmp.ne.s32.totalorder %s36, %s37
    %p48 = scmp.eq.s32.totalorder %s14, 0
    %p49 = por %p47, %p48
    %p50 = scmp.ne.s32.totalorder %s36, %s37
    %p51 = scmp.eq.s32.totalorder %s15, 1
    %p52 = por %p50, %p51
    %p54 = scmp.ne.s32.totalorder %s37, %s53
    %p55 = scmp.eq.s32.totalorder %s15, 0
    %p56 = por %p54, %p55
    %s57 = ssub.s32 %s17, %s24
    %p58 = scmp.eq.s32.totalorder %s57, 0
    %s60 = sadd.s32 %s59, 1
    %s61 = scalar_select %p58, %s59, %s60
    %p64 = pneg %p58
    %p65 = scmp.eq.s32.totalorder %s9, 1
    %p66 = por %p64, %p65
    %p67 = scmp.ne.s32.totalorder %s59, %s62
    %p68 = scmp.eq.s32.totalorder %s9, 0
    %p69 = por %p67, %p68
    %p70 = scmp.ne.s32.totalorder %s59, %s62
    %p71 = scmp.eq.s32.totalorder %s14, 1
    %p72 = por %p70, %p71
    %p73 = scmp.ne.s32.totalorder %s62, %s63
    %p74 = scmp.eq.s32.totalorder %s14, 0
    %p75 = por %p73, %p74
    %p76 = scmp.ne.s32.totalorder %s62, %s63
    %p77 = scmp.eq.s32.totalorder %s15, 1
    %p78 = por %p76, %p77
    %p80 = scmp.ne.s32.totalorder %s63, %s79
    %p81 = scmp.eq.s32.totalorder %s15, 0
    %p82 = por %p80, %p81
    %s84 = sadd.s32 %s83, 1
    %p87 = scmp.eq.s32.totalorder %s9, 1
    %p88 = scmp.ne.s32.totalorder %s83, %s85
    %p89 = scmp.eq.s32.totalorder %s9, 0
    %p90 = por %p88, %p89
    %p91 = scmp.ne.s32.totalorder %s83, %s85
    %p92 = scmp.eq.s32.totalorder %s14, 1
    %p93 = por %p91, %p92
    %p94 = scmp.ne.s32.totalorder %s85, %s86
    %p95 = scmp.eq.s32.totalorder %s14, 0
    %p96 = por %p94, %p95
    %p97 = scmp.ne.s32.totalorder %s85, %s86
    %p98 = scmp.eq.s32.totalorder %s15, 1
    %p99 = por %p97, %p98
    %p101 = scmp.ne.s32.totalorder %s86, %s100
    %p102 = scmp.eq.s32.totalorder %s15, 0
    %p103 = por %p101, %p102
    %s104 = ssub.s32 %s16, %s28
    %p105 = scmp.eq.s32.totalorder %s104, 0
    %s107 = sadd.s32 %s106, 1
    %s108 = scalar_select %p105, %s106, %s107
    %p111 = pneg %p105
    %p112 = scmp.eq.s32.totalorder %s9, 1
    %p113 = por %p111, %p112
    %p114 = scmp.ne.s32.totalorder %s106, %s109
    %p115 = scmp.eq.s32.totalorder %s9, 0
    %p116 = por %p114, %p115
    %p117 = scmp.ne.s32.totalorder %s106, %s109
    %p118 = scmp.eq.s32.totalorder %s14, 1
    %p119 = por %p117, %p118
    %p120 = scmp.ne.s32.totalorder %s109, %s110
    %p121 = scmp.eq.s32.totalorder %s14, 0
    %p122 = por %p120, %p121
    %p123 = scmp.ne.s32.totalorder %s109, %s110
    %p124 = scmp.eq.s32.totalorder %s15, 1
    %p125 = por %p123, %p124
    %p127 = scmp.ne.s32.totalorder %s110, %s126
    %p128 = scmp.eq.s32.totalorder %s15, 0
    %p129 = por %p127, %p128
    %p130 = scmp.le.s32.totalorder 1, %s9
    %p131 = scmp.lt.s32.totalorder %s9, 3
    %p132 = pnand %p130, %p131
    %p133 = pneg %p132
    // Predicated region
    $region9: #{_lambda_.20} parent=5 // pred_check
      _
    $region10: #{_lambda_.20} parent=5 // pred_check_branch
      %135 = sbr.rel (%p132) target = $region12
    $region11: #{_lambda_.20} parent=5 // pred_region
      %s136 = ssub.s32 %s9, 1
      // Predicated region
      $region13: #{_lambda_.20} parent=11 // pred_check
        %p137 = pneg %p75
      $region14: #{_lambda_.20} parent=11 // pred_check_branch
        %139 = sbr.rel (%p137) target = $region16
      $region15: #{_lambda_.20} parent=11 // pred_region
        %s140 = smul.u32 8, %s19
        %p141 = scmp.lt.s32.totalorder %s140, 7
        %s142 = scalar_select %p141, %s140, 7
        %s143 = smul.addr %s142, 4
        %s144 = smul.addr %s143, 4
        %s145 = scalar_lea.vmem %s1, %s144
        %s146 = smul.u32 8, %s19
      $region16: #{_lambda_.20} parent=11 // pred_fallthru
        _
      // Predicated region
      $region17: #{_lambda_.20} parent=11 // pred_check
        %p147 = pneg %p96
      $region18: #{_lambda_.20} parent=11 // pred_check_branch
        %149 = sbr.rel (%p147) target = $region20
      $region19: #{_lambda_.20} parent=11 // pred_region
        _
      $region20: #{_lambda_.20} parent=11 // pred_fallthru
        _
    $region12: #{_lambda_.20} parent=5 // pred_fallthru
      _
    %p150 = scmp.lt.s32.totalorder %s9, 2
    // Predicated region
    $region21: #{_lambda_.20} parent=5 // pred_check
      %p151 = pneg %p150
    $region22: #{_lambda_.20} parent=5 // pred_check_branch
      %153 = sbr.rel (%p151) target = $region24
    $region23: #{_lambda_.20} parent=5 // pred_region
      // Predicated region
      $region25: #{_lambda_.20} parent=23 // pred_check
        %p154 = pneg %p43
      $region26: #{_lambda_.20} parent=23 // pred_check_branch
        %156 = sbr.rel (%p154) target = $region28
      $region27: #{_lambda_.20} parent=23 // pred_region
        %p157 = scmp.lt.s32.totalorder %s16, 1
        %s158 = scalar_select %p157, %s16, 1
        %p159 = scmp.lt.s32.totalorder %s17, 0
        %s160 = scalar_select %p159, %s17, 0
        %s161 = smul.addr %s158, 2
        %s162 = sadd.s32 %s160, %s161
        %s163 = smul.addr %s162, 4
        %s164 = scalar_lea.vmem %s0, %s163
      $region28: #{_lambda_.20} parent=23 // pred_fallthru
        _
    $region24: #{_lambda_.20} parent=5 // pred_fallthru
      _
    %p165 = scmp.le.s32.totalorder 1, %s9
    %p166 = scmp.lt.s32.totalorder %s9, 3
    %p167 = pnand %p165, %p166
    %p168 = pneg %p167
    // Predicated region
    $region29: #{_lambda_.20} parent=5 // pred_check
      _
    $region30: #{_lambda_.20} parent=5 // pred_check_branch
      %170 = sbr.rel (%p167) target = $region32
    $region31: #{_lambda_.20} parent=5 // pred_region
      %s171 = ssub.s32 %s9, 1
      %p172 = scmp.lt.s32.totalorder %s18, 1
      %s173 = scalar_select %p172, %s18, 1
      %p174 = scmp.lt.s32.totalorder %s19, 0
      %s175 = scalar_select %p174, %s19, 0
      %s176 = smul.addr %s173, 2
      %s177 = sadd.s32 %s175, %s176
      %s178 = smul.addr %s177, 4
      %s179 = scalar_lea.vmem %s0, %s178
      %p180 = pneg %p49
      %p181 = pneg %p46
      %s182 = smul.u32 8, %s19
      %p183 = scmp.lt.s32.totalorder %s182, 7
      %s184 = scalar_select %p183, %s182, 7
      %s185 = smul.addr %s184, 4
      %s186 = smul.addr %s185, 4
      %s187 = scalar_lea.vmem %s1, %s186
      %p188 = pneg %p75
      %p189 = pneg %p72
      %p190 = pneg %p96
      %p191 = pneg %p93
      %p192 = pneg %p122
      %p193 = pneg %p119
      %p194 = scmp.lt.s32.totalorder %s18, 1
      %s195 = scalar_select %p194, %s18, 1
      %s196 = smul.addr %s195, 8
      %s197 = smul.addr %s196, 4
      %s198 = scalar_lea.vmem %s3, %s197
      %p199 = scmp.lt.s32.totalorder %s18, 1
      %s200 = scalar_select %p199, %s18, 1
      %p201 = scmp.lt.s32.totalorder %s19, 0
      %s202 = scalar_select %p201, %s19, 0
      %s203 = smul.addr %s200, 2
      %s204 = sadd.s32 %s202, %s203
      %s205 = smul.addr %s204, 4
      %s206 = scalar_lea.vmem %s0, %s205
      %s207 = smul.u32 8, %s19
      %p208 = scmp.lt.s32.totalorder %s207, 7
      %s209 = scalar_select %p208, %s207, 7
      %s210 = smul.addr %s209, 4
      %s211 = smul.addr %s210, 4
      %s212 = scalar_lea.vmem %s1, %s211
      %s213 = smul.u32 8, %s19
      %p214 = scmp.lt.s32.totalorder %s18, 1
      %s215 = scalar_select %p214, %s18, 1
      %s216 = smul.addr %s215, 8
      %s217 = smul.addr %s216, 4
      %s218 = scalar_lea.vmem %s3, %s217
      %v220 = vld [vmem:[%s206] sm:$0xf]
      %v221 = vld [vmem:[%s206 + $0x4] sm:$0xf]
      %v222 = vld [vmem:[%s212] sm:$0xff]
      %v223 = vld [vmem:[%s212 + $0x8] sm:$0xff]
      %v224 = vld [vmem:[%s212 + $0x10] sm:$0xff]
      %v225 = vld [vmem:[%s212 + $0x18] sm:$0xff]
      %v226 = vld [vmem:[%s212 + $0x20] sm:$0xff]
      %v227 = vld [vmem:[%s212 + $0x28] sm:$0xff]
      %v228 = vld [vmem:[%s212 + $0x30] sm:$0xff]
      %v229 = vld [vmem:[%s212 + $0x38] sm:$0xff]
      %v230 = vld [vmem:[%s212 + $0x40] sm:$0xff]
      %v231 = vld [vmem:[%s212 + $0x48] sm:$0xff]
      %v232 = vld [vmem:[%s212 + $0x50] sm:$0xff]
      %v233 = vld [vmem:[%s212 + $0x58] sm:$0xff]
      %v234 = vld [vmem:[%s212 + $0x60] sm:$0xff]
      %v235 = vld [vmem:[%s212 + $0x68] sm:$0xff]
      %v236 = vld [vmem:[%s212 + $0x70] sm:$0xff]
      %v237 = vld [vmem:[%s212 + $0x78] sm:$0xff]
      %v238 = vld [vmem:[%s2] sm:$0xf]
      %v240 = vperm.slane %v238, 0
      %v241 = vperm.slane %v238, 1
      %v242 = vperm.slane %v238, 2
      %v243 = vperm.slane %v238, 3
      %v250 = vunpack.c.l.b16 %v220
      %v251 = vunpack.c.l.b16 %v221
      %v252 = vpack.c.b16 %v251, %v250
      %v269 = vunpack.c.l.b16 %v222
      %v270 = vunpack.c.h.b16 %v222
      %v271 = vunpack.c.l.b16 %v223
      %v272 = vunpack.c.h.b16 %v223
      %v273 = vunpack.c.l.b16 %v224
      %v274 = vunpack.c.h.b16 %v224
      %v275 = vunpack.c.l.b16 %v225
      %v276 = vunpack.c.h.b16 %v225
      %v277 = vunpack.c.l.b16 %v226
      %v278 = vunpack.c.h.b16 %v226
      %v279 = vunpack.c.l.b16 %v227
      %v280 = vunpack.c.h.b16 %v227
      %v281 = vunpack.c.l.b16 %v228
      %v282 = vunpack.c.h.b16 %v228
      %v283 = vunpack.c.l.b16 %v229
      %v284 = vunpack.c.h.b16 %v229
      %v285 = vunpack.c.l.b16 %v230
      %v286 = vunpack.c.h.b16 %v230
      %v287 = vunpack.c.l.b16 %v231
      %v288 = vunpack.c.h.b16 %v231
      %v289 = vunpack.c.l.b16 %v232
      %v290 = vunpack.c.h.b16 %v232
      %v291 = vunpack.c.l.b16 %v233
      %v292 = vunpack.c.h.b16 %v233
      %v293 = vunpack.c.l.b16 %v234
      %v294 = vunpack.c.h.b16 %v234
      %v295 = vunpack.c.l.b16 %v235
      %v296 = vunpack.c.h.b16 %v235
      %v297 = vunpack.c.l.b16 %v236
      %v298 = vunpack.c.h.b16 %v236
      %v299 = vunpack.c.l.b16 %v237
      %v300 = vunpack.c.h.b16 %v237
      %v301 = vpack.c.b16 %v273, %v269
      %v302 = vpack.c.b16 %v274, %v270
      %v303 = vpack.c.b16 %v275, %v271
      %v304 = vpack.c.b16 %v276, %v272
      %v305 = vpack.c.b16 %v281, %v277
      %v306 = vpack.c.b16 %v282, %v278
      %v307 = vpack.c.b16 %v283, %v279
      %v308 = vpack.c.b16 %v284, %v280
      %v309 = vpack.c.b16 %v289, %v285
      %v310 = vpack.c.b16 %v290, %v286
      %v311 = vpack.c.b16 %v291, %v287
      %v312 = vpack.c.b16 %v292, %v288
      %v313 = vpack.c.b16 %v297, %v293
      %v314 = vpack.c.b16 %v298, %v294
      %v315 = vpack.c.b16 %v299, %v295
      %v316 = vpack.c.b16 %v300, %v296
      %vm333 = vcmask 523264
      %v335 = vsel %vm333, %v252, 0
      %337 = vmatpush.bf16.msra.mxu0 0
      %338 = vmatpush.bf16.msra.mxu0 0
      %339 = vmatpush.bf16.msra.mxu0 0
      %340 = vmatpush.bf16.msra.mxu0 0
      %341 = vmatpush.bf16.msra.mxu0 %v313
      %342 = vmatpush.bf16.msra.mxu0 %v309
      %343 = vmatpush.bf16.msra.mxu0 %v305
      %344 = vmatpush.bf16.msra.mxu0 %v301
      %345 = vmatmul.bf16.gmra.mxu0 %v335
      %v346 = vpop.f32.mrf.mxu0
      %v347 = vadd.f32 %v240, %v346
      %v348 = vpop.f32.mrf.mxu0
      %v349 = vadd.f32 %v240, %v348
      %350 = vdwg.mxu0
      %351 = vmatpush.bf16.msra.mxu0 0
      %352 = vmatpush.bf16.msra.mxu0 0
      %353 = vmatpush.bf16.msra.mxu0 0
      %354 = vmatpush.bf16.msra.mxu0 0
      %355 = vmatpush.bf16.msra.mxu0 %v314
      %356 = vmatpush.bf16.msra.mxu0 %v310
      %357 = vmatpush.bf16.msra.mxu0 %v306
      %358 = vmatpush.bf16.msra.mxu0 %v302
      %359 = vmatmul.bf16.gmra.mxu0 %v335
      %v360 = vpop.f32.mrf.mxu0
      %v361 = vadd.f32 %v241, %v360
      %v362 = vpop.f32.mrf.mxu0
      %v363 = vadd.f32 %v241, %v362
      %364 = vdwg.mxu0
      %365 = vmatpush.bf16.msra.mxu0 0
      %366 = vmatpush.bf16.msra.mxu0 0
      %367 = vmatpush.bf16.msra.mxu0 0
      %368 = vmatpush.bf16.msra.mxu0 0
      %369 = vmatpush.bf16.msra.mxu0 %v315
      %370 = vmatpush.bf16.msra.mxu0 %v311
      %371 = vmatpush.bf16.msra.mxu0 %v307
      %372 = vmatpush.bf16.msra.mxu0 %v303
      %373 = vmatmul.bf16.gmra.mxu0 %v335
      %v374 = vpop.f32.mrf.mxu0
      %v375 = vadd.f32 %v242, %v374
      %v376 = vpop.f32.mrf.mxu0
      %v377 = vadd.f32 %v242, %v376
      %378 = vdwg.mxu0
      %379 = vmatpush.bf16.msra.mxu0 0
      %380 = vmatpush.bf16.msra.mxu0 0
      %381 = vmatpush.bf16.msra.mxu0 0
      %382 = vmatpush.bf16.msra.mxu0 0
      %383 = vmatpush.bf16.msra.mxu0 %v316
      %384 = vmatpush.bf16.msra.mxu0 %v312
      %385 = vmatpush.bf16.msra.mxu0 %v308
      %386 = vmatpush.bf16.msra.mxu0 %v304
      %387 = vmatmul.bf16.gmra.mxu0 %v335
      %v388 = vpop.f32.mrf.mxu0
      %v389 = vadd.f32 %v243, %v388
      %v390 = vpop.f32.mrf.mxu0
      %v391 = vadd.f32 %v243, %v390
      %392 = vdwg.mxu0
      %v393 = vadd.f32 %v347, %v349
      %v394 = vrot.slane %v393, 4
      %v395 = vadd.f32 %v393, %v394
      %v396 = vrot.slane %v395, 2
      %v397 = vadd.f32 %v395, %v396
      %v398 = vrot.slane %v397, 1
      %v399 = vadd.f32 %v397, %v398
      %v400 = vadd.f32 %v361, %v363
      %v401 = vrot.slane %v400, 4
      %v402 = vadd.f32 %v400, %v401
      %v403 = vrot.slane %v402, 2
      %v404 = vadd.f32 %v402, %v403
      %v405 = vrot.slane %v404, 1
      %v406 = vadd.f32 %v404, %v405
      %v407 = vadd.f32 %v375, %v377
      %v408 = vrot.slane %v407, 4
      %v409 = vadd.f32 %v407, %v408
      %v410 = vrot.slane %v409, 2
      %v411 = vadd.f32 %v409, %v410
      %v412 = vrot.slane %v411, 1
      %v413 = vadd.f32 %v411, %v412
      %v414 = vadd.f32 %v389, %v391
      %v415 = vrot.slane %v414, 4
      %v416 = vadd.f32 %v414, %v415
      %v417 = vrot.slane %v416, 2
      %v418 = vadd.f32 %v416, %v417
      %v419 = vrot.slane %v418, 1
      %v420 = vadd.f32 %v418, %v419
      %v421 = vadd.f32 %v399, %v406
      %v422 = vadd.f32 %v421, %v413
      %v423 = vadd.f32 %v422, %v420
      %v424 = vmul.f32 %v423, 0.015625
      %v425 = vperm.slane %v424, 0
      %v426 = vsub.f32 %v347, %v425
      %v427 = vsub.f32 %v361, %v425
      %v428 = vsub.f32 %v375, %v425
      %v429 = vsub.f32 %v389, %v425
      %v430 = vsub.f32 %v349, %v425
      %v431 = vsub.f32 %v363, %v425
      %v432 = vsub.f32 %v377, %v425
      %v433 = vsub.f32 %v391, %v425
      %v434 = vmul.f32 %v426, %v426
      %v435 = vmul.f32 %v427, %v427
      %v436 = vmul.f32 %v428, %v428
      %v437 = vmul.f32 %v429, %v429
      %v438 = vmul.f32 %v430, %v430
      %v439 = vmul.f32 %v431, %v431
      %v440 = vmul.f32 %v432, %v432
      %v441 = vmul.f32 %v433, %v433
      %v442 = vadd.f32 %v434, %v438
      %v443 = vrot.slane %v442, 4
      %v444 = vadd.f32 %v442, %v443
      %v445 = vrot.slane %v444, 2
      %v446 = vadd.f32 %v444, %v445
      %v447 = vrot.slane %v446, 1
      %v448 = vadd.f32 %v446, %v447
      %v449 = vadd.f32 %v435, %v439
      %v450 = vrot.slane %v449, 4
      %v451 = vadd.f32 %v449, %v450
      %v452 = vrot.slane %v451, 2
      %v453 = vadd.f32 %v451, %v452
      %v454 = vrot.slane %v453, 1
      %v455 = vadd.f32 %v453, %v454
      %v456 = vadd.f32 %v436, %v440
      %v457 = vrot.slane %v456, 4
      %v458 = vadd.f32 %v456, %v457
      %v459 = vrot.slane %v458, 2
      %v460 = vadd.f32 %v458, %v459
      %v461 = vrot.slane %v460, 1
      %v462 = vadd.f32 %v460, %v461
      %v463 = vadd.f32 %v437, %v441
      %v464 = vrot.slane %v463, 4
      %v465 = vadd.f32 %v463, %v464
      %v466 = vrot.slane %v465, 2
      %v467 = vadd.f32 %v465, %v466
      %v468 = vrot.slane %v467, 1
      %v469 = vadd.f32 %v467, %v468
      %v470 = vadd.f32 %v448, %v455
      %v471 = vadd.f32 %v470, %v462
      %v472 = vadd.f32 %v471, %v469
      %v473 = vmul.f32 %v472, 0.015625
      %v474 = vadd.f32 %v473, 1e-05
      %v475 = vrsqrt.pop %v474
      %v476 = vmul.f32 %v475, %v474
      %v477 = vmul.f32 %v476, %v475
      %v478 = vmul.f32 0.5, %v477
      %v479 = vsub.f32 1.5, %v478
      %v480 = vmul.f32 %v475, %v479
      %vm481 = vweird.f32 %v474
      %vm482 = vweird.f32 %v475
      %vm483 = vmor %vm481, %vm482
      %v484 = vsel %vm483, %v475, %v480
      %v485 = vperm.slane %v484, 0
      %v486 = vmul.f32 %v426, %v485
      %v487 = vmul.f32 %v427, %v485
      %v488 = vmul.f32 %v428, %v485
      %v489 = vmul.f32 %v429, %v485
      %v490 = vmul.f32 %v430, %v485
      %v491 = vmul.f32 %v431, %v485
      %v492 = vmul.f32 %v432, %v485
      %v493 = vmul.f32 %v433, %v485
      %v494 = vmax.f32 %v486, 0.0
      %v495 = vmax.f32 %v487, 0.0
      %v496 = vmax.f32 %v488, 0.0
      %v497 = vmax.f32 %v489, 0.0
      %v498 = vmax.f32 %v490, 0.0
      %v499 = vmax.f32 %v491, 0.0
      %v500 = vmax.f32 %v492, 0.0
      %v501 = vmax.f32 %v493, 0.0
      %v502 = vpack.c.bf16 %v495, %v494
      %v503 = vpack.c.bf16 %v497, %v496
      %v504 = vpack.c.bf16 %v499, %v498
      %v505 = vpack.c.bf16 %v501, %v500
      %506 = vst [vmem:[%s218] sm:$0xff] %v502
      %507 = vst [vmem:[%s218 + $0x8] sm:$0xff] %v503
      %508 = vst [vmem:[%s218 + $0x10] sm:$0xff] %v504
      %509 = vst [vmem:[%s218 + $0x18] sm:$0xff] %v505
      %p510 = scmp.lt.s32.totalorder %s18, 1
      %s511 = scalar_select %p510, %s18, 1
      %s512 = smul.addr %s511, 8
      %s513 = smul.addr %s512, 4
      %s514 = scalar_lea.vmem %s3, %s513
      // Predicated region
      $region33: #{_lambda_.20} parent=31 // pred_check
        %p515 = pneg %p119
      $region34: #{_lambda_.20} parent=31 // pred_check_branch
        %517 = sbr.rel (%p515) target = $region36
      $region35: #{_lambda_.20} parent=31 // pred_region
        _
      $region36: #{_lambda_.20} parent=31 // pred_fallthru
        _
    $region32: #{_lambda_.20} parent=5 // pred_fallthru
      _
    %p518 = scmp.le.s32.totalorder 2, %s9
    // Predicated region
    $region37: #{_lambda_.20} parent=5 // pred_check
      %p519 = pneg %p518
    $region38: #{_lambda_.20} parent=5 // pred_check_branch
      %521 = sbr.rel (%p519) target = $region40
    $region39: #{_lambda_.20} parent=5 // pred_region
      %s522 = ssub.s32 %s9, 2
      // Predicated region
      $region41: #{_lambda_.20} parent=39 // pred_check
        %p523 = pneg %p125
      $region42: #{_lambda_.20} parent=39 // pred_check_branch
        %525 = sbr.rel (%p523) target = $region44
      $region43: #{_lambda_.20} parent=39 // pred_region
        %p526 = scmp.lt.s32.totalorder %s20, 1
        %s527 = scalar_select %p526, %s20, 1
        %s528 = smul.addr %s527, 8
        %s529 = smul.addr %s528, 4
        %s530 = scalar_lea.vmem %s3, %s529
      $region44: #{_lambda_.20} parent=39 // pred_fallthru
        _
    $region40: #{_lambda_.20} parent=5 // pred_fallthru
      _
  $region6: #{_lambda_.20} parent=0 // loop_footer
    %s13 = sadd.s32 1, %s9
  $region7: #{_lambda_.20} parent=0 // loop_footer_branch
    %8 = sbr.rel target = $region3
  $region8: #{_lambda_.20} parent=0 // loop_exit
    _

// kernel: _lambda_.21
$region0: #{_lambda_.21}
  #allocation0 [shape = 'u32[]', space=smem, size = 0x4, offset = 0x4, fixed_abs, tag = 'smem constant byte address 0x4 - core index']
  #allocation1 [shape = 'u32[72,128]{1,0:T(1,128)}', space=vmem, size = 0x9000, scoped, tag = 'internal scratch']
  %s0 = inlined_call_operand.vmem [shape: bf16[2,64,392], index: 0, kind: input, shape index: {}]
  %s1 = inlined_call_operand.vmem [shape: bf16[392,128], index: 1, kind: input, shape index: {}]
  %s2 = inlined_call_operand.vmem [shape: f32[1,128], index: 2, kind: input, shape index: {}]
  %s3 = inlined_call_operand.vmem [shape: f32[2,64,128], index: 3, kind: output, shape index: {}]
  %s4 = sld [smem:[#allocation0]]
  $region45: #{_lambda_.21} parent=0
    _
  %s6 = ssub.s32 1, %s4
  %s7 = scalar_select 0, %s6, %s4
  loop: start=0, step=1, limit=4
  $region2: #{_lambda_.21} parent=0 // loop_pre_header
    _
  $region3: #{_lambda_.21} parent=0 // loop_header
    %s9 = sphi 0, %s13
    %p10 = scmp.ge.s32.totalorder %s9, 4
    %s16 = sphi 0, %s28
    %s17 = sphi 0, %s24
    %s18 = sphi 0, %s16
    %s19 = sphi 0, %s17
    %s20 = sphi 0, %s18
    %s21 = sphi 0, %s19
    %s33 = sphi 0, %s35
    %s36 = sphi 0, %s33
    %s37 = sphi 0, %s36
    %s53 = sphi 0, %s37
    %s59 = sphi 0, %s61
    %s62 = sphi 0, %s59
    %s63 = sphi 0, %s62
    %s79 = sphi 0, %s63
    %s83 = sphi 0, %s83
    %s85 = sphi 0, %s83
    %s86 = sphi 0, %s85
    %s100 = sphi 0, %s86
    %s106 = sphi 0, %s108
    %s109 = sphi 0, %s106
    %s110 = sphi 0, %s109
    %s126 = sphi 0, %s110
  $region4: #{_lambda_.21} parent=0 // loop_header_branch
    %12 = sbr.rel (%p10) target = $region8
  $region5: #{_lambda_.21} parent=0 // loop_body
    %s14 = ssub.s32 %s9, 1
    %s15 = ssub.s32 %s9, 2
    %s22 = sadd.s32 1, %s17
    %p23 = scmp.ge.s32.totalorder %s22, 1
    %s24 = scalar_select %p23, 0, %s22
    %s25 = sadd.s32 1, %s16
    %s26 = scalar_select %p23, %s25, %s16
    %p27 = scmp.ge.s32.totalorder %s26, 2
    %s28 = scalar_select %p27, 0, %s26
    %s29 = ssub.s32 %s16, %s28
    %s30 = ssub.s32 %s17, %s24
    %s31 = sor.u32 %s29, %s30
    %p32 = scmp.eq.s32.totalorder %s31, 0
    %s34 = sadd.s32 %s33, 1
    %s35 = scalar_select %p32, %s33, %s34
    %p38 = pneg %p32
    %p39 = scmp.eq.s32.totalorder %s9, 1
    %p40 = por %p38, %p39
    %p41 = scmp.ne.s32.totalorder %s33, %s36
    %p42 = scmp.eq.s32.totalorder %s9, 0
    %p43 = por %p41, %p42
    %p44 = scmp.ne.s32.totalorder %s33, %s36
    %p45 = scmp.eq.s32.totalorder %s14, 1
    %p46 = por %p44, %p45
    %p47 = scmp.ne.s32.totalorder %s36, %s37
    %p48 = scmp.eq.s32.totalorder %s14, 0
    %p49 = por %p47, %p48
    %p50 = scmp.ne.s32.totalorder %s36, %s37
    %p51 = scmp.eq.s32.totalorder %s15, 1
    %p52 = por %p50, %p51
    %p54 = scmp.ne.s32.totalorder %s37, %s53
    %p55 = scmp.eq.s32.totalorder %s15, 0
    %p56 = por %p54, %p55
    %s57 = ssub.s32 %s17, %s24
    %p58 = scmp.eq.s32.totalorder %s57, 0
    %s60 = sadd.s32 %s59, 1
    %s61 = scalar_select %p58, %s59, %s60
    %p64 = pneg %p58
    %p65 = scmp.eq.s32.totalorder %s9, 1
    %p66 = por %p64, %p65
    %p67 = scmp.ne.s32.totalorder %s59, %s62
    %p68 = scmp.eq.s32.totalorder %s9, 0
    %p69 = por %p67, %p68
    %p70 = scmp.ne.s32.totalorder %s59, %s62
    %p71 = scmp.eq.s32.totalorder %s14, 1
    %p72 = por %p70, %p71
    %p73 = scmp.ne.s32.totalorder %s62, %s63
    %p74 = scmp.eq.s32.totalorder %s14, 0
    %p75 = por %p73, %p74
    %p76 = scmp.ne.s32.totalorder %s62, %s63
    %p77 = scmp.eq.s32.totalorder %s15, 1
    %p78 = por %p76, %p77
    %p80 = scmp.ne.s32.totalorder %s63, %s79
    %p81 = scmp.eq.s32.totalorder %s15, 0
    %p82 = por %p80, %p81
    %s84 = sadd.s32 %s83, 1
    %p87 = scmp.eq.s32.totalorder %s9, 1
    %p88 = scmp.ne.s32.totalorder %s83, %s85
    %p89 = scmp.eq.s32.totalorder %s9, 0
    %p90 = por %p88, %p89
    %p91 = scmp.ne.s32.totalorder %s83, %s85
    %p92 = scmp.eq.s32.totalorder %s14, 1
    %p93 = por %p91, %p92
    %p94 = scmp.ne.s32.totalorder %s85, %s86
    %p95 = scmp.eq.s32.totalorder %s14, 0
    %p96 = por %p94, %p95
    %p97 = scmp.ne.s32.totalorder %s85, %s86
    %p98 = scmp.eq.s32.totalorder %s15, 1
    %p99 = por %p97, %p98
    %p101 = scmp.ne.s32.totalorder %s86, %s100
    %p102 = scmp.eq.s32.totalorder %s15, 0
    %p103 = por %p101, %p102
    %s104 = ssub.s32 %s16, %s28
    %p105 = scmp.eq.s32.totalorder %s104, 0
    %s107 = sadd.s32 %s106, 1
    %s108 = scalar_select %p105, %s106, %s107
    %p111 = pneg %p105
    %p112 = scmp.eq.s32.totalorder %s9, 1
    %p113 = por %p111, %p112
    %p114 = scmp.ne.s32.totalorder %s106, %s109
    %p115 = scmp.eq.s32.totalorder %s9, 0
    %p116 = por %p114, %p115
    %p117 = scmp.ne.s32.totalorder %s106, %s109
    %p118 = scmp.eq.s32.totalorder %s14, 1
    %p119 = por %p117, %p118
    %p120 = scmp.ne.s32.totalorder %s109, %s110
    %p121 = scmp.eq.s32.totalorder %s14, 0
    %p122 = por %p120, %p121
    %p123 = scmp.ne.s32.totalorder %s109, %s110
    %p124 = scmp.eq.s32.totalorder %s15, 1
    %p125 = por %p123, %p124
    %p127 = scmp.ne.s32.totalorder %s110, %s126
    %p128 = scmp.eq.s32.totalorder %s15, 0
    %p129 = por %p127, %p128
    %p130 = scmp.le.s32.totalorder 1, %s9
    %p131 = scmp.lt.s32.totalorder %s9, 3
    %p132 = pnand %p130, %p131
    %p133 = pneg %p132
    // Predicated region
    $region9: #{_lambda_.21} parent=5 // pred_check
      _
    $region10: #{_lambda_.21} parent=5 // pred_check_branch
      %135 = sbr.rel (%p132) target = $region12
    $region11: #{_lambda_.21} parent=5 // pred_region
      %s136 = ssub.s32 %s9, 1
      // Predicated region
      $region13: #{_lambda_.21} parent=11 // pred_check
        %p137 = pneg %p75
      $region14: #{_lambda_.21} parent=11 // pred_check_branch
        %139 = sbr.rel (%p137) target = $region16
      $region15: #{_lambda_.21} parent=11 // pred_region
        %s140 = smul.u32 49, %s19
        %p141 = scmp.lt.s32.totalorder %s140, 48
        %s142 = scalar_select %p141, %s140, 48
        %s143 = smul.addr %s142, 4
        %s144 = scalar_lea.vmem %s1, %s143
        %s145 = smul.u32 49, %s19
      $region16: #{_lambda_.21} parent=11 // pred_fallthru
        _
      // Predicated region
      $region17: #{_lambda_.21} parent=11 // pred_check
        %p146 = pneg %p96
      $region18: #{_lambda_.21} parent=11 // pred_check_branch
        %148 = sbr.rel (%p146) target = $region20
      $region19: #{_lambda_.21} parent=11 // pred_region
        _
      $region20: #{_lambda_.21} parent=11 // pred_fallthru
        _
    $region12: #{_lambda_.21} parent=5 // pred_fallthru
      _
    %p149 = scmp.lt.s32.totalorder %s9, 2
    // Predicated region
    $region21: #{_lambda_.21} parent=5 // pred_check
      %p150 = pneg %p149
    $region22: #{_lambda_.21} parent=5 // pred_check_branch
      %152 = sbr.rel (%p150) target = $region24
    $region23: #{_lambda_.21} parent=5 // pred_region
      // Predicated region
      $region25: #{_lambda_.21} parent=23 // pred_check
        %p153 = pneg %p43
      $region26: #{_lambda_.21} parent=23 // pred_check_branch
        %155 = sbr.rel (%p153) target = $region28
      $region27: #{_lambda_.21} parent=23 // pred_region
        %s156 = smul.u32 4, %s17
        %p157 = scmp.lt.s32.totalorder %s16, 1
        %s158 = scalar_select %p157, %s16, 1
        %p159 = scmp.lt.s32.totalorder %s156, 3
        %s160 = scalar_select %p159, %s156, 3
        %s161 = smul.addr %s158, 32
        %s162 = sadd.s32 %s160, %s161
        %s163 = smul.addr %s162, 4
        %s164 = scalar_lea.vmem %s0, %s163
        %s165 = smul.u32 4, %s17
      $region28: #{_lambda_.21} parent=23 // pred_fallthru
        _
    $region24: #{_lambda_.21} parent=5 // pred_fallthru
      _
    %p166 = scmp.le.s32.totalorder 1, %s9
    %p167 = scmp.lt.s32.totalorder %s9, 3
    %p168 = pnand %p166, %p167
    %p169 = pneg %p168
    // Predicated region
    $region29: #{_lambda_.21} parent=5 // pred_check
      _
    $region30: #{_lambda_.21} parent=5 // pred_check_branch
      %171 = sbr.rel (%p168) target = $region32
    $region31: #{_lambda_.21} parent=5 // pred_region
      %s172 = ssub.s32 %s9, 1
      %s173 = smul.u32 4, %s19
      %p174 = scmp.lt.s32.totalorder %s18, 1
      %s175 = scalar_select %p174, %s18, 1
      %p176 = scmp.lt.s32.totalorder %s173, 3
      %s177 = scalar_select %p176, %s173, 3
      %s178 = smul.addr %s175, 32
      %s179 = sadd.s32 %s177, %s178
      %s180 = smul.addr %s179, 4
      %s181 = scalar_lea.vmem %s0, %s180
      %p182 = pneg %p49
      %p183 = pneg %p46
      %s184 = smul.u32 49, %s19
      %p185 = scmp.lt.s32.totalorder %s184, 48
      %s186 = scalar_select %p185, %s184, 48
      %s187 = smul.addr %s186, 4
      %s188 = scalar_lea.vmem %s1, %s187
      %p189 = pneg %p75
      %p190 = pneg %p72
      %p191 = pneg %p96
      %p192 = pneg %p93
      %p193 = pneg %p122
      %p194 = pneg %p119
      %p195 = scmp.lt.s32.totalorder %s18, 1
      %s196 = scalar_select %p195, %s18, 1
      %s197 = smul.addr %s196, 8
      %s198 = smul.addr %s197, 8
      %s199 = scalar_lea.vmem %s3, %s198
      %s200 = smul.u32 4, %s19
      %p201 = scmp.lt.s32.totalorder %s18, 1
      %s202 = scalar_select %p201, %s18, 1
      %p203 = scmp.lt.s32.totalorder %s200, 3
      %s204 = scalar_select %p203, %s200, 3
      %s205 = smul.addr %s202, 32
      %s206 = sadd.s32 %s204, %s205
      %s207 = smul.addr %s206, 4
      %s208 = scalar_lea.vmem %s0, %s207
      %s209 = smul.u32 4, %s19
      %s210 = smul.u32 49, %s19
      %p211 = scmp.lt.s32.totalorder %s210, 48
      %s212 = scalar_select %p211, %s210, 48
      %s213 = smul.addr %s212, 4
      %s214 = scalar_lea.vmem %s1, %s213
      %s215 = smul.u32 49, %s19
      %p216 = scmp.lt.s32.totalorder %s18, 1
      %s217 = scalar_select %p216, %s18, 1
      %s218 = smul.addr %s217, 8
      %s219 = smul.addr %s218, 8
      %s220 = scalar_lea.vmem %s3, %s219
      %v222 = vld [vmem:[%s208] sm:$0xff]
      %v223 = vld [vmem:[%s208 + $0x8] sm:$0xff]
      %v224 = vld [vmem:[%s208 + $0x10] sm:$0xff]
      %v225 = vld [vmem:[%s208 + $0x18] sm:$0xff]
      %v226 = vld [vmem:[%s208 + $0x20] sm:$0xff]
      %v227 = vld [vmem:[%s208 + $0x28] sm:$0xff]
      %v228 = vld [vmem:[%s208 + $0x30] sm:$0xff]
      %v229 = vld [vmem:[%s208 + $0x38] sm:$0xff]
      %v230 = vld [vmem:[%s208 + $0x40] sm:$0xff]
      %v231 = vld [vmem:[%s208 + $0x48] sm:$0xff]
      %v232 = vld [vmem:[%s208 + $0x50] sm:$0xff]
      %v233 = vld [vmem:[%s208 + $0x58] sm:$0xff]
      %v234 = vld [vmem:[%s208 + $0x60] sm:$0xff]
      %v235 = vld [vmem:[%s208 + $0x68] sm:$0xff]
      %v236 = vld [vmem:[%s208 + $0x70] sm:$0xff]
      %v237 = vld [vmem:[%s208 + $0x78] sm:$0xff]
      %v238 = vld [vmem:[%s214] sm:$0xf]
      %v239 = vld [vmem:[%s214 + $0x4] sm:$0xf]
      %v240 = vld [vmem:[%s214 + $0x8] sm:$0xf]
      %v241 = vld [vmem:[%s214 + $0xc] sm:$0xf]
      %v242 = vld [vmem:[%s214 + $0x10] sm:$0xf]
      %v243 = vld [vmem:[%s214 + $0x14] sm:$0xf]
      %v244 = vld [vmem:[%s214 + $0x18] sm:$0xf]
      %v245 = vld [vmem:[%s214 + $0x1c] sm:$0xf]
      %v246 = vld [vmem:[%s214 + $0x20] sm:$0xf]
      %v247 = vld [vmem:[%s214 + $0x24] sm:$0xf]
      %v248 = vld [vmem:[%s214 + $0x28] sm:$0xf]
      %v249 = vld [vmem:[%s214 + $0x2c] sm:$0xf]
      %v250 = vld [vmem:[%s214 + $0x30] sm:$0xf]
      %v251 = vld [vmem:[%s214 + $0x34] sm:$0xf]
      %v252 = vld [vmem:[%s214 + $0x38] sm:$0xf]
      %v253 = vld [vmem:[%s214 + $0x3c] sm:$0xf]
      %v254 = vld [vmem:[%s214 + $0x40] sm:$0xf]
      %v255 = vld [vmem:[%s214 + $0x44] sm:$0xf]
      %v256 = vld [vmem:[%s214 + $0x48] sm:$0xf]
      %v257 = vld [vmem:[%s214 + $0x4c] sm:$0xf]
      %v258 = vld [vmem:[%s214 + $0x50] sm:$0xf]
      %v259 = vld [vmem:[%s214 + $0x54] sm:$0xf]
      %v260 = vld [vmem:[%s214 + $0x58] sm:$0xf]
      %v261 = vld [vmem:[%s214 + $0x5c] sm:$0xf]
      %v262 = vld [vmem:[%s214 + $0x60] sm:$0xf]
      %v263 = vld [vmem:[%s214 + $0x64] sm:$0xf]
      %v264 = vld [vmem:[%s214 + $0x68] sm:$0xf]
      %v265 = vld [vmem:[%s214 + $0x6c] sm:$0xf]
      %v266 = vld [vmem:[%s214 + $0x70] sm:$0xf]
      %v267 = vld [vmem:[%s214 + $0x74] sm:$0xf]
      %v268 = vld [vmem:[%s214 + $0x78] sm:$0xf]
      %v269 = vld [vmem:[%s214 + $0x7c] sm:$0xf]
      %v270 = vld [vmem:[%s214 + $0x80] sm:$0xf]
      %v271 = vld [vmem:[%s214 + $0x84] sm:$0xf]
      %v272 = vld [vmem:[%s214 + $0x88] sm:$0xf]
      %v273 = vld [vmem:[%s214 + $0x8c] sm:$0xf]
      %v274 = vld [vmem:[%s214 + $0x90] sm:$0xf]
      %v275 = vld [vmem:[%s214 + $0x94] sm:$0xf]
      %v276 = vld [vmem:[%s214 + $0x98] sm:$0xf]
      %v277 = vld [vmem:[%s214 + $0x9c] sm:$0xf]
      %v278 = vld [vmem:[%s214 + $0xa0] sm:$0xf]
      %v279 = vld [vmem:[%s214 + $0xa4] sm:$0xf]
      %v280 = vld [vmem:[%s214 + $0xa8] sm:$0xf]
      %v281 = vld [vmem:[%s214 + $0xac] sm:$0xf]
      %v282 = vld [vmem:[%s214 + $0xb0] sm:$0xf]
      %v283 = vld [vmem:[%s214 + $0xb4] sm:$0xf]
      %v284 = vld [vmem:[%s214 + $0xb8] sm:$0xf]
      %v285 = vld [vmem:[%s214 + $0xbc] sm:$0xf]
      %v286 = vld [vmem:[%s214 + $0xc0] sm:$0xf]
      %v287 = vld [vmem:[%s2] sm:$0x1]
      %v289 = vperm.slane %v287, 0
      %v307 = vunpack.c.l.b16 %v222
      %v308 = vunpack.c.h.b16 %v222
      %v309 = vunpack.c.l.b16 %v223
      %v310 = vunpack.c.h.b16 %v223
      %v311 = vunpack.c.l.b16 %v224
      %v312 = vunpack.c.h.b16 %v224
      %v313 = vunpack.c.l.b16 %v225
      %v314 = vunpack.c.h.b16 %v225
      %v315 = vunpack.c.l.b16 %v226
      %v316 = vunpack.c.h.b16 %v226
      %v317 = vunpack.c.l.b16 %v227
      %v318 = vunpack.c.h.b16 %v227
      %v319 = vunpack.c.l.b16 %v228
      %v320 = vunpack.c.h.b16 %v228
      %v321 = vunpack.c.l.b16 %v229
      %v322 = vunpack.c.h.b16 %v229
      %v323 = vunpack.c.l.b16 %v230
      %v324 = vunpack.c.h.b16 %v230
      %v325 = vunpack.c.l.b16 %v231
      %v326 = vunpack.c.h.b16 %v231
      %v327 = vunpack.c.l.b16 %v232
      %v328 = vunpack.c.h.b16 %v232
      %v329 = vunpack.c.l.b16 %v233
      %v330 = vunpack.c.h.b16 %v233
      %v331 = vunpack.c.l.b16 %v234
      %v332 = vunpack.c.h.b16 %v234
      %v333 = vunpack.c.l.b16 %v235
      %v334 = vunpack.c.h.b16 %v235
      %v335 = vunpack.c.l.b16 %v236
      %v336 = vunpack.c.h.b16 %v236
      %v337 = vunpack.c.l.b16 %v237
      %v338 = vunpack.c.h.b16 %v237
      %v339 = vpack.c.b16 %v311, %v307
      %v340 = vpack.c.b16 %v312, %v308
      %v341 = vpack.c.b16 %v313, %v309
      %v342 = vpack.c.b16 %v314, %v310
      %v343 = vpack.c.b16 %v319, %v315
      %v344 = vpack.c.b16 %v320, %v316
      %v345 = vpack.c.b16 %v321, %v317
      %v346 = vpack.c.b16 %v322, %v318
      %v347 = vpack.c.b16 %v327, %v323
      %v348 = vpack.c.b16 %v328, %v324
      %v349 = vpack.c.b16 %v329, %v325
      %v350 = vpack.c.b16 %v330, %v326
      %v351 = vpack.c.b16 %v335, %v331
      %v352 = vpack.c.b16 %v336, %v332
      %v353 = vpack.c.b16 %v337, %v333
      %v354 = vpack.c.b16 %v338, %v334
      %v416 = vunpack.c.l.b16 %v238
      %v417 = vunpack.c.l.b16 %v239
      %v418 = vunpack.c.l.b16 %v240
      %v419 = vunpack.c.l.b16 %v241
      %v420 = vunpack.c.l.b16 %v242
      %v421 = vunpack.c.l.b16 %v243
      %v422 = vunpack.c.l.b16 %v244
      %v423 = vunpack.c.l.b16 %v245
      %v424 = vunpack.c.l.b16 %v246
      %v425 = vunpack.c.l.b16 %v247
      %v426 = vunpack.c.l.b16 %v248
      %v427 = vunpack.c.l.b16 %v249
      %v428 = vunpack.c.l.b16 %v250
      %v429 = vunpack.c.l.b16 %v251
      %v430 = vunpack.c.l.b16 %v252
      %v431 = vunpack.c.l.b16 %v253
      %v432 = vunpack.c.l.b16 %v254
      %v433 = vunpack.c.l.b16 %v255
      %v434 = vunpack.c.l.b16 %v256
      %v435 = vunpack.c.l.b16 %v257
      %v436 = vunpack.c.l.b16 %v258
      %v437 = vunpack.c.l.b16 %v259
      %v438 = vunpack.c.l.b16 %v260
      %v439 = vunpack.c.l.b16 %v261
      %v440 = vunpack.c.l.b16 %v262
      %v441 = vunpack.c.l.b16 %v263
      %v442 = vunpack.c.l.b16 %v264
      %v443 = vunpack.c.l.b16 %v265
      %v444 = vunpack.c.l.b16 %v266
      %v445 = vunpack.c.l.b16 %v267
      %v446 = vunpack.c.l.b16 %v268
      %v447 = vunpack.c.l.b16 %v269
      %v448 = vunpack.c.l.b16 %v270
      %v449 = vunpack.c.l.b16 %v271
      %v450 = vunpack.c.l.b16 %v272
      %v451 = vunpack.c.l.b16 %v273
      %v452 = vunpack.c.l.b16 %v274
      %v453 = vunpack.c.l.b16 %v275
      %v454 = vunpack.c.l.b16 %v276
      %v455 = vunpack.c.l.b16 %v277
      %v456 = vunpack.c.l.b16 %v278
      %v457 = vunpack.c.l.b16 %v279
      %v458 = vunpack.c.l.b16 %v280
      %v459 = vunpack.c.l.b16 %v281
      %v460 = vunpack.c.l.b16 %v282
      %v461 = vunpack.c.l.b16 %v283
      %v462 = vunpack.c.l.b16 %v284
      %v463 = vunpack.c.l.b16 %v285
      %v464 = vunpack.c.l.b16 %v286
      %v465 = vpack.c.b16 %v417, %v416
      %v466 = vpack.c.b16 %v419, %v418
      %v467 = vpack.c.b16 %v421, %v420
      %v468 = vpack.c.b16 %v423, %v422
      %v469 = vpack.c.b16 %v425, %v424
      %v470 = vpack.c.b16 %v427, %v426
      %v471 = vpack.c.b16 %v429, %v428
      %v472 = vpack.c.b16 %v431, %v430
      %v473 = vpack.c.b16 %v433, %v432
      %v474 = vpack.c.b16 %v435, %v434
      %v475 = vpack.c.b16 %v437, %v436
      %v476 = vpack.c.b16 %v439, %v438
      %v477 = vpack.c.b16 %v441, %v440
      %v478 = vpack.c.b16 %v443, %v442
      %v479 = vpack.c.b16 %v445, %v444
      %v480 = vpack.c.b16 %v447, %v446
      %v481 = vpack.c.b16 %v449, %v448
      %v482 = vpack.c.b16 %v451, %v450
      %v483 = vpack.c.b16 %v453, %v452
      %v484 = vpack.c.b16 %v455, %v454
      %v485 = vpack.c.b16 %v457, %v456
      %v486 = vpack.c.b16 %v459, %v458
      %v487 = vpack.c.b16 %v461, %v460
      %v488 = vpack.c.b16 %v463, %v462
      %v489 = vpack.c.b16 %v464, %v464
      %vm514 = vcmask 64512
      %v516 = vsel %vm514, %v342, 0
      %v519 = vsel %vm514, %v346, 0
      %v522 = vsel %vm514, %v350, 0
      %v525 = vsel %vm514, %v354, 0
      %vm527 = vcmask 1043456
      %v529 = vsel %vm527, %v489, 0
      %531 = vmatpush.bf16.msra.mxu0 %v472
      %532 = vmatpush.bf16.msra.mxu0 %v471
      %533 = vmatpush.bf16.msra.mxu0 %v470
      %534 = vmatpush.bf16.msra.mxu0 %v469
      %535 = vmatpush.bf16.msra.mxu0 %v468
      %536 = vmatpush.bf16.msra.mxu0 %v467
      %537 = vmatpush.bf16.msra.mxu0 %v466
      %538 = vmatpush.bf16.msra.mxu0 %v465
      %539 = vmatmul.bf16.gmra.mxu0 %v339
      %v540 = vpop.f32.mrf.mxu0
      %v541 = vadd.f32 %v289, %v540
      %v542 = vpop.f32.mrf.mxu0
      %v543 = vadd.f32 %v289, %v542
      %544 = vmatmul.bf16.gmra.mxu0 %v343
      %v545 = vpop.f32.mrf.mxu0
      %v546 = vadd.f32 %v289, %v545
      %v547 = vpop.f32.mrf.mxu0
      %v548 = vadd.f32 %v289, %v547
      %549 = vmatmul.bf16.gmra.mxu0 %v347
      %v550 = vpop.f32.mrf.mxu0
      %v551 = vadd.f32 %v289, %v550
      %v552 = vpop.f32.mrf.mxu0
      %v553 = vadd.f32 %v289, %v552
      %554 = vmatmul.bf16.gmra.mxu0 %v351
      %v555 = vpop.f32.mrf.mxu0
      %v556 = vadd.f32 %v289, %v555
      %v557 = vpop.f32.mrf.mxu0
      %v558 = vadd.f32 %v289, %v557
      %559 = vdwg.mxu0
      %560 = vmatpush.bf16.msra.mxu0 %v480
      %561 = vmatpush.bf16.msra.mxu0 %v479
      %562 = vmatpush.bf16.msra.mxu0 %v478
      %563 = vmatpush.bf16.msra.mxu0 %v477
      %564 = vmatpush.bf16.msra.mxu0 %v476
      %565 = vmatpush.bf16.msra.mxu0 %v475
      %566 = vmatpush.bf16.msra.mxu0 %v474
      %567 = vmatpush.bf16.msra.mxu0 %v473
      %568 = vmatmul.bf16.gmra.mxu0 %v340
      %v569 = vpop.f32.mrf.mxu0
      %v570 = vadd.f32 %v541, %v569
      %v571 = vpop.f32.mrf.mxu0
      %v572 = vadd.f32 %v543, %v571
      %573 = vmatmul.bf16.gmra.mxu0 %v344
      %v574 = vpop.f32.mrf.mxu0
      %v575 = vadd.f32 %v546, %v574
      %v576 = vpop.f32.mrf.mxu0
      %v577 = vadd.f32 %v548, %v576
      %578 = vmatmul.bf16.gmra.mxu0 %v348
      %v579 = vpop.f32.mrf.mxu0
      %v580 = vadd.f32 %v551, %v579
      %v581 = vpop.f32.mrf.mxu0
      %v582 = vadd.f32 %v553, %v581
      %583 = vmatmul.bf16.gmra.mxu0 %v352
      %v584 = vpop.f32.mrf.mxu0
      %v585 = vadd.f32 %v556, %v584
      %v586 = vpop.f32.mrf.mxu0
      %v587 = vadd.f32 %v558, %v586
      %588 = vdwg.mxu0
      %589 = vmatpush.bf16.msra.mxu0 %v488
      %590 = vmatpush.bf16.msra.mxu0 %v487
      %591 = vmatpush.bf16.msra.mxu0 %v486
      %592 = vmatpush.bf16.msra.mxu0 %v485
      %593 = vmatpush.bf16.msra.mxu0 %v484
      %594 = vmatpush.bf16.msra.mxu0 %v483
      %595 = vmatpush.bf16.msra.mxu0 %v482
      %596 = vmatpush.bf16.msra.mxu0 %v481
      %597 = vmatmul.bf16.gmra.mxu0 %v341
      %v598 = vpop.f32.mrf.mxu0
      %v599 = vadd.f32 %v570, %v598
      %v600 = vpop.f32.mrf.mxu0
      %v601 = vadd.f32 %v572, %v600
      %602 = vmatmul.bf16.gmra.mxu0 %v345
      %v603 = vpop.f32.mrf.mxu0
      %v604 = vadd.f32 %v575, %v603
      %v605 = vpop.f32.mrf.mxu0
      %v606 = vadd.f32 %v577, %v605
      %607 = vmatmul.bf16.gmra.mxu0 %v349
      %v608 = vpop.f32.mrf.mxu0
      %v609 = vadd.f32 %v580, %v608
      %v610 = vpop.f32.mrf.mxu0
      %v611 = vadd.f32 %v582, %v610
      %612 = vmatmul.bf16.gmra.mxu0 %v353
      %v613 = vpop.f32.mrf.mxu0
      %v614 = vadd.f32 %v585, %v613
      %v615 = vpop.f32.mrf.mxu0
      %v616 = vadd.f32 %v587, %v615
      %617 = vdwg.mxu0
      %618 = vmatpush.bf16.msra.mxu0 0
      %619 = vmatpush.bf16.msra.mxu0 0
      %620 = vmatpush.bf16.msra.mxu0 0
      %621 = vmatpush.bf16.msra.mxu0 0
      %622 = vmatpush.bf16.msra.mxu0 0
      %623 = vmatpush.bf16.msra.mxu0 0
      %624 = vmatpush.bf16.msra.mxu0 0
      %625 = vmatpush.bf16.msra.mxu0 %v529
      %626 = vmatmul.bf16.gmra.mxu0 %v516
      %v627 = vpop.f32.mrf.mxu0
      %v628 = vadd.f32 %v599, %v627
      %v629 = vpop.f32.mrf.mxu0
      %v630 = vadd.f32 %v601, %v629
      %631 = vmatmul.bf16.gmra.mxu0 %v519
      %v632 = vpop.f32.mrf.mxu0
      %v633 = vadd.f32 %v604, %v632
      %v634 = vpop.f32.mrf.mxu0
      %v635 = vadd.f32 %v606, %v634
      %636 = vmatmul.bf16.gmra.mxu0 %v522
      %v637 = vpop.f32.mrf.mxu0
      %v638 = vadd.f32 %v609, %v637
      %v639 = vpop.f32.mrf.mxu0
      %v640 = vadd.f32 %v611, %v639
      %641 = vmatmul.bf16.gmra.mxu0 %v525
      %v642 = vpop.f32.mrf.mxu0
      %v643 = vadd.f32 %v614, %v642
      %v644 = vpop.f32.mrf.mxu0
      %v645 = vadd.f32 %v616, %v644
      %646 = vdwg.mxu0
      %v647 = vtanh.pop %v628
      %v648 = vtanh.pop %v630
      %v649 = vtanh.pop %v633
      %v650 = vtanh.pop %v635
      %v651 = vtanh.pop %v638
      %v652 = vtanh.pop %v640
      %v653 = vtanh.pop %v643
      %v654 = vtanh.pop %v645
      %655 = vst [vmem:[%s220] sm:$0xff] %v647
      %656 = vst [vmem:[%s220 + $0x8] sm:$0xff] %v648
      %657 = vst [vmem:[%s220 + $0x10] sm:$0xff] %v649
      %658 = vst [vmem:[%s220 + $0x18] sm:$0xff] %v650
      %659 = vst [vmem:[%s220 + $0x20] sm:$0xff] %v651
      %660 = vst [vmem:[%s220 + $0x28] sm:$0xff] %v652
      %661 = vst [vmem:[%s220 + $0x30] sm:$0xff] %v653
      %662 = vst [vmem:[%s220 + $0x38] sm:$0xff] %v654
      %p663 = scmp.lt.s32.totalorder %s18, 1
      %s664 = scalar_select %p663, %s18, 1
      %s665 = smul.addr %s664, 8
      %s666 = smul.addr %s665, 8
      %s667 = scalar_lea.vmem %s3, %s666
      // Predicated region
      $region33: #{_lambda_.21} parent=31 // pred_check
        %p668 = pneg %p119
      $region34: #{_lambda_.21} parent=31 // pred_check_branch
        %670 = sbr.rel (%p668) target = $region36
      $region35: #{_lambda_.21} parent=31 // pred_region
        _
      $region36: #{_lambda_.21} parent=31 // pred_fallthru
        _
    $region32: #{_lambda_.21} parent=5 // pred_fallthru
      _
    %p671 = scmp.le.s32.totalorder 2, %s9
    // Predicated region
    $region37: #{_lambda_.21} parent=5 // pred_check
      %p672 = pneg %p671
    $region38: #{_lambda_.21} parent=5 // pred_check_branch
      %674 = sbr.rel (%p672) target = $region40
    $region39: #{_lambda_.21} parent=5 // pred_region
      %s675 = ssub.s32 %s9, 2
      // Predicated region
      $region41: #{_lambda_.21} parent=39 // pred_check
        %p676 = pneg %p125
      $region42: #{_lambda_.21} parent=39 // pred_check_branch
        %678 = sbr.rel (%p676) target = $region44
      $region43: #{_lambda_.21} parent=39 // pred_region
        %p679 = scmp.lt.s32.totalorder %s20, 1
        %s680 = scalar_select %p679, %s20, 1
        %s681 = smul.addr %s680, 8
        %s682 = smul.addr %s681, 8
        %s683 = scalar_lea.vmem %s3, %s682
      $region44: #{_lambda_.21} parent=39 // pred_fallthru
        _
    $region40: #{_lambda_.21} parent=5 // pred_fallthru
      _
  $region6: #{_lambda_.21} parent=0 // loop_footer
    %s13 = sadd.s32 1, %s9
  $region7: #{_lambda_.21} parent=0 // loop_footer_branch
    %8 = sbr.rel target = $region3
  $region8: #{_lambda_.21} parent=0 // loop_exit
    _

</llo_original>
